<compile_context>
chip_gen: v5e
topology: v5e:2x2
jax: 0.10.0
libtpu: 0.0.40
codegen_flags: <defaults>
</compile_context>

<pallas_src>
import jax
import jax.numpy as jnp
from jax import lax
from jax.experimental import pallas as pl
from jax.experimental.pallas import tpu as pltpu

# ----------------------------- configuration -------------------------------
B, H, W = 2, 8, 8
N_ROWS = B * H * W            # 128 spatial rows, (b, h, w) row-major
NUM_FTRS = 256                # stands in for 2048
FEATURE_SIZE = 128
FC_OUT = 512
N_CLASSES = (4, 21, 23)       # dataset == 'TCT'
BN_EPS = 1e-5

HEAD_PAD = 128                                  # lane-dense padded head width
SIG_COLS = sum(N_CLASSES)                       # cols [0,48): sigmoid heads
W_SHIFT = W.bit_length() - 1                    # log2(W)   (H, W powers of 2)
HW_SHIFT = (H * W).bit_length() - 1             # log2(H*W)
PAD = W + 1                                     # im2col halo: covers |dh*W+dw|
assert (W & (W - 1)) == 0 and (H & (H - 1)) == 0

VMEM_SPEC = pl.BlockSpec(memory_space=pltpu.MemorySpace.VMEM)


# ------------------------------ Pallas kernels ------------------------------
def _block_kernel(x_ref, w1_ref, sh1_ref, w2_ref, sh2_ref,
                  wf1_ref, bf1_ref, wf2_ref, bf2_ref, o_ref, pad_ref):
    """One conv_block_k + pooling + fc_k, fully resident in VMEM."""
    n = x_ref.shape[0]                               # B*H*W

    # --- BasicConv(num_ftrs -> fs, 1x1): conv (BN scale folded) + shift + ReLU
    hid = jnp.dot(x_ref[...], w1_ref[...], preferred_element_type=jnp.float32)
    hid = jnp.maximum(hid + sh1_ref[...], 0.0)       # (n, fs)

    # --- in-VMEM im2col for the 3x3 / stride 1 / pad 1 conv -----------------
    # zero-padded scratch so every shifted slice read is in-bounds; validity
    # masks kill wrap-around across image rows / batch boundaries.
    pad_ref[...] = jnp.zeros_like(pad_ref)
    pad_ref[pl.ds(PAD, n), :] = hid

    row = lax.broadcasted_iota(jnp.int32, (n, 1), 0)
    ww = row & (W - 1)                               # w coordinate
    hh = (row >> W_SHIFT) & (H - 1)                  # h coordinate
    taps = []
    for dh in (-1, 0, 1):
        for dw in (-1, 0, 1):
            s = dh * W + dw
            t = pad_ref[pl.ds(PAD + s, n), :]        # static shifted slice
            valid = ((hh + dh >= 0) & (hh + dh < H) &
                     (ww + dw >= 0) & (ww + dw < W))
            taps.append(jnp.where(valid, t, 0.0))
    tap_mat = jnp.concatenate(taps, axis=1)          # (n, 9*fs), lane-aligned

    # --- BasicConv(fs -> num_ftrs, 3x3): one K=9*fs matmul + shift + ReLU ---
    feat = jnp.dot(tap_mat, w2_ref[...], preferred_element_type=jnp.float32)
    feat = jnp.maximum(feat + sh2_ref[...], 0.0)     # (n, num_ftrs)

    # --- AdaptiveAvgPool2d(1): per-batch spatial mean via a selector matmul -
    bidx = lax.broadcasted_iota(jnp.int32, (B, n), 0)
    nidx = lax.broadcasted_iota(jnp.int32, (B, n), 1)
    sel = jnp.where((nidx >> HW_SHIFT) == bidx,
                    jnp.float32(1.0 / (H * W)), jnp.float32(0.0))
    pooled = jnp.dot(sel, feat, preferred_element_type=jnp.float32)  # (B, num_ftrs)

    # --- fc_k: [BN1d -> Linear -> BN1d] pre-folded into (wf1, bf1); ELU; Linear
    h1 = jnp.dot(pooled, wf1_ref[...],
                 preferred_element_type=jnp.float32) + bf1_ref[...]
    neg = jnp.exp(jnp.minimum(h1, 0.0)) - 1.0        # ELU(alpha=1), no inf on dead branch
    h1 = jnp.where(h1 > 0.0, h1, neg)
    o_ref[...] = jnp.dot(h1, wf2_ref[...],
                         preferred_element_type=jnp.float32) + bf2_ref[...]


def _stacked_spec(a):
    """Per-block slice of a (3, ...) stacked parameter array."""
    nd = a.ndim
    return pl.BlockSpec((None,) + a.shape[1:], lambda k: (k,) + (0,) * (nd - 1))


def block_forward(x2d, bp):
    """All three conv_block_k + fc_k chains; grid=(3,) over the blocks."""
    n, cin = x2d.shape
    stacked = (bp["w1"], bp["sh1"], bp["w2"], bp["sh2"],
               bp["wf1"], bp["bf1"], bp["wf2"], bp["bf2"])
    return pl.pallas_call(
        _block_kernel,
        out_shape=jax.ShapeDtypeStruct((3, B, FC_OUT), jnp.float32),
        grid=(3,),
        in_specs=[pl.BlockSpec((n, cin), lambda k: (0, 0))]
                 + [_stacked_spec(a) for a in stacked],
        out_specs=pl.BlockSpec((None, B, FC_OUT), lambda k: (k, 0, 0)),
        scratch_shapes=[pltpu.VMEM((n + 2 * PAD, FEATURE_SIZE), jnp.float32)],
        compiler_params=pltpu.CompilerParams(
            dimension_semantics=("parallel",)),   # blocks are independent (v7x: 2 TCs)
    )(x2d, *stacked)


def _heads_kernel(fc_ref, w_ref, b_ref, o_ref, r_ref):
    """All four classifier heads as one lane-dense (3B, 128) matmul."""
    o = fc_ref[0]                                    # x_order_fc    (B, 512)
    f = fc_ref[1]                                    # x_family_fc
    s = fc_ref[2]                                    # x_species_fc
    b = o.shape[0]
    r_ref[pl.ds(0, b), :] = jnp.maximum(o, 0.0)              # relu(order)
    r_ref[pl.ds(b, b), :] = jnp.maximum(f + o, 0.0)          # relu(family+order)
    r_ref[pl.ds(2 * b, b), :] = jnp.maximum(s + f + o, 0.0)  # relu(species+family+order)
    logits = jnp.dot(r_ref[...], w_ref[...],
                     preferred_element_type=jnp.float32) + b_ref[...]
    col = lax.broadcasted_iota(jnp.int32, logits.shape, 1)
    sig = 1.0 / (1.0 + jnp.exp(-logits))
    # columns [0, SIG_COLS): classifier_1/2/3 (Sigmoid); rest: classifier_3_1 logits
    o_ref[...] = jnp.where(col < SIG_COLS, sig, logits)


def heads_forward(fc_all, w_cat, b_cat):
    return pl.pallas_call(
        _heads_kernel,
        out_shape=jax.ShapeDtypeStruct((3 * B, HEAD_PAD), jnp.float32),
        in_specs=[VMEM_SPEC, VMEM_SPEC, VMEM_SPEC],
        out_specs=VMEM_SPEC,
        scratch_shapes=[pltpu.VMEM((3 * B, FC_OUT), jnp.float32)],
    )(fc_all, w_cat, b_cat)


# --------------------------- parameter construction -------------------------
def make_params(key):
    cnt = [0]

    def nk():
        cnt[0] += 1
        return jax.random.fold_in(key, cnt[0])

    def bn(c):
        k1, k2, k3, k4 = jax.random.split(nk(), 4)
        gamma = 1.0 + 0.1 * jax.random.normal(k1, (c,), jnp.float32)
        beta = 0.1 * jax.random.normal(k2, (c,), jnp.float32)
        mean = 0.1 * jax.random.normal(k3, (c,), jnp.float32)
        var = 1.0 + 0.1 * jax.random.uniform(k4, (c,), jnp.float32)
        scale = gamma / jnp.sqrt(var + BN_EPS)
        shift = beta - mean * scale
        return scale, shift

    def dense(shape, s=0.05):
        return s * jax.random.normal(nk(), shape, jnp.float32)

    w1_l, sh1_l, w2_l, sh2_l = [], [], [], []
    wf1_l, bf1_l, wf2_l, bf2_l = [], [], [], []
    for _ in range(3):
        # BasicConv(num_ftrs -> fs, 1x1) + BN + ReLU  (BN scale folded into w)
        w1 = dense((NUM_FTRS, FEATURE_SIZE))
        s1, sh1 = bn(FEATURE_SIZE)
        w1_l.append(w1 * s1[None, :])
        sh1_l.append(sh1.reshape(1, FEATURE_SIZE))

        # BasicConv(fs -> num_ftrs, 3x3, pad 1) + BN + ReLU.
        # Tap-major (dh, dw) row-major order; a real PyTorch weight maps as
        # w2[(dh+1)*3 + (dw+1)] = torch_w[:, :, dh+1, dw+1].T
        w2 = dense((9, FEATURE_SIZE, NUM_FTRS))
        s2, sh2 = bn(NUM_FTRS)
        w2_l.append((w2 * s2[None, None, :]).reshape(9 * FEATURE_SIZE, NUM_FTRS))
        sh2_l.append(sh2.reshape(1, NUM_FTRS))

        # fc_k = BN1d(num_ftrs) -> Linear -> BN1d(fs) -> ELU -> Linear(fs, 512)
        # (eval-mode BNs folded exactly into one affine: wf1, bf1)
        s0, b0 = bn(NUM_FTRS)
        wl1 = dense((NUM_FTRS, FEATURE_SIZE))
        bl1 = dense((FEATURE_SIZE,))
        s1f, b1f = bn(FEATURE_SIZE)
        wf1_l.append((s0[:, None] * wl1) * s1f[None, :])
        bf1_l.append(((b0 @ wl1 + bl1) * s1f + b1f).reshape(1, FEATURE_SIZE))
        wf2_l.append(dense((FEATURE_SIZE, FC_OUT)))
        bf2_l.append(dense((FC_OUT,)).reshape(1, FC_OUT))

    blocks = dict(w1=jnp.stack(w1_l), sh1=jnp.stack(sh1_l),
                  w2=jnp.stack(w2_l), sh2=jnp.stack(sh2_l),
                  wf1=jnp.stack(wf1_l), bf1=jnp.stack(bf1_l),
                  wf2=jnp.stack(wf2_l), bf2=jnp.stack(bf2_l))

    # classifier_1, classifier_2, classifier_3 (sigmoid), classifier_3_1 (logits)
    n1, n2, n3 = N_CLASSES
    hw_l, hb_l = [], []
    for nc in (n1, n2, n3, n3):
        hw_l.append(dense((FC_OUT, nc)))
        hb_l.append(dense((nc,)))
    w_cat = jnp.concatenate(hw_l, axis=1)            # (512, 71)
    b_cat = jnp.concatenate(hb_l)
    pad_cols = HEAD_PAD - w_cat.shape[1]
    w_cat = jnp.pad(w_cat, ((0, 0), (0, pad_cols)))  # (512, 128) lane-dense
    b_cat = jnp.pad(b_cat, (0, pad_cols)).reshape(1, HEAD_PAD)
    return dict(blocks=blocks, w_cat=w_cat, b_cat=b_cat)


# -------------------------------- forward ----------------------------------
@jax.jit
def hifd2_forward(x, params):
    # x: (B, H, W, NUM_FTRS) — output of the (omitted) backbone `features`.
    b, h, w, c = x.shape
    x2d = x.reshape(b * h * w, c)

    fc_all = block_forward(x2d, params["blocks"])            # (3, B, 512)
    head = heads_forward(fc_all, params["w_cat"], params["b_cat"])  # (3B, 128)

    n1, n2, n3 = N_CLASSES
    y_order_sig = head[0:b, 0:n1]
    y_family_sig = head[b:2 * b, n1:n1 + n2]
    y_species_sig = head[2 * b:3 * b, n1 + n2:n1 + n2 + n3]
    y_species_sof = head[2 * b:3 * b, n1 + n2 + n3:n1 + n2 + 2 * n3]
    # Same return order as the PyTorch forward.
    return y_order_sig, y_family_sig, y_species_sof, y_species_sig


# ---------------------------------- main ------------------------------------
if __name__ == "__main__":
    key = jax.random.PRNGKey(0)
    kx, kp = jax.random.split(key)
    x = jax.random.normal(kx, (B, H, W, NUM_FTRS), jnp.float32)
    params = make_params(kp)

    outs = hifd2_forward(x, params)
    outs = jax.block_until_ready(outs)

    expected = [(B, N_CLASSES[0]), (B, N_CLASSES[1]),
                (B, N_CLASSES[2]), (B, N_CLASSES[2])]
    assert [tuple(o.shape) for o in outs] == expected, \
        f"bad shapes: {[o.shape for o in outs]}"
    assert all(bool(jnp.all(jnp.isfinite(o))) for o in outs)
    print("KERNEL_OK")
</pallas_src>

<mosaic_0001>
module attributes {stable_mosaic.version = 11 : i64} {
  func.func @_heads_kernel(%arg0: memref<3x2x512xf32, #tpu.memory_space<vmem>>, %arg1: memref<512x128xf32, #tpu.memory_space<vmem>>, %arg2: memref<1x128xf32, #tpu.memory_space<vmem>>, %arg3: memref<6x128xf32, #tpu.memory_space<vmem>>, %arg4: memref<6x512xf32, #tpu.memory_space<vmem>>) attributes {dimension_semantics = [], scalar_prefetch = 0 : i64, scratch_operands = 1 : i64, tpu.core_type = #tpu.core_type<tc>} {
    %c0 = arith.constant 0 : index
    %c0_0 = arith.constant 0 : index
    %c0_1 = arith.constant 0 : index
    %0 = vector.load %arg0[%c0, %c0_0, %c0_1] : memref<3x2x512xf32, #tpu.memory_space<vmem>>, vector<1x2x512xf32>
    %1 = vector.shape_cast %0 : vector<1x2x512xf32> to vector<2x512xf32>
    %c1 = arith.constant 1 : index
    %c0_2 = arith.constant 0 : index
    %c0_3 = arith.constant 0 : index
    %2 = vector.load %arg0[%c1, %c0_2, %c0_3] : memref<3x2x512xf32, #tpu.memory_space<vmem>>, vector<1x2x512xf32>
    %3 = vector.shape_cast %2 : vector<1x2x512xf32> to vector<2x512xf32>
    %c2 = arith.constant 2 : index
    %c0_4 = arith.constant 0 : index
    %c0_5 = arith.constant 0 : index
    %4 = vector.load %arg0[%c2, %c0_4, %c0_5] : memref<3x2x512xf32, #tpu.memory_space<vmem>>, vector<1x2x512xf32>
    %5 = vector.shape_cast %4 : vector<1x2x512xf32> to vector<2x512xf32>
    %cst = arith.constant 0.000000e+00 : f32
    %6 = vector.broadcast %cst : f32 to vector<2x512xf32>
    %7 = arith.maximumf %1, %6 : vector<2x512xf32>
    %c0_6 = arith.constant 0 : index
    %c0_7 = arith.constant 0 : index
    %8 = vector.load %arg4[%c0_6, %c0_7] : memref<6x512xf32, #tpu.memory_space<vmem>>, vector<2x512xf32>
    tpu.vector_store %arg4[%c0_6, %c0_7], %7 {strides = array<i32>} : memref<6x512xf32, #tpu.memory_space<vmem>>, vector<2x512xf32>,
    %9 = arith.addf %3, %1 : vector<2x512xf32>
    %cst_8 = arith.constant 0.000000e+00 : f32
    %10 = vector.broadcast %cst_8 : f32 to vector<2x512xf32>
    %11 = arith.maximumf %9, %10 : vector<2x512xf32>
    %c2_9 = arith.constant 2 : index
    %c0_10 = arith.constant 0 : index
    %12 = vector.load %arg4[%c2_9, %c0_10] : memref<6x512xf32, #tpu.memory_space<vmem>>, vector<2x512xf32>
    tpu.vector_store %arg4[%c2_9, %c0_10], %11 {strides = array<i32>} : memref<6x512xf32, #tpu.memory_space<vmem>>, vector<2x512xf32>,
    %13 = arith.addf %5, %3 : vector<2x512xf32>
    %14 = arith.addf %13, %1 : vector<2x512xf32>
    %cst_11 = arith.constant 0.000000e+00 : f32
    %15 = vector.broadcast %cst_11 : f32 to vector<2x512xf32>
    %16 = arith.maximumf %14, %15 : vector<2x512xf32>
    %c4 = arith.constant 4 : index
    %c0_12 = arith.constant 0 : index
    %17 = vector.load %arg4[%c4, %c0_12] : memref<6x512xf32, #tpu.memory_space<vmem>>, vector<2x512xf32>
    tpu.vector_store %arg4[%c4, %c0_12], %16 {strides = array<i32>} : memref<6x512xf32, #tpu.memory_space<vmem>>, vector<2x512xf32>,
    %c0_13 = arith.constant 0 : index
    %c0_14 = arith.constant 0 : index
    %18 = vector.load %arg4[%c0_13, %c0_14] : memref<6x512xf32, #tpu.memory_space<vmem>>, vector<6x512xf32>
    %c0_15 = arith.constant 0 : index
    %c0_16 = arith.constant 0 : index
    %19 = vector.load %arg1[%c0_15, %c0_16] : memref<512x128xf32, #tpu.memory_space<vmem>>, vector<512x128xf32>
    %cst_17 = arith.constant dense<0.000000e+00> : vector<6x128xf32>
    %20 = tpu.matmul %18, %19, %cst_17 {dimension_numbers = #tpu.dot_dimension_numbers<[1], [0], [0], [1], [0, 0, 1, 1], [], []>} : vector<6x512xf32>, vector<512x128xf32>, vector<6x128xf32> -> vector<6x128xf32>
    %c0_18 = arith.constant 0 : index
    %c0_19 = arith.constant 0 : index
    %21 = vector.load %arg2[%c0_18, %c0_19] : memref<1x128xf32, #tpu.memory_space<vmem>>, vector<1x128xf32>
    %22 = vector.broadcast %21 : vector<1x128xf32> to vector<6x128xf32>
    %23 = arith.addf %20, %22 : vector<6x128xf32>
    %24 = tpu.iota {dimensions = array<i32: 1>} : vector<6x128xi32>
    %cst_20 = arith.constant 0.000000e+00 : f32
    %25 = vector.broadcast %cst_20 : f32 to vector<6x128xf32>
    %26 = arith.subf %25, %23 : vector<6x128xf32>
    %27 = math.exp %26 : vector<6x128xf32>
    %cst_21 = arith.constant 1.000000e+00 : f32
    %28 = vector.broadcast %cst_21 : f32 to vector<6x128xf32>
    %29 = arith.addf %28, %27 : vector<6x128xf32>
    %cst_22 = arith.constant 1.000000e+00 : f32
    %30 = vector.broadcast %cst_22 : f32 to vector<6x128xf32>
    %31 = arith.divf %30, %29 : vector<6x128xf32>
    %c48_i32 = arith.constant 48 : i32
    %32 = vector.broadcast %c48_i32 : i32 to vector<6x128xi32>
    %33 = arith.cmpi slt, %24, %32 : vector<6x128xi32>
    %34 = arith.select %33, %31, %23 : vector<6x128xi1>, vector<6x128xf32>
    %c0_23 = arith.constant 0 : index
    %c0_24 = arith.constant 0 : index
    %35 = vector.load %arg3[%c0_23, %c0_24] : memref<6x128xf32, #tpu.memory_space<vmem>>, vector<6x128xf32>
    tpu.vector_store %arg3[%c0_23, %c0_24], %34 {strides = array<i32>} : memref<6x128xf32, #tpu.memory_space<vmem>>, vector<6x128xf32>,
    return
  }
}

module attributes {stable_mosaic.version = 11 : i64} {
  func.func @_block_kernel(%arg0: i32, %arg1: memref<128x256xf32, #tpu.memory_space<vmem>>, %arg2: memref<1x256x128xf32, #tpu.memory_space<vmem>>, %arg3: memref<1x1x128xf32, #tpu.memory_space<vmem>>, %arg4: memref<1x1152x256xf32, #tpu.memory_space<vmem>>, %arg5: memref<1x1x256xf32, #tpu.memory_space<vmem>>, %arg6: memref<1x256x128xf32, #tpu.memory_space<vmem>>, %arg7: memref<1x1x128xf32, #tpu.memory_space<vmem>>, %arg8: memref<1x128x512xf32, #tpu.memory_space<vmem>>, %arg9: memref<1x1x512xf32, #tpu.memory_space<vmem>>, %arg10: memref<1x2x512xf32, #tpu.memory_space<vmem>>, %arg11: memref<146x128xf32, #tpu.memory_space<vmem>>) attributes {dimension_semantics = [#tpu.dimension_semantics<parallel>], iteration_bounds = array<i64: 3>, scalar_prefetch = 0 : i64, scratch_operands = 1 : i64, tpu.core_type = #tpu.core_type<tc>, window_params = [{pipeline_mode = #tpu.pipeline_mode<synchronous>, transform_indices = @transform_0, window_bounds = array<i64: 128, 256>}, {transform_indices = @transform_1, window_bounds = array<i64: 1, 256, 128>}, {transform_indices = @transform_2, window_bounds = array<i64: 1, 1, 128>}, {transform_indices = @transform_3, window_bounds = array<i64: 1, 1152, 256>}, {transform_indices = @transform_4, window_bounds = array<i64: 1, 1, 256>}, {transform_indices = @transform_5, window_bounds = array<i64: 1, 256, 128>}, {transform_indices = @transform_6, window_bounds = array<i64: 1, 1, 128>}, {transform_indices = @transform_7, window_bounds = array<i64: 1, 128, 512>}, {transform_indices = @transform_8, window_bounds = array<i64: 1, 1, 512>}, {transform_indices = @transform_9, window_bounds = array<i64: 1, 2, 512>}]} {
    %c0 = arith.constant 0 : index
    %c0_0 = arith.constant 0 : index
    %0 = vector.load %arg1[%c0, %c0_0] : memref<128x256xf32, #tpu.memory_space<vmem>>, vector<128x256xf32>
    %c0_1 = arith.constant 0 : index
    %c0_2 = arith.constant 0 : index
    %c0_3 = arith.constant 0 : index
    %1 = vector.load %arg2[%c0_1, %c0_2, %c0_3] : memref<1x256x128xf32, #tpu.memory_space<vmem>>, vector<1x256x128xf32>
    %2 = vector.shape_cast %1 : vector<1x256x128xf32> to vector<256x128xf32>
    %cst = arith.constant dense<0.000000e+00> : vector<128x128xf32>
    %3 = tpu.matmul %0, %2, %cst {dimension_numbers = #tpu.dot_dimension_numbers<[1], [0], [0], [1], [0, 0, 1, 1], [], []>} : vector<128x256xf32>, vector<256x128xf32>, vector<128x128xf32> -> vector<128x128xf32>
    %c0_4 = arith.constant 0 : index
    %c0_5 = arith.constant 0 : index
    %c0_6 = arith.constant 0 : index
    %4 = vector.load %arg3[%c0_4, %c0_5, %c0_6] : memref<1x1x128xf32, #tpu.memory_space<vmem>>, vector<1x1x128xf32>
    %5 = vector.shape_cast %4 : vector<1x1x128xf32> to vector<1x128xf32>
    %6 = vector.broadcast %5 : vector<1x128xf32> to vector<128x128xf32>
    %7 = arith.addf %3, %6 : vector<128x128xf32>
    %cst_7 = arith.constant 0.000000e+00 : f32
    %8 = vector.broadcast %cst_7 : f32 to vector<128x128xf32>
    %9 = arith.maximumf %7, %8 : vector<128x128xf32>
    %cst_8 = arith.constant 0.000000e+00 : f32
    %10 = vector.broadcast %cst_8 : f32 to vector<146x128xf32>
    %c0_9 = arith.constant 0 : index
    %c0_10 = arith.constant 0 : index
    %11 = vector.load %arg11[%c0_9, %c0_10] : memref<146x128xf32, #tpu.memory_space<vmem>>, vector<146x128xf32>
    tpu.vector_store %arg11[%c0_9, %c0_10], %10 {strides = array<i32>} : memref<146x128xf32, #tpu.memory_space<vmem>>, vector<146x128xf32>,
    %c9 = arith.constant 9 : index
    %c0_11 = arith.constant 0 : index
    %12 = vector.load %arg11[%c9, %c0_11] : memref<146x128xf32, #tpu.memory_space<vmem>>, vector<128x128xf32>
    tpu.vector_store %arg11[%c9, %c0_11], %9 {strides = array<i32>} : memref<146x128xf32, #tpu.memory_space<vmem>>, vector<128x128xf32>,
    %13 = tpu.iota {dimensions = array<i32: 0>} : vector<128x1xi32>
    %c7_i32 = arith.constant 7 : i32
    %14 = vector.broadcast %c7_i32 : i32 to vector<128x1xi32>
    %15 = arith.andi %13, %14 : vector<128x1xi32>
    %c3_i32 = arith.constant 3 : i32
    %16 = vector.broadcast %c3_i32 : i32 to vector<128x1xi32>
    %17 = arith.shrsi %13, %16 : vector<128x1xi32>
    %c7_i32_12 = arith.constant 7 : i32
    %18 = vector.broadcast %c7_i32_12 : i32 to vector<128x1xi32>
    %19 = arith.andi %17, %18 : vector<128x1xi32>
    %c0_13 = arith.constant 0 : index
    %c0_14 = arith.constant 0 : index
    %20 = vector.load %arg11[%c0_13, %c0_14] : memref<146x128xf32, #tpu.memory_space<vmem>>, vector<128x128xf32>
    %c-1_i32 = arith.constant -1 : i32
    %21 = vector.broadcast %c-1_i32 : i32 to vector<128x1xi32>
    %22 = arith.addi %19, %21 : vector<128x1xi32>
    %c0_i32 = arith.constant 0 : i32
    %23 = vector.broadcast %c0_i32 : i32 to vector<128x1xi32>
    %24 = arith.cmpi sge, %22, %23 : vector<128x1xi32>
    %c-1_i32_15 = arith.constant -1 : i32
    %25 = vector.broadcast %c-1_i32_15 : i32 to vector<128x1xi32>
    %26 = arith.addi %19, %25 : vector<128x1xi32>
    %c8_i32 = arith.constant 8 : i32
    %27 = vector.broadcast %c8_i32 : i32 to vector<128x1xi32>
    %28 = arith.cmpi slt, %26, %27 : vector<128x1xi32>
    %29 = arith.andi %24, %28 : vector<128x1xi1>
    %c-1_i32_16 = arith.constant -1 : i32
    %30 = vector.broadcast %c-1_i32_16 : i32 to vector<128x1xi32>
    %31 = arith.addi %15, %30 : vector<128x1xi32>
    %c0_i32_17 = arith.constant 0 : i32
    %32 = vector.broadcast %c0_i32_17 : i32 to vector<128x1xi32>
    %33 = arith.cmpi sge, %31, %32 : vector<128x1xi32>
    %34 = arith.andi %29, %33 : vector<128x1xi1>
    %c-1_i32_18 = arith.constant -1 : i32
    %35 = vector.broadcast %c-1_i32_18 : i32 to vector<128x1xi32>
    %36 = arith.addi %15, %35 : vector<128x1xi32>
    %c8_i32_19 = arith.constant 8 : i32
    %37 = vector.broadcast %c8_i32_19 : i32 to vector<128x1xi32>
    %38 = arith.cmpi slt, %36, %37 : vector<128x1xi32>
    %39 = arith.andi %34, %38 : vector<128x1xi1>
    %cst_20 = arith.constant 0.000000e+00 : f32
    %40 = vector.shape_cast %39 : vector<128x1xi1> to vector<128x1xi1>
    %41 = vector.broadcast %40 : vector<128x1xi1> to vector<128x128xi1>
    %42 = vector.broadcast %cst_20 : f32 to vector<128x128xf32>
    %43 = arith.select %41, %20, %42 : vector<128x128xi1>, vector<128x128xf32>
    %c1 = arith.constant 1 : index
    %c0_21 = arith.constant 0 : index
    %44 = vector.load %arg11[%c1, %c0_21] : memref<146x128xf32, #tpu.memory_space<vmem>>, vector<128x128xf32>
    %c-1_i32_22 = arith.constant -1 : i32
    %45 = vector.broadcast %c-1_i32_22 : i32 to vector<128x1xi32>
    %46 = arith.addi %19, %45 : vector<128x1xi32>
    %c0_i32_23 = arith.constant 0 : i32
    %47 = vector.broadcast %c0_i32_23 : i32 to vector<128x1xi32>
    %48 = arith.cmpi sge, %46, %47 : vector<128x1xi32>
    %c-1_i32_24 = arith.constant -1 : i32
    %49 = vector.broadcast %c-1_i32_24 : i32 to vector<128x1xi32>
    %50 = arith.addi %19, %49 : vector<128x1xi32>
    %c8_i32_25 = arith.constant 8 : i32
    %51 = vector.broadcast %c8_i32_25 : i32 to vector<128x1xi32>
    %52 = arith.cmpi slt, %50, %51 : vector<128x1xi32>
    %53 = arith.andi %48, %52 : vector<128x1xi1>
    %c0_i32_26 = arith.constant 0 : i32
    %54 = vector.broadcast %c0_i32_26 : i32 to vector<128x1xi32>
    %55 = arith.addi %15, %54 : vector<128x1xi32>
    %c0_i32_27 = arith.constant 0 : i32
    %56 = vector.broadcast %c0_i32_27 : i32 to vector<128x1xi32>
    %57 = arith.cmpi sge, %55, %56 : vector<128x1xi32>
    %58 = arith.andi %53, %57 : vector<128x1xi1>
    %c0_i32_28 = arith.constant 0 : i32
    %59 = vector.broadcast %c0_i32_28 : i32 to vector<128x1xi32>
    %60 = arith.addi %15, %59 : vector<128x1xi32>
    %c8_i32_29 = arith.constant 8 : i32
    %61 = vector.broadcast %c8_i32_29 : i32 to vector<128x1xi32>
    %62 = arith.cmpi slt, %60, %61 : vector<128x1xi32>
    %63 = arith.andi %58, %62 : vector<128x1xi1>
    %cst_30 = arith.constant 0.000000e+00 : f32
    %64 = vector.shape_cast %63 : vector<128x1xi1> to vector<128x1xi1>
    %65 = vector.broadcast %64 : vector<128x1xi1> to vector<128x128xi1>
    %66 = vector.broadcast %cst_30 : f32 to vector<128x128xf32>
    %67 = arith.select %65, %44, %66 : vector<128x128xi1>, vector<128x128xf32>
    %c2 = arith.constant 2 : index
    %c0_31 = arith.constant 0 : index
    %68 = vector.load %arg11[%c2, %c0_31] : memref<146x128xf32, #tpu.memory_space<vmem>>, vector<128x128xf32>
    %c-1_i32_32 = arith.constant -1 : i32
    %69 = vector.broadcast %c-1_i32_32 : i32 to vector<128x1xi32>
    %70 = arith.addi %19, %69 : vector<128x1xi32>
    %c0_i32_33 = arith.constant 0 : i32
    %71 = vector.broadcast %c0_i32_33 : i32 to vector<128x1xi32>
    %72 = arith.cmpi sge, %70, %71 : vector<128x1xi32>
    %c-1_i32_34 = arith.constant -1 : i32
    %73 = vector.broadcast %c-1_i32_34 : i32 to vector<128x1xi32>
    %74 = arith.addi %19, %73 : vector<128x1xi32>
    %c8_i32_35 = arith.constant 8 : i32
    %75 = vector.broadcast %c8_i32_35 : i32 to vector<128x1xi32>
    %76 = arith.cmpi slt, %74, %75 : vector<128x1xi32>
    %77 = arith.andi %72, %76 : vector<128x1xi1>
    %c1_i32 = arith.constant 1 : i32
    %78 = vector.broadcast %c1_i32 : i32 to vector<128x1xi32>
    %79 = arith.addi %15, %78 : vector<128x1xi32>
    %c0_i32_36 = arith.constant 0 : i32
    %80 = vector.broadcast %c0_i32_36 : i32 to vector<128x1xi32>
    %81 = arith.cmpi sge, %79, %80 : vector<128x1xi32>
    %82 = arith.andi %77, %81 : vector<128x1xi1>
    %c1_i32_37 = arith.constant 1 : i32
    %83 = vector.broadcast %c1_i32_37 : i32 to vector<128x1xi32>
    %84 = arith.addi %15, %83 : vector<128x1xi32>
    %c8_i32_38 = arith.constant 8 : i32
    %85 = vector.broadcast %c8_i32_38 : i32 to vector<128x1xi32>
    %86 = arith.cmpi slt, %84, %85 : vector<128x1xi32>
    %87 = arith.andi %82, %86 : vector<128x1xi1>
    %cst_39 = arith.constant 0.000000e+00 : f32
    %88 = vector.shape_cast %87 : vector<128x1xi1> to vector<128x1xi1>
    %89 = vector.broadcast %88 : vector<128x1xi1> to vector<128x128xi1>
    %90 = vector.broadcast %cst_39 : f32 to vector<128x128xf32>
    %91 = arith.select %89, %68, %90 : vector<128x128xi1>, vector<128x128xf32>
    %c8 = arith.constant 8 : index
    %c0_40 = arith.constant 0 : index
    %92 = vector.load %arg11[%c8, %c0_40] : memref<146x128xf32, #tpu.memory_space<vmem>>, vector<128x128xf32>
    %c0_i32_41 = arith.constant 0 : i32
    %93 = vector.broadcast %c0_i32_41 : i32 to vector<128x1xi32>
    %94 = arith.addi %19, %93 : vector<128x1xi32>
    %c0_i32_42 = arith.constant 0 : i32
    %95 = vector.broadcast %c0_i32_42 : i32 to vector<128x1xi32>
    %96 = arith.cmpi sge, %94, %95 : vector<128x1xi32>
    %c0_i32_43 = arith.constant 0 : i32
    %97 = vector.broadcast %c0_i32_43 : i32 to vector<128x1xi32>
    %98 = arith.addi %19, %97 : vector<128x1xi32>
    %c8_i32_44 = arith.constant 8 : i32
    %99 = vector.broadcast %c8_i32_44 : i32 to vector<128x1xi32>
    %100 = arith.cmpi slt, %98, %99 : vector<128x1xi32>
    %101 = arith.andi %96, %100 : vector<128x1xi1>
    %c-1_i32_45 = arith.constant -1 : i32
    %102 = vector.broadcast %c-1_i32_45 : i32 to vector<128x1xi32>
    %103 = arith.addi %15, %102 : vector<128x1xi32>
    %c0_i32_46 = arith.constant 0 : i32
    %104 = vector.broadcast %c0_i32_46 : i32 to vector<128x1xi32>
    %105 = arith.cmpi sge, %103, %104 : vector<128x1xi32>
    %106 = arith.andi %101, %105 : vector<128x1xi1>
    %c-1_i32_47 = arith.constant -1 : i32
    %107 = vector.broadcast %c-1_i32_47 : i32 to vector<128x1xi32>
    %108 = arith.addi %15, %107 : vector<128x1xi32>
    %c8_i32_48 = arith.constant 8 : i32
    %109 = vector.broadcast %c8_i32_48 : i32 to vector<128x1xi32>
    %110 = arith.cmpi slt, %108, %109 : vector<128x1xi32>
    %111 = arith.andi %106, %110 : vector<128x1xi1>
    %cst_49 = arith.constant 0.000000e+00 : f32
    %112 = vector.shape_cast %111 : vector<128x1xi1> to vector<128x1xi1>
    %113 = vector.broadcast %112 : vector<128x1xi1> to vector<128x128xi1>
    %114 = vector.broadcast %cst_49 : f32 to vector<128x128xf32>
    %115 = arith.select %113, %92, %114 : vector<128x128xi1>, vector<128x128xf32>
    %c9_50 = arith.constant 9 : index
    %c0_51 = arith.constant 0 : index
    %116 = vector.load %arg11[%c9_50, %c0_51] : memref<146x128xf32, #tpu.memory_space<vmem>>, vector<128x128xf32>
    %c0_i32_52 = arith.constant 0 : i32
    %117 = vector.broadcast %c0_i32_52 : i32 to vector<128x1xi32>
    %118 = arith.addi %19, %117 : vector<128x1xi32>
    %c0_i32_53 = arith.constant 0 : i32
    %119 = vector.broadcast %c0_i32_53 : i32 to vector<128x1xi32>
    %120 = arith.cmpi sge, %118, %119 : vector<128x1xi32>
    %c0_i32_54 = arith.constant 0 : i32
    %121 = vector.broadcast %c0_i32_54 : i32 to vector<128x1xi32>
    %122 = arith.addi %19, %121 : vector<128x1xi32>
    %c8_i32_55 = arith.constant 8 : i32
    %123 = vector.broadcast %c8_i32_55 : i32 to vector<128x1xi32>
    %124 = arith.cmpi slt, %122, %123 : vector<128x1xi32>
    %125 = arith.andi %120, %124 : vector<128x1xi1>
    %c0_i32_56 = arith.constant 0 : i32
    %126 = vector.broadcast %c0_i32_56 : i32 to vector<128x1xi32>
    %127 = arith.addi %15, %126 : vector<128x1xi32>
    %c0_i32_57 = arith.constant 0 : i32
    %128 = vector.broadcast %c0_i32_57 : i32 to vector<128x1xi32>
    %129 = arith.cmpi sge, %127, %128 : vector<128x1xi32>
    %130 = arith.andi %125, %129 : vector<128x1xi1>
    %c0_i32_58 = arith.constant 0 : i32
    %131 = vector.broadcast %c0_i32_58 : i32 to vector<128x1xi32>
    %132 = arith.addi %15, %131 : vector<128x1xi32>
    %c8_i32_59 = arith.constant 8 : i32
    %133 = vector.broadcast %c8_i32_59 : i32 to vector<128x1xi32>
    %134 = arith.cmpi slt, %132, %133 : vector<128x1xi32>
    %135 = arith.andi %130, %134 : vector<128x1xi1>
    %cst_60 = arith.constant 0.000000e+00 : f32
    %136 = vector.shape_cast %135 : vector<128x1xi1> to vector<128x1xi1>
    %137 = vector.broadcast %136 : vector<128x1xi1> to vector<128x128xi1>
    %138 = vector.broadcast %cst_60 : f32 to vector<128x128xf32>
    %139 = arith.select %137, %116, %138 : vector<128x128xi1>, vector<128x128xf32>
    %c10 = arith.constant 10 : index
    %c0_61 = arith.constant 0 : index
    %140 = vector.load %arg11[%c10, %c0_61] : memref<146x128xf32, #tpu.memory_space<vmem>>, vector<128x128xf32>
    %c0_i32_62 = arith.constant 0 : i32
    %141 = vector.broadcast %c0_i32_62 : i32 to vector<128x1xi32>
    %142 = arith.addi %19, %141 : vector<128x1xi32>
    %c0_i32_63 = arith.constant 0 : i32
    %143 = vector.broadcast %c0_i32_63 : i32 to vector<128x1xi32>
    %144 = arith.cmpi sge, %142, %143 : vector<128x1xi32>
    %c0_i32_64 = arith.constant 0 : i32
    %145 = vector.broadcast %c0_i32_64 : i32 to vector<128x1xi32>
    %146 = arith.addi %19, %145 : vector<128x1xi32>
    %c8_i32_65 = arith.constant 8 : i32
    %147 = vector.broadcast %c8_i32_65 : i32 to vector<128x1xi32>
    %148 = arith.cmpi slt, %146, %147 : vector<128x1xi32>
    %149 = arith.andi %144, %148 : vector<128x1xi1>
    %c1_i32_66 = arith.constant 1 : i32
    %150 = vector.broadcast %c1_i32_66 : i32 to vector<128x1xi32>
    %151 = arith.addi %15, %150 : vector<128x1xi32>
    %c0_i32_67 = arith.constant 0 : i32
    %152 = vector.broadcast %c0_i32_67 : i32 to vector<128x1xi32>
    %153 = arith.cmpi sge, %151, %152 : vector<128x1xi32>
    %154 = arith.andi %149, %153 : vector<128x1xi1>
    %c1_i32_68 = arith.constant 1 : i32
    %155 = vector.broadcast %c1_i32_68 : i32 to vector<128x1xi32>
    %156 = arith.addi %15, %155 : vector<128x1xi32>
    %c8_i32_69 = arith.constant 8 : i32
    %157 = vector.broadcast %c8_i32_69 : i32 to vector<128x1xi32>
    %158 = arith.cmpi slt, %156, %157 : vector<128x1xi32>
    %159 = arith.andi %154, %158 : vector<128x1xi1>
    %cst_70 = arith.constant 0.000000e+00 : f32
    %160 = vector.shape_cast %159 : vector<128x1xi1> to vector<128x1xi1>
    %161 = vector.broadcast %160 : vector<128x1xi1> to vector<128x128xi1>
    %162 = vector.broadcast %cst_70 : f32 to vector<128x128xf32>
    %163 = arith.select %161, %140, %162 : vector<128x128xi1>, vector<128x128xf32>
    %c16 = arith.constant 16 : index
    %c0_71 = arith.constant 0 : index
    %164 = vector.load %arg11[%c16, %c0_71] : memref<146x128xf32, #tpu.memory_space<vmem>>, vector<128x128xf32>
    %c1_i32_72 = arith.constant 1 : i32
    %165 = vector.broadcast %c1_i32_72 : i32 to vector<128x1xi32>
    %166 = arith.addi %19, %165 : vector<128x1xi32>
    %c0_i32_73 = arith.constant 0 : i32
    %167 = vector.broadcast %c0_i32_73 : i32 to vector<128x1xi32>
    %168 = arith.cmpi sge, %166, %167 : vector<128x1xi32>
    %c1_i32_74 = arith.constant 1 : i32
    %169 = vector.broadcast %c1_i32_74 : i32 to vector<128x1xi32>
    %170 = arith.addi %19, %169 : vector<128x1xi32>
    %c8_i32_75 = arith.constant 8 : i32
    %171 = vector.broadcast %c8_i32_75 : i32 to vector<128x1xi32>
    %172 = arith.cmpi slt, %170, %171 : vector<128x1xi32>
    %173 = arith.andi %168, %172 : vector<128x1xi1>
    %c-1_i32_76 = arith.constant -1 : i32
    %174 = vector.broadcast %c-1_i32_76 : i32 to vector<128x1xi32>
    %175 = arith.addi %15, %174 : vector<128x1xi32>
    %c0_i32_77 = arith.constant 0 : i32
    %176 = vector.broadcast %c0_i32_77 : i32 to vector<128x1xi32>
    %177 = arith.cmpi sge, %175, %176 : vector<128x1xi32>
    %178 = arith.andi %173, %177 : vector<128x1xi1>
    %c-1_i32_78 = arith.constant -1 : i32
    %179 = vector.broadcast %c-1_i32_78 : i32 to vector<128x1xi32>
    %180 = arith.addi %15, %179 : vector<128x1xi32>
    %c8_i32_79 = arith.constant 8 : i32
    %181 = vector.broadcast %c8_i32_79 : i32 to vector<128x1xi32>
    %182 = arith.cmpi slt, %180, %181 : vector<128x1xi32>
    %183 = arith.andi %178, %182 : vector<128x1xi1>
    %cst_80 = arith.constant 0.000000e+00 : f32
    %184 = vector.shape_cast %183 : vector<128x1xi1> to vector<128x1xi1>
    %185 = vector.broadcast %184 : vector<128x1xi1> to vector<128x128xi1>
    %186 = vector.broadcast %cst_80 : f32 to vector<128x128xf32>
    %187 = arith.select %185, %164, %186 : vector<128x128xi1>, vector<128x128xf32>
    %c17 = arith.constant 17 : index
    %c0_81 = arith.constant 0 : index
    %188 = vector.load %arg11[%c17, %c0_81] : memref<146x128xf32, #tpu.memory_space<vmem>>, vector<128x128xf32>
    %c1_i32_82 = arith.constant 1 : i32
    %189 = vector.broadcast %c1_i32_82 : i32 to vector<128x1xi32>
    %190 = arith.addi %19, %189 : vector<128x1xi32>
    %c0_i32_83 = arith.constant 0 : i32
    %191 = vector.broadcast %c0_i32_83 : i32 to vector<128x1xi32>
    %192 = arith.cmpi sge, %190, %191 : vector<128x1xi32>
    %c1_i32_84 = arith.constant 1 : i32
    %193 = vector.broadcast %c1_i32_84 : i32 to vector<128x1xi32>
    %194 = arith.addi %19, %193 : vector<128x1xi32>
    %c8_i32_85 = arith.constant 8 : i32
    %195 = vector.broadcast %c8_i32_85 : i32 to vector<128x1xi32>
    %196 = arith.cmpi slt, %194, %195 : vector<128x1xi32>
    %197 = arith.andi %192, %196 : vector<128x1xi1>
    %c0_i32_86 = arith.constant 0 : i32
    %198 = vector.broadcast %c0_i32_86 : i32 to vector<128x1xi32>
    %199 = arith.addi %15, %198 : vector<128x1xi32>
    %c0_i32_87 = arith.constant 0 : i32
    %200 = vector.broadcast %c0_i32_87 : i32 to vector<128x1xi32>
    %201 = arith.cmpi sge, %199, %200 : vector<128x1xi32>
    %202 = arith.andi %197, %201 : vector<128x1xi1>
    %c0_i32_88 = arith.constant 0 : i32
    %203 = vector.broadcast %c0_i32_88 : i32 to vector<128x1xi32>
    %204 = arith.addi %15, %203 : vector<128x1xi32>
    %c8_i32_89 = arith.constant 8 : i32
    %205 = vector.broadcast %c8_i32_89 : i32 to vector<128x1xi32>
    %206 = arith.cmpi slt, %204, %205 : vector<128x1xi32>
    %207 = arith.andi %202, %206 : vector<128x1xi1>
    %cst_90 = arith.constant 0.000000e+00 : f32
    %208 = vector.shape_cast %207 : vector<128x1xi1> to vector<128x1xi1>
    %209 = vector.broadcast %208 : vector<128x1xi1> to vector<128x128xi1>
    %210 = vector.broadcast %cst_90 : f32 to vector<128x128xf32>
    %211 = arith.select %209, %188, %210 : vector<128x128xi1>, vector<128x128xf32>
    %c18 = arith.constant 18 : index
    %c0_91 = arith.constant 0 : index
    %212 = vector.load %arg11[%c18, %c0_91] : memref<146x128xf32, #tpu.memory_space<vmem>>, vector<128x128xf32>
    %c1_i32_92 = arith.constant 1 : i32
    %213 = vector.broadcast %c1_i32_92 : i32 to vector<128x1xi32>
    %214 = arith.addi %19, %213 : vector<128x1xi32>
    %c0_i32_93 = arith.constant 0 : i32
    %215 = vector.broadcast %c0_i32_93 : i32 to vector<128x1xi32>
    %216 = arith.cmpi sge, %214, %215 : vector<128x1xi32>
    %c1_i32_94 = arith.constant 1 : i32
    %217 = vector.broadcast %c1_i32_94 : i32 to vector<128x1xi32>
    %218 = arith.addi %19, %217 : vector<128x1xi32>
    %c8_i32_95 = arith.constant 8 : i32
    %219 = vector.broadcast %c8_i32_95 : i32 to vector<128x1xi32>
    %220 = arith.cmpi slt, %218, %219 : vector<128x1xi32>
    %221 = arith.andi %216, %220 : vector<128x1xi1>
    %c1_i32_96 = arith.constant 1 : i32
    %222 = vector.broadcast %c1_i32_96 : i32 to vector<128x1xi32>
    %223 = arith.addi %15, %222 : vector<128x1xi32>
    %c0_i32_97 = arith.constant 0 : i32
    %224 = vector.broadcast %c0_i32_97 : i32 to vector<128x1xi32>
    %225 = arith.cmpi sge, %223, %224 : vector<128x1xi32>
    %226 = arith.andi %221, %225 : vector<128x1xi1>
    %c1_i32_98 = arith.constant 1 : i32
    %227 = vector.broadcast %c1_i32_98 : i32 to vector<128x1xi32>
    %228 = arith.addi %15, %227 : vector<128x1xi32>
    %c8_i32_99 = arith.constant 8 : i32
    %229 = vector.broadcast %c8_i32_99 : i32 to vector<128x1xi32>
    %230 = arith.cmpi slt, %228, %229 : vector<128x1xi32>
    %231 = arith.andi %226, %230 : vector<128x1xi1>
    %cst_100 = arith.constant 0.000000e+00 : f32
    %232 = vector.shape_cast %231 : vector<128x1xi1> to vector<128x1xi1>
    %233 = vector.broadcast %232 : vector<128x1xi1> to vector<128x128xi1>
    %234 = vector.broadcast %cst_100 : f32 to vector<128x128xf32>
    %235 = arith.select %233, %212, %234 : vector<128x128xi1>, vector<128x128xf32>
    %236 = tpu.concatenate %43, %67, %91, %115, %139, %163, %187, %211, %235 in 1 : vector<128x128xf32>, vector<128x128xf32>, vector<128x128xf32>, vector<128x128xf32>, vector<128x128xf32>, vector<128x128xf32>, vector<128x128xf32>, vector<128x128xf32>, vector<128x128xf32> -> vector<128x1152xf32>
    %c0_101 = arith.constant 0 : index
    %c0_102 = arith.constant 0 : index
    %c0_103 = arith.constant 0 : index
    %237 = vector.load %arg4[%c0_101, %c0_102, %c0_103] : memref<1x1152x256xf32, #tpu.memory_space<vmem>>, vector<1x1152x256xf32>
    %238 = vector.shape_cast %237 : vector<1x1152x256xf32> to vector<1152x256xf32>
    %cst_104 = arith.constant dense<0.000000e+00> : vector<128x256xf32>
    %239 = tpu.matmul %236, %238, %cst_104 {dimension_numbers = #tpu.dot_dimension_numbers<[1], [0], [0], [1], [0, 0, 1, 1], [], []>} : vector<128x1152xf32>, vector<1152x256xf32>, vector<128x256xf32> -> vector<128x256xf32>
    %c0_105 = arith.constant 0 : index
    %c0_106 = arith.constant 0 : index
    %c0_107 = arith.constant 0 : index
    %240 = vector.load %arg5[%c0_105, %c0_106, %c0_107] : memref<1x1x256xf32, #tpu.memory_space<vmem>>, vector<1x1x256xf32>
    %241 = vector.shape_cast %240 : vector<1x1x256xf32> to vector<1x256xf32>
    %242 = vector.broadcast %241 : vector<1x256xf32> to vector<128x256xf32>
    %243 = arith.addf %239, %242 : vector<128x256xf32>
    %cst_108 = arith.constant 0.000000e+00 : f32
    %244 = vector.broadcast %cst_108 : f32 to vector<128x256xf32>
    %245 = arith.maximumf %243, %244 : vector<128x256xf32>
    %246 = tpu.iota {dimensions = array<i32: 0>} : vector<2x128xi32>
    %247 = tpu.iota {dimensions = array<i32: 1>} : vector<2x128xi32>
    %c6_i32 = arith.constant 6 : i32
    %248 = vector.broadcast %c6_i32 : i32 to vector<2x128xi32>
    %249 = arith.shrsi %247, %248 : vector<2x128xi32>
    %250 = arith.cmpi eq, %249, %246 : vector<2x128xi32>
    %cst_109 = arith.constant 1.562500e-02 : f32
    %cst_110 = arith.constant 0.000000e+00 : f32
    %251 = vector.broadcast %cst_109 : f32 to vector<2x128xf32>
    %252 = vector.broadcast %cst_110 : f32 to vector<2x128xf32>
    %253 = arith.select %250, %251, %252 : vector<2x128xi1>, vector<2x128xf32>
    %cst_111 = arith.constant dense<0.000000e+00> : vector<2x256xf32>
    %254 = tpu.matmul %253, %245, %cst_111 {dimension_numbers = #tpu.dot_dimension_numbers<[1], [0], [0], [1], [0, 0, 1, 1], [], []>} : vector<2x128xf32>, vector<128x256xf32>, vector<2x256xf32> -> vector<2x256xf32>
    %c0_112 = arith.constant 0 : index
    %c0_113 = arith.constant 0 : index
    %c0_114 = arith.constant 0 : index
    %255 = vector.load %arg6[%c0_112, %c0_113, %c0_114] : memref<1x256x128xf32, #tpu.memory_space<vmem>>, vector<1x256x128xf32>
    %256 = vector.shape_cast %255 : vector<1x256x128xf32> to vector<256x128xf32>
    %cst_115 = arith.constant dense<0.000000e+00> : vector<2x128xf32>
    %257 = tpu.matmul %254, %256, %cst_115 {dimension_numbers = #tpu.dot_dimension_numbers<[1], [0], [0], [1], [0, 0, 1, 1], [], []>} : vector<2x256xf32>, vector<256x128xf32>, vector<2x128xf32> -> vector<2x128xf32>
    %c0_116 = arith.constant 0 : index
    %c0_117 = arith.constant 0 : index
    %c0_118 = arith.constant 0 : index
    %258 = vector.load %arg7[%c0_116, %c0_117, %c0_118] : memref<1x1x128xf32, #tpu.memory_space<vmem>>, vector<1x1x128xf32>
    %259 = vector.shape_cast %258 : vector<1x1x128xf32> to vector<1x128xf32>
    %260 = vector.broadcast %259 : vector<1x128xf32> to vector<2x128xf32>
    %261 = arith.addf %257, %260 : vector<2x128xf32>
    %cst_119 = arith.constant 0.000000e+00 : f32
    %262 = vector.broadcast %cst_119 : f32 to vector<2x128xf32>
    %263 = arith.minimumf %261, %262 : vector<2x128xf32>
    %264 = math.exp %263 : vector<2x128xf32>
    %cst_120 = arith.constant 1.000000e+00 : f32
    %265 = vector.broadcast %cst_120 : f32 to vector<2x128xf32>
    %266 = arith.subf %264, %265 : vector<2x128xf32>
    %cst_121 = arith.constant 0.000000e+00 : f32
    %267 = vector.broadcast %cst_121 : f32 to vector<2x128xf32>
    %268 = arith.cmpf ogt, %261, %267 : vector<2x128xf32>
    %269 = arith.select %268, %261, %266 : vector<2x128xi1>, vector<2x128xf32>
    %c0_122 = arith.constant 0 : index
    %c0_123 = arith.constant 0 : index
    %c0_124 = arith.constant 0 : index
    %270 = vector.load %arg8[%c0_122, %c0_123, %c0_124] : memref<1x128x512xf32, #tpu.memory_space<vmem>>, vector<1x128x512xf32>
    %271 = vector.shape_cast %270 : vector<1x128x512xf32> to vector<128x512xf32>
    %cst_125 = arith.constant dense<0.000000e+00> : vector<2x512xf32>
    %272 = tpu.matmul %269, %271, %cst_125 {dimension_numbers = #tpu.dot_dimension_numbers<[1], [0], [0], [1], [0, 0, 1, 1], [], []>} : vector<2x128xf32>, vector<128x512xf32>, vector<2x512xf32> -> vector<2x512xf32>
    %c0_126 = arith.constant 0 : index
    %c0_127 = arith.constant 0 : index
    %c0_128 = arith.constant 0 : index
    %273 = vector.load %arg9[%c0_126, %c0_127, %c0_128] : memref<1x1x512xf32, #tpu.memory_space<vmem>>, vector<1x1x512xf32>
    %274 = vector.shape_cast %273 : vector<1x1x512xf32> to vector<1x512xf32>
    %275 = vector.broadcast %274 : vector<1x512xf32> to vector<2x512xf32>
    %276 = arith.addf %272, %275 : vector<2x512xf32>
    %c0_129 = arith.constant 0 : index
    %c0_130 = arith.constant 0 : index
    %c0_131 = arith.constant 0 : index
    %277 = vector.load %arg10[%c0_129, %c0_130, %c0_131] : memref<1x2x512xf32, #tpu.memory_space<vmem>>, vector<1x2x512xf32>
    %278 = vector.shape_cast %277 : vector<1x2x512xf32> to vector<2x512xf32>
    %279 = vector.shape_cast %276 : vector<2x512xf32> to vector<1x2x512xf32>
    tpu.vector_store %arg10[%c0_129, %c0_130, %c0_131], %279 {strides = array<i32>} : memref<1x2x512xf32, #tpu.memory_space<vmem>>, vector<1x2x512xf32>,
    return
  }
  func.func @transform_0(%arg0: i32) -> (i32, i32) {
    %c0_i32 = arith.constant 0 : i32
    %c0_i32_0 = arith.constant 0 : i32
    %c0_i32_1 = arith.constant 0 : i32
    return %c0_i32, %c0_i32_0 : i32, i32
  }
  func.func @transform_1(%arg0: i32) -> (i32, i32, i32) {
    %c0_i32 = arith.constant 0 : i32
    %c0_i32_0 = arith.constant 0 : i32
    %c0_i32_1 = arith.constant 0 : i32
    return %arg0, %c0_i32, %c0_i32_0 : i32, i32, i32
  }
  func.func @transform_2(%arg0: i32) -> (i32, i32, i32) {
    %c0_i32 = arith.constant 0 : i32
    %c0_i32_0 = arith.constant 0 : i32
    %c0_i32_1 = arith.constant 0 : i32
    return %arg0, %c0_i32, %c0_i32_0 : i32, i32, i32
  }
  func.func @transform_3(%arg0: i32) -> (i32, i32, i32) {
    %c0_i32 = arith.constant 0 : i32
    %c0_i32_0 = arith.constant 0 : i32
    %c0_i32_1 = arith.constant 0 : i32
    return %arg0, %c0_i32, %c0_i32_0 : i32, i32, i32
  }
  func.func @transform_4(%arg0: i32) -> (i32, i32, i32) {
    %c0_i32 = arith.constant 0 : i32
    %c0_i32_0 = arith.constant 0 : i32
    %c0_i32_1 = arith.constant 0 : i32
    return %arg0, %c0_i32, %c0_i32_0 : i32, i32, i32
  }
  func.func @transform_5(%arg0: i32) -> (i32, i32, i32) {
    %c0_i32 = arith.constant 0 : i32
    %c0_i32_0 = arith.constant 0 : i32
    %c0_i32_1 = arith.constant 0 : i32
    return %arg0, %c0_i32, %c0_i32_0 : i32, i32, i32
  }
  func.func @transform_6(%arg0: i32) -> (i32, i32, i32) {
    %c0_i32 = arith.constant 0 : i32
    %c0_i32_0 = arith.constant 0 : i32
    %c0_i32_1 = arith.constant 0 : i32
    return %arg0, %c0_i32, %c0_i32_0 : i32, i32, i32
  }
  func.func @transform_7(%arg0: i32) -> (i32, i32, i32) {
    %c0_i32 = arith.constant 0 : i32
    %c0_i32_0 = arith.constant 0 : i32
    %c0_i32_1 = arith.constant 0 : i32
    return %arg0, %c0_i32, %c0_i32_0 : i32, i32, i32
  }
  func.func @transform_8(%arg0: i32) -> (i32, i32, i32) {
    %c0_i32 = arith.constant 0 : i32
    %c0_i32_0 = arith.constant 0 : i32
    %c0_i32_1 = arith.constant 0 : i32
    return %arg0, %c0_i32, %c0_i32_0 : i32, i32, i32
  }
  func.func @transform_9(%arg0: i32) -> (i32, i32, i32) {
    %c0_i32 = arith.constant 0 : i32
    %c0_i32_0 = arith.constant 0 : i32
    %c0_i32_1 = arith.constant 0 : i32
    return %arg0, %c0_i32, %c0_i32_0 : i32, i32, i32
  }
}

</mosaic_0001>

<llo_original>
// kernel: hifd2_forward.3
$region0: #{hifd2_forward.3}
  #allocation0 [shape = 'u32[]', space=smem, size = 0x4, offset = 0x4, fixed_abs, tag = 'smem constant byte address 0x4 - core index']
  #allocation1 [shape = 'u32[72,128]{1,0:T(1,128)}', space=vmem, size = 0x9000, scoped, tag = 'internal scratch']
  #allocation2 [shape = 'f32[6,512]{1,0:T(8,128)}', space=vmem, size = 0x4000, scoped, tag = 'scratch operand']
  %s0 = inlined_call_operand.vmem [shape: f32[3,2,512], index: 0, kind: input, shape index: {}]
  %s1 = inlined_call_operand.hbm [shape: f32[512,128], index: 1, kind: input, shape index: {}]
  %s2 = inlined_call_operand.hbm [shape: f32[1,128], index: 2, kind: input, shape index: {}]
  %s3 = inlined_call_operand.vmem [shape: f32[6,128], index: 3, kind: output, shape index: {}]
  %s4 = sld [smem:[#allocation0]]
  $region30: #{hifd2_forward.3} parent=0
    _
  %s6 = ssub.s32 1, %s4
  %s7 = scalar_select 0, %s6, %s4
  $region1: #{hifd2_forward.3} parent=0
    #allocation3 [shape = 'u8[262144]{0}', space=vmem, size = 0x40000, scoped, tag = 'input window, operand 1, single buffered']
    #allocation4 [shape = 's32[1]{0}', space=sflag, size = 0x4, scoped, tag = 'scoped memory for hifd2_forward.3']
    #allocation5 [shape = 'u8[512]{0}', space=vmem, size = 0x400, scoped, tag = 'input window, operand 2, single buffered']
    #allocation6 [shape = 's32[1]{0}', space=sflag, size = 0x4, scoped, tag = 'scoped memory for hifd2_forward.3']
    %8 = vsyncpa [#allocation4], 0
    %9 = vsyncpa [#allocation6], 0
    // Predicated region
    $region2: #{hifd2_forward.3} parent=1 // pred_check
      _
    $region3: #{hifd2_forward.3} parent=1 // pred_check_branch
      %11 = sbr.rel (0) target = $region5
    $region4: #{hifd2_forward.3} parent=1 // pred_region
      _
    $region5: #{hifd2_forward.3} parent=1 // pred_fallthru
      _
    // Predicated region
    $region6: #{hifd2_forward.3} parent=1 // pred_check
      _
    $region7: #{hifd2_forward.3} parent=1 // pred_check_branch
      %13 = sbr.rel (0) target = $region9
    $region8: #{hifd2_forward.3} parent=1 // pred_region
      %15 = vsyncadd [#allocation4], 0
      %s16 = sshll.u32 %s1, 4
      %s17 = int_to_ptr.hbm [resolvable:$true] %s16
      %s18 = sshll.u32 [#allocation3], 4
      %s19 = int_to_ptr.vmem [resolvable:$true] %s18
      %24 = dma.hbm_to_vmem [thread:$0]  %s17, 8192, %s19, [#allocation4], 128, 128, 8
    $region9: #{hifd2_forward.3} parent=1 // pred_fallthru
      _
    // Predicated region
    $region10: #{hifd2_forward.3} parent=1 // pred_check
      _
    $region11: #{hifd2_forward.3} parent=1 // pred_check_branch
      %26 = sbr.rel (0) target = $region13
    $region12: #{hifd2_forward.3} parent=1 // pred_region
      %28 = vsyncadd [#allocation6], 0
      %s30 = sshll.u32 %s2, 4
      %s31 = int_to_ptr.hbm [resolvable:$true] %s30
      %s32 = sshll.u32 [#allocation5], 4
      %s33 = int_to_ptr.vmem [resolvable:$true] %s32
      %35 = dma.hbm_to_vmem [thread:$0]  %s31, 16, %s33, [#allocation6]
    $region13: #{hifd2_forward.3} parent=1 // pred_fallthru
      _
    // Predicated region
    $region14: #{hifd2_forward.3} parent=1 // pred_check
      _
    $region15: #{hifd2_forward.3} parent=1 // pred_check_branch
      %37 = sbr.rel (0) target = $region17
    $region16: #{hifd2_forward.3} parent=1 // pred_region
      %39 = dma.done [#allocation4], 8192
    $region17: #{hifd2_forward.3} parent=1 // pred_fallthru
      _
    // Predicated region
    $region18: #{hifd2_forward.3} parent=1 // pred_check
      _
    $region19: #{hifd2_forward.3} parent=1 // pred_check_branch
      %41 = sbr.rel (0) target = $region21
    $region20: #{hifd2_forward.3} parent=1 // pred_region
      %43 = dma.done [#allocation6], 16
    $region21: #{hifd2_forward.3} parent=1 // pred_fallthru
      _
    %v44 = vld [vmem:[%s0] sm:$0xff]
    %s45 = scalar_lea.vmem %s0, 8
    %v46 = vld [vmem:[%s45] sm:$0xff]
    %s47 = scalar_lea.vmem %s0, 16
    %v48 = vld [vmem:[%s47] sm:$0xff]
    %v49 = vmax.f32 %v44, 0.0
    %51 = vst [vmem:[#allocation1] ss:$4 sm:$0xff] %v49
    %v52 = vld.sshfl [vmem:[#allocation1] sm:$0xff pattern:$0x73625140]
    %v53 = vld.sshfl [vmem:[#allocation1 + $0x8] sm:$0xff pattern:$0x73625140]
    %v54 = vld.sshfl [vmem:[#allocation1 + $0x10] sm:$0xff pattern:$0x73625140]
    %v55 = vld.sshfl [vmem:[#allocation1 + $0x18] sm:$0xff pattern:$0x73625140]
    %60 = vst [vmem:[#allocation2] sm:$0x3] %v52
    %61 = vst [vmem:[#allocation2 + $0x8] sm:$0x3] %v53
    %62 = vst [vmem:[#allocation2 + $0x10] sm:$0x3] %v54
    %63 = vst [vmem:[#allocation2 + $0x18] sm:$0x3] %v55
    %v64 = vadd.f32 %v46, %v44
    %v65 = vmax.f32 %v64, 0.0
    %s67 = scalar_lea.vmem [#allocation1], 1
    %68 = vst [vmem:[%s67] ss:$4 sm:$0xff] %v65
    %v69 = vld.sshfl [vmem:[#allocation1] sm:$0xff pattern:$0x73625140]
    %v70 = vld.sshfl [vmem:[#allocation1 + $0x8] sm:$0xff pattern:$0x73625140]
    %v71 = vld.sshfl [vmem:[#allocation1 + $0x10] sm:$0xff pattern:$0x73625140]
    %v72 = vld.sshfl [vmem:[#allocation1 + $0x18] sm:$0xff pattern:$0x73625140]
    %77 = vst [vmem:[#allocation2] sm:$0xc] %v69
    %78 = vst [vmem:[#allocation2 + $0x8] sm:$0xc] %v70
    %79 = vst [vmem:[#allocation2 + $0x10] sm:$0xc] %v71
    %80 = vst [vmem:[#allocation2 + $0x18] sm:$0xc] %v72
    %v81 = vadd.f32 %v48, %v46
    %v82 = vadd.f32 %v81, %v44
    %v83 = vmax.f32 %v82, 0.0
    %s85 = scalar_lea.vmem [#allocation1], 2
    %86 = vst [vmem:[%s85] ss:$4 sm:$0xff] %v83
    %v87 = vld.sshfl [vmem:[#allocation1] sm:$0xff pattern:$0x73625140]
    %v88 = vld.sshfl [vmem:[#allocation1 + $0x8] sm:$0xff pattern:$0x73625140]
    %v89 = vld.sshfl [vmem:[#allocation1 + $0x10] sm:$0xff pattern:$0x73625140]
    %v90 = vld.sshfl [vmem:[#allocation1 + $0x18] sm:$0xff pattern:$0x73625140]
    %95 = vst [vmem:[#allocation2] sm:$0x30] %v87
    %96 = vst [vmem:[#allocation2 + $0x8] sm:$0x30] %v88
    %97 = vst [vmem:[#allocation2 + $0x10] sm:$0x30] %v89
    %98 = vst [vmem:[#allocation2 + $0x18] sm:$0x30] %v90
    %v99 = vld [vmem:[#allocation2] sm:$0x3f]
    %v100 = vld [vmem:[#allocation2 + $0x8] sm:$0x3f]
    %v101 = vld [vmem:[#allocation2 + $0x10] sm:$0x3f]
    %v102 = vld [vmem:[#allocation2 + $0x18] sm:$0x3f]
    %v103 = vld [vmem:[#allocation3] sm:$0xff]
    %v104 = vld [vmem:[#allocation3 + $0x8] sm:$0xff]
    %v105 = vld [vmem:[#allocation3 + $0x10] sm:$0xff]
    %v106 = vld [vmem:[#allocation3 + $0x18] sm:$0xff]
    %v107 = vld [vmem:[#allocation3 + $0x20] sm:$0xff]
    %v108 = vld [vmem:[#allocation3 + $0x28] sm:$0xff]
    %v109 = vld [vmem:[#allocation3 + $0x30] sm:$0xff]
    %v110 = vld [vmem:[#allocation3 + $0x38] sm:$0xff]
    %v111 = vld [vmem:[#allocation3 + $0x40] sm:$0xff]
    %v112 = vld [vmem:[#allocation3 + $0x48] sm:$0xff]
    %v113 = vld [vmem:[#allocation3 + $0x50] sm:$0xff]
    %v114 = vld [vmem:[#allocation3 + $0x58] sm:$0xff]
    %v115 = vld [vmem:[#allocation3 + $0x60] sm:$0xff]
    %v116 = vld [vmem:[#allocation3 + $0x68] sm:$0xff]
    %v117 = vld [vmem:[#allocation3 + $0x70] sm:$0xff]
    %v118 = vld [vmem:[#allocation3 + $0x78] sm:$0xff]
    %v119 = vld [vmem:[#allocation3 + $0x80] sm:$0xff]
    %v120 = vld [vmem:[#allocation3 + $0x88] sm:$0xff]
    %v121 = vld [vmem:[#allocation3 + $0x90] sm:$0xff]
    %v122 = vld [vmem:[#allocation3 + $0x98] sm:$0xff]
    %v123 = vld [vmem:[#allocation3 + $0xa0] sm:$0xff]
    %v124 = vld [vmem:[#allocation3 + $0xa8] sm:$0xff]
    %v125 = vld [vmem:[#allocation3 + $0xb0] sm:$0xff]
    %v126 = vld [vmem:[#allocation3 + $0xb8] sm:$0xff]
    %v127 = vld [vmem:[#allocation3 + $0xc0] sm:$0xff]
    %v128 = vld [vmem:[#allocation3 + $0xc8] sm:$0xff]
    %v129 = vld [vmem:[#allocation3 + $0xd0] sm:$0xff]
    %v130 = vld [vmem:[#allocation3 + $0xd8] sm:$0xff]
    %v131 = vld [vmem:[#allocation3 + $0xe0] sm:$0xff]
    %v132 = vld [vmem:[#allocation3 + $0xe8] sm:$0xff]
    %v133 = vld [vmem:[#allocation3 + $0xf0] sm:$0xff]
    %v134 = vld [vmem:[#allocation3 + $0xf8] sm:$0xff]
    %v135 = vld [vmem:[#allocation3 + $0x100] sm:$0xff]
    %v136 = vld [vmem:[#allocation3 + $0x108] sm:$0xff]
    %v137 = vld [vmem:[#allocation3 + $0x110] sm:$0xff]
    %v138 = vld [vmem:[#allocation3 + $0x118] sm:$0xff]
    %v139 = vld [vmem:[#allocation3 + $0x120] sm:$0xff]
    %v140 = vld [vmem:[#allocation3 + $0x128] sm:$0xff]
    %v141 = vld [vmem:[#allocation3 + $0x130] sm:$0xff]
    %v142 = vld [vmem:[#allocation3 + $0x138] sm:$0xff]
    %v143 = vld [vmem:[#allocation3 + $0x140] sm:$0xff]
    %v144 = vld [vmem:[#allocation3 + $0x148] sm:$0xff]
    %v145 = vld [vmem:[#allocation3 + $0x150] sm:$0xff]
    %v146 = vld [vmem:[#allocation3 + $0x158] sm:$0xff]
    %v147 = vld [vmem:[#allocation3 + $0x160] sm:$0xff]
    %v148 = vld [vmem:[#allocation3 + $0x168] sm:$0xff]
    %v149 = vld [vmem:[#allocation3 + $0x170] sm:$0xff]
    %v150 = vld [vmem:[#allocation3 + $0x178] sm:$0xff]
    %v151 = vld [vmem:[#allocation3 + $0x180] sm:$0xff]
    %v152 = vld [vmem:[#allocation3 + $0x188] sm:$0xff]
    %v153 = vld [vmem:[#allocation3 + $0x190] sm:$0xff]
    %v154 = vld [vmem:[#allocation3 + $0x198] sm:$0xff]
    %v155 = vld [vmem:[#allocation3 + $0x1a0] sm:$0xff]
    %v156 = vld [vmem:[#allocation3 + $0x1a8] sm:$0xff]
    %v157 = vld [vmem:[#allocation3 + $0x1b0] sm:$0xff]
    %v158 = vld [vmem:[#allocation3 + $0x1b8] sm:$0xff]
    %v159 = vld [vmem:[#allocation3 + $0x1c0] sm:$0xff]
    %v160 = vld [vmem:[#allocation3 + $0x1c8] sm:$0xff]
    %v161 = vld [vmem:[#allocation3 + $0x1d0] sm:$0xff]
    %v162 = vld [vmem:[#allocation3 + $0x1d8] sm:$0xff]
    %v163 = vld [vmem:[#allocation3 + $0x1e0] sm:$0xff]
    %v164 = vld [vmem:[#allocation3 + $0x1e8] sm:$0xff]
    %v165 = vld [vmem:[#allocation3 + $0x1f0] sm:$0xff]
    %v166 = vld [vmem:[#allocation3 + $0x1f8] sm:$0xff]
    %v167 = vld [vmem:[#allocation5] sm:$0x1]
    %v169 = vperm.slane %v167, 0
    %171 = vmatpush.msra.mxu0 %v118
    %172 = vmatpush.msra.mxu0 %v117
    %173 = vmatpush.msra.mxu0 %v116
    %174 = vmatpush.msra.mxu0 %v115
    %175 = vmatpush.msra.mxu0 %v114
    %176 = vmatpush.msra.mxu0 %v113
    %177 = vmatpush.msra.mxu0 %v112
    %178 = vmatpush.msra.mxu0 %v111
    %179 = vmatpush.msra.mxu0 %v110
    %180 = vmatpush.msra.mxu0 %v109
    %181 = vmatpush.msra.mxu0 %v108
    %182 = vmatpush.msra.mxu0 %v107
    %183 = vmatpush.msra.mxu0 %v106
    %184 = vmatpush.msra.mxu0 %v105
    %185 = vmatpush.msra.mxu0 %v104
    %186 = vmatpush.msra.mxu0 %v103
    %187 = vmatmul.f32.gmra.mxu0 %v99
    %v188 = vpop.f32.mrf.mxu0
    %v189 = vadd.f32 %v169, %v188
    %190 = vdwg.mxu0
    %191 = vmatpush.msra.mxu0 %v134
    %192 = vmatpush.msra.mxu0 %v133
    %193 = vmatpush.msra.mxu0 %v132
    %194 = vmatpush.msra.mxu0 %v131
    %195 = vmatpush.msra.mxu0 %v130
    %196 = vmatpush.msra.mxu0 %v129
    %197 = vmatpush.msra.mxu0 %v128
    %198 = vmatpush.msra.mxu0 %v127
    %199 = vmatpush.msra.mxu0 %v126
    %200 = vmatpush.msra.mxu0 %v125
    %201 = vmatpush.msra.mxu0 %v124
    %202 = vmatpush.msra.mxu0 %v123
    %203 = vmatpush.msra.mxu0 %v122
    %204 = vmatpush.msra.mxu0 %v121
    %205 = vmatpush.msra.mxu0 %v120
    %206 = vmatpush.msra.mxu0 %v119
    %207 = vmatmul.f32.gmra.mxu0 %v100
    %v208 = vpop.f32.mrf.mxu0
    %v209 = vadd.f32 %v189, %v208
    %210 = vdwg.mxu0
    %211 = vmatpush.msra.mxu0 %v150
    %212 = vmatpush.msra.mxu0 %v149
    %213 = vmatpush.msra.mxu0 %v148
    %214 = vmatpush.msra.mxu0 %v147
    %215 = vmatpush.msra.mxu0 %v146
    %216 = vmatpush.msra.mxu0 %v145
    %217 = vmatpush.msra.mxu0 %v144
    %218 = vmatpush.msra.mxu0 %v143
    %219 = vmatpush.msra.mxu0 %v142
    %220 = vmatpush.msra.mxu0 %v141
    %221 = vmatpush.msra.mxu0 %v140
    %222 = vmatpush.msra.mxu0 %v139
    %223 = vmatpush.msra.mxu0 %v138
    %224 = vmatpush.msra.mxu0 %v137
    %225 = vmatpush.msra.mxu0 %v136
    %226 = vmatpush.msra.mxu0 %v135
    %227 = vmatmul.f32.gmra.mxu0 %v101
    %v228 = vpop.f32.mrf.mxu0
    %v229 = vadd.f32 %v209, %v228
    %230 = vdwg.mxu0
    %231 = vmatpush.msra.mxu0 %v166
    %232 = vmatpush.msra.mxu0 %v165
    %233 = vmatpush.msra.mxu0 %v164
    %234 = vmatpush.msra.mxu0 %v163
    %235 = vmatpush.msra.mxu0 %v162
    %236 = vmatpush.msra.mxu0 %v161
    %237 = vmatpush.msra.mxu0 %v160
    %238 = vmatpush.msra.mxu0 %v159
    %239 = vmatpush.msra.mxu0 %v158
    %240 = vmatpush.msra.mxu0 %v157
    %241 = vmatpush.msra.mxu0 %v156
    %242 = vmatpush.msra.mxu0 %v155
    %243 = vmatpush.msra.mxu0 %v154
    %244 = vmatpush.msra.mxu0 %v153
    %245 = vmatpush.msra.mxu0 %v152
    %246 = vmatpush.msra.mxu0 %v151
    %247 = vmatmul.f32.gmra.mxu0 %v102
    %v248 = vpop.f32.mrf.mxu0
    %v249 = vadd.f32 %v229, %v248
    %250 = vdwg.mxu0
    %v251 = vlaneseq
    %v252 = vand.u32 %v251, 127
    %v253 = vsub.f32 0.0, %v249
    %v254 = vmul.f32 %v253, 1.442695
    %v255 = vpow.pop %v254
    %v256 = vadd.f32 %v255, 1.0
    %v257 = vrcp.pop %v256
    %v258 = vmul.f32 %v256, %v257
    %v259 = vsub.f32 1.0, %v258
    %v260 = vmul.f32 %v257, %v259
    %v261 = vadd.f32 %v257, %v260
    %vm262 = vweird.f32 %v256
    %vm263 = vweird.f32 %v257
    %vm264 = vmor %vm262, %vm263
    %v265 = vsel %vm264, %v257, %v261
    %v266 = vand.u32 2147483647, %v256
    %vm267 = vcmp.eq.f32.partialorder %v266, 8.507059e+37
    %v268 = vand.u32 %v256, 2147483648
    %v269 = vor.u32 1.1754944e-38, %v268
    %v270 = vsel %vm267, %v269, %v265
    %v271 = vmul.f32 1.0, %v270
    %vm272 = vcmp.lt.s32.totalorder %v252, 48
    %v273 = vsel %vm272, %v271, %v249
    %274 = vst [vmem:[%s3] sm:$0x3f] %v273
    // Predicated region
    $region22: #{hifd2_forward.3} parent=1 // pred_check
      _
    $region23: #{hifd2_forward.3} parent=1 // pred_check_branch
      %276 = sbr.rel (0) target = $region25
    $region24: #{hifd2_forward.3} parent=1 // pred_region
      _
    $region25: #{hifd2_forward.3} parent=1 // pred_fallthru
      _
    // Predicated region
    $region26: #{hifd2_forward.3} parent=1 // pred_check
      _
    $region27: #{hifd2_forward.3} parent=1 // pred_check_branch
      %278 = sbr.rel (0) target = $region29
    $region28: #{hifd2_forward.3} parent=1 // pred_region
      _
    $region29: #{hifd2_forward.3} parent=1 // pred_fallthru
      _
    %279 = vsyncpa [#allocation4], 1
    %280 = vsyncpa [#allocation6], 1

// kernel: hifd2_forward.2
$region0: #{hifd2_forward.2}
  #allocation0 [shape = 'u32[]', space=smem, size = 0x4, offset = 0x4, fixed_abs, tag = 'smem constant byte address 0x4 - core index']
  #allocation1 [shape = 'u32[72,128]{1,0:T(1,128)}', space=vmem, size = 0x9000, scoped, tag = 'internal scratch']
  #allocation2 [shape = 'f32[146,128]{1,0:T(8,128)}', space=vmem, size = 0x13000, scoped, tag = 'scratch operand']
  %s0 = inlined_call_operand.hbm [shape: f32[128,256], index: 0, kind: input, shape index: {}]
  %s1 = inlined_call_operand.hbm [shape: f32[3,256,128], index: 1, kind: input, shape index: {}]
  %s2 = inlined_call_operand.hbm [shape: f32[3,1,128], index: 2, kind: input, shape index: {}]
  %s3 = inlined_call_operand.hbm [shape: f32[3,1152,256], index: 3, kind: input, shape index: {}]
  %s4 = inlined_call_operand.hbm [shape: f32[3,1,256], index: 4, kind: input, shape index: {}]
  %s5 = inlined_call_operand.hbm [shape: f32[3,256,128], index: 5, kind: input, shape index: {}]
  %s6 = inlined_call_operand.hbm [shape: f32[3,1,128], index: 6, kind: input, shape index: {}]
  %s7 = inlined_call_operand.hbm [shape: f32[3,128,512], index: 7, kind: input, shape index: {}]
  %s8 = inlined_call_operand.hbm [shape: f32[3,1,512], index: 8, kind: input, shape index: {}]
  %s9 = inlined_call_operand.vmem [shape: f32[3,2,512], index: 9, kind: output, shape index: {}]
  %s10 = sld [smem:[#allocation0]]
  $region105: #{hifd2_forward.2} parent=0
    _
  %s12 = ssub.s32 1, %s10
  %s13 = scalar_select 0, %s12, %s10
  $region1: #{hifd2_forward.2} parent=0
    #allocation3 [shape = 'u8[131072]{0}', space=vmem, size = 0x20000, scoped, tag = 'input window, operand 0, single buffered']
    #allocation4 [shape = 's32[2]{0}', space=sflag, size = 0x8, scoped, tag = 'scoped memory for hifd2_forward.2']
    #allocation5 [shape = 'u8[262144]{0}', space=vmem, size = 0x40000, scoped, tag = 'input window, operand 1']
    #allocation6 [shape = 's32[2]{0}', space=sflag, size = 0x8, scoped, tag = 'scoped memory for hifd2_forward.2']
    #allocation7 [shape = 'u8[1024]{0}', space=vmem, size = 0x400, scoped, tag = 'input window, operand 2']
    #allocation8 [shape = 'u8[2359296]{0}', space=vmem, size = 0x240000, scoped, tag = 'input window, operand 3']
    #allocation9 [shape = 's32[2]{0}', space=sflag, size = 0x8, scoped, tag = 'scoped memory for hifd2_forward.2']
    #allocation10 [shape = 'u8[2048]{0}', space=vmem, size = 0x800, scoped, tag = 'input window, operand 4']
    #allocation11 [shape = 'u8[262144]{0}', space=vmem, size = 0x40000, scoped, tag = 'input window, operand 5']
    #allocation12 [shape = 's32[2]{0}', space=sflag, size = 0x8, scoped, tag = 'scoped memory for hifd2_forward.2']
    #allocation13 [shape = 'u8[1024]{0}', space=vmem, size = 0x400, scoped, tag = 'input window, operand 6']
    #allocation14 [shape = 'u8[524288]{0}', space=vmem, size = 0x80000, scoped, tag = 'input window, operand 7']
    #allocation15 [shape = 's32[2]{0}', space=sflag, size = 0x8, scoped, tag = 'scoped memory for hifd2_forward.2']
    #allocation16 [shape = 'u8[4096]{0}', space=vmem, size = 0x1000, scoped, tag = 'input window, operand 8']
    %14 = vsyncpa [#allocation4], 0
    %15 = vsyncpa [#allocation6], 0
    %s16 = scalar_lea.sflag [#allocation6], 1
    %17 = vsyncpa %s16, 0
    %18 = vsyncpa [#allocation9], 0
    %s19 = scalar_lea.sflag [#allocation9], 1
    %20 = vsyncpa %s19, 0
    %21 = vsyncpa [#allocation12], 0
    %s22 = scalar_lea.sflag [#allocation12], 1
    %23 = vsyncpa %s22, 0
    %24 = vsyncpa [#allocation15], 0
    %s25 = scalar_lea.sflag [#allocation15], 1
    %26 = vsyncpa %s25, 0
    loop: start=0, step=1, limit=5
    $region2: #{hifd2_forward.2} parent=1 // loop_pre_header
      _
    $region3: #{hifd2_forward.2} parent=1 // loop_header
      %s28 = sphi 0, %s32
      %p29 = scmp.ge.s32.totalorder %s28, 5
      %s36 = sphi 0, %s36
      %s38 = sphi 0, %s36
      %s39 = sphi 0, %s38
      %s53 = sphi 0, %s39
      %s59 = sphi 0, %s61
      %s62 = sphi 0, %s59
      %s63 = sphi 0, %s62
      %s79 = sphi 0, %s63
      %s85 = sphi 0, %s87
      %s88 = sphi 0, %s85
      %s89 = sphi 0, %s88
      %s105 = sphi 0, %s89
      %s111 = sphi 0, %s113
      %s114 = sphi 0, %s111
      %s115 = sphi 0, %s114
      %s131 = sphi 0, %s115
      %s137 = sphi 0, %s139
      %s140 = sphi 0, %s137
      %s141 = sphi 0, %s140
      %s157 = sphi 0, %s141
      %s163 = sphi 0, %s165
      %s166 = sphi 0, %s163
      %s167 = sphi 0, %s166
      %s183 = sphi 0, %s167
      %s189 = sphi 0, %s191
      %s192 = sphi 0, %s189
      %s193 = sphi 0, %s192
      %s209 = sphi 0, %s193
      %s215 = sphi 0, %s217
      %s218 = sphi 0, %s215
      %s219 = sphi 0, %s218
      %s235 = sphi 0, %s219
      %s241 = sphi 0, %s243
      %s244 = sphi 0, %s241
      %s245 = sphi 0, %s244
      %s261 = sphi 0, %s245
      %s267 = sphi 0, %s269
      %s270 = sphi 0, %s267
      %s271 = sphi 0, %s270
      %s287 = sphi 0, %s271
    $region4: #{hifd2_forward.2} parent=1 // loop_header_branch
      %31 = sbr.rel (%p29) target = $region8
    $region5: #{hifd2_forward.2} parent=1 // loop_body
      %s33 = ssub.s32 %s28, 1
      %s34 = ssub.s32 %s28, 2
      %s35 = sadd.s32 %s28, 1
      %s37 = sadd.s32 %s36, 1
      %p40 = scmp.eq.s32.totalorder %s28, 2
      %p41 = scmp.ne.s32.totalorder %s36, %s38
      %p42 = scmp.eq.s32.totalorder %s28, 0
      %p43 = por %p41, %p42
      %p44 = scmp.ne.s32.totalorder %s36, %s38
      %p45 = scmp.eq.s32.totalorder %s33, 2
      %p46 = por %p44, %p45
      %p47 = scmp.ne.s32.totalorder %s38, %s39
      %p48 = scmp.eq.s32.totalorder %s33, 0
      %p49 = por %p47, %p48
      %p50 = scmp.ne.s32.totalorder %s38, %s39
      %p51 = scmp.eq.s32.totalorder %s34, 2
      %p52 = por %p50, %p51
      %p54 = scmp.ne.s32.totalorder %s39, %s53
      %p55 = scmp.eq.s32.totalorder %s34, 0
      %p56 = por %p54, %p55
      %s57 = ssub.s32 %s28, %s35
      %p58 = scmp.eq.s32.totalorder %s57, 0
      %s60 = sadd.s32 %s59, 1
      %s61 = scalar_select %p58, %s59, %s60
      %p64 = pneg %p58
      %p65 = scmp.eq.s32.totalorder %s28, 2
      %p66 = por %p64, %p65
      %p67 = scmp.ne.s32.totalorder %s59, %s62
      %p68 = scmp.eq.s32.totalorder %s28, 0
      %p69 = por %p67, %p68
      %p70 = scmp.ne.s32.totalorder %s59, %s62
      %p71 = scmp.eq.s32.totalorder %s33, 2
      %p72 = por %p70, %p71
      %p73 = scmp.ne.s32.totalorder %s62, %s63
      %p74 = scmp.eq.s32.totalorder %s33, 0
      %p75 = por %p73, %p74
      %p76 = scmp.ne.s32.totalorder %s62, %s63
      %p77 = scmp.eq.s32.totalorder %s34, 2
      %p78 = por %p76, %p77
      %p80 = scmp.ne.s32.totalorder %s63, %s79
      %p81 = scmp.eq.s32.totalorder %s34, 0
      %p82 = por %p80, %p81
      %s83 = ssub.s32 %s28, %s35
      %p84 = scmp.eq.s32.totalorder %s83, 0
      %s86 = sadd.s32 %s85, 1
      %s87 = scalar_select %p84, %s85, %s86
      %p90 = pneg %p84
      %p91 = scmp.eq.s32.totalorder %s28, 2
      %p92 = por %p90, %p91
      %p93 = scmp.ne.s32.totalorder %s85, %s88
      %p94 = scmp.eq.s32.totalorder %s28, 0
      %p95 = por %p93, %p94
      %p96 = scmp.ne.s32.totalorder %s85, %s88
      %p97 = scmp.eq.s32.totalorder %s33, 2
      %p98 = por %p96, %p97
      %p99 = scmp.ne.s32.totalorder %s88, %s89
      %p100 = scmp.eq.s32.totalorder %s33, 0
      %p101 = por %p99, %p100
      %p102 = scmp.ne.s32.totalorder %s88, %s89
      %p103 = scmp.eq.s32.totalorder %s34, 2
      %p104 = por %p102, %p103
      %p106 = scmp.ne.s32.totalorder %s89, %s105
      %p107 = scmp.eq.s32.totalorder %s34, 0
      %p108 = por %p106, %p107
      %s109 = ssub.s32 %s28, %s35
      %p110 = scmp.eq.s32.totalorder %s109, 0
      %s112 = sadd.s32 %s111, 1
      %s113 = scalar_select %p110, %s111, %s112
      %p116 = pneg %p110
      %p117 = scmp.eq.s32.totalorder %s28, 2
      %p118 = por %p116, %p117
      %p119 = scmp.ne.s32.totalorder %s111, %s114
      %p120 = scmp.eq.s32.totalorder %s28, 0
      %p121 = por %p119, %p120
      %p122 = scmp.ne.s32.totalorder %s111, %s114
      %p123 = scmp.eq.s32.totalorder %s33, 2
      %p124 = por %p122, %p123
      %p125 = scmp.ne.s32.totalorder %s114, %s115
      %p126 = scmp.eq.s32.totalorder %s33, 0
      %p127 = por %p125, %p126
      %p128 = scmp.ne.s32.totalorder %s114, %s115
      %p129 = scmp.eq.s32.totalorder %s34, 2
      %p130 = por %p128, %p129
      %p132 = scmp.ne.s32.totalorder %s115, %s131
      %p133 = scmp.eq.s32.totalorder %s34, 0
      %p134 = por %p132, %p133
      %s135 = ssub.s32 %s28, %s35
      %p136 = scmp.eq.s32.totalorder %s135, 0
      %s138 = sadd.s32 %s137, 1
      %s139 = scalar_select %p136, %s137, %s138
      %p142 = pneg %p136
      %p143 = scmp.eq.s32.totalorder %s28, 2
      %p144 = por %p142, %p143
      %p145 = scmp.ne.s32.totalorder %s137, %s140
      %p146 = scmp.eq.s32.totalorder %s28, 0
      %p147 = por %p145, %p146
      %p148 = scmp.ne.s32.totalorder %s137, %s140
      %p149 = scmp.eq.s32.totalorder %s33, 2
      %p150 = por %p148, %p149
      %p151 = scmp.ne.s32.totalorder %s140, %s141
      %p152 = scmp.eq.s32.totalorder %s33, 0
      %p153 = por %p151, %p152
      %p154 = scmp.ne.s32.totalorder %s140, %s141
      %p155 = scmp.eq.s32.totalorder %s34, 2
      %p156 = por %p154, %p155
      %p158 = scmp.ne.s32.totalorder %s141, %s157
      %p159 = scmp.eq.s32.totalorder %s34, 0
      %p160 = por %p158, %p159
      %s161 = ssub.s32 %s28, %s35
      %p162 = scmp.eq.s32.totalorder %s161, 0
      %s164 = sadd.s32 %s163, 1
      %s165 = scalar_select %p162, %s163, %s164
      %p168 = pneg %p162
      %p169 = scmp.eq.s32.totalorder %s28, 2
      %p170 = por %p168, %p169
      %p171 = scmp.ne.s32.totalorder %s163, %s166
      %p172 = scmp.eq.s32.totalorder %s28, 0
      %p173 = por %p171, %p172
      %p174 = scmp.ne.s32.totalorder %s163, %s166
      %p175 = scmp.eq.s32.totalorder %s33, 2
      %p176 = por %p174, %p175
      %p177 = scmp.ne.s32.totalorder %s166, %s167
      %p178 = scmp.eq.s32.totalorder %s33, 0
      %p179 = por %p177, %p178
      %p180 = scmp.ne.s32.totalorder %s166, %s167
      %p181 = scmp.eq.s32.totalorder %s34, 2
      %p182 = por %p180, %p181
      %p184 = scmp.ne.s32.totalorder %s167, %s183
      %p185 = scmp.eq.s32.totalorder %s34, 0
      %p186 = por %p184, %p185
      %s187 = ssub.s32 %s28, %s35
      %p188 = scmp.eq.s32.totalorder %s187, 0
      %s190 = sadd.s32 %s189, 1
      %s191 = scalar_select %p188, %s189, %s190
      %p194 = pneg %p188
      %p195 = scmp.eq.s32.totalorder %s28, 2
      %p196 = por %p194, %p195
      %p197 = scmp.ne.s32.totalorder %s189, %s192
      %p198 = scmp.eq.s32.totalorder %s28, 0
      %p199 = por %p197, %p198
      %p200 = scmp.ne.s32.totalorder %s189, %s192
      %p201 = scmp.eq.s32.totalorder %s33, 2
      %p202 = por %p200, %p201
      %p203 = scmp.ne.s32.totalorder %s192, %s193
      %p204 = scmp.eq.s32.totalorder %s33, 0
      %p205 = por %p203, %p204
      %p206 = scmp.ne.s32.totalorder %s192, %s193
      %p207 = scmp.eq.s32.totalorder %s34, 2
      %p208 = por %p206, %p207
      %p210 = scmp.ne.s32.totalorder %s193, %s209
      %p211 = scmp.eq.s32.totalorder %s34, 0
      %p212 = por %p210, %p211
      %s213 = ssub.s32 %s28, %s35
      %p214 = scmp.eq.s32.totalorder %s213, 0
      %s216 = sadd.s32 %s215, 1
      %s217 = scalar_select %p214, %s215, %s216
      %p220 = pneg %p214
      %p221 = scmp.eq.s32.totalorder %s28, 2
      %p222 = por %p220, %p221
      %p223 = scmp.ne.s32.totalorder %s215, %s218
      %p224 = scmp.eq.s32.totalorder %s28, 0
      %p225 = por %p223, %p224
      %p226 = scmp.ne.s32.totalorder %s215, %s218
      %p227 = scmp.eq.s32.totalorder %s33, 2
      %p228 = por %p226, %p227
      %p229 = scmp.ne.s32.totalorder %s218, %s219
      %p230 = scmp.eq.s32.totalorder %s33, 0
      %p231 = por %p229, %p230
      %p232 = scmp.ne.s32.totalorder %s218, %s219
      %p233 = scmp.eq.s32.totalorder %s34, 2
      %p234 = por %p232, %p233
      %p236 = scmp.ne.s32.totalorder %s219, %s235
      %p237 = scmp.eq.s32.totalorder %s34, 0
      %p238 = por %p236, %p237
      %s239 = ssub.s32 %s28, %s35
      %p240 = scmp.eq.s32.totalorder %s239, 0
      %s242 = sadd.s32 %s241, 1
      %s243 = scalar_select %p240, %s241, %s242
      %p246 = pneg %p240
      %p247 = scmp.eq.s32.totalorder %s28, 2
      %p248 = por %p246, %p247
      %p249 = scmp.ne.s32.totalorder %s241, %s244
      %p250 = scmp.eq.s32.totalorder %s28, 0
      %p251 = por %p249, %p250
      %p252 = scmp.ne.s32.totalorder %s241, %s244
      %p253 = scmp.eq.s32.totalorder %s33, 2
      %p254 = por %p252, %p253
      %p255 = scmp.ne.s32.totalorder %s244, %s245
      %p256 = scmp.eq.s32.totalorder %s33, 0
      %p257 = por %p255, %p256
      %p258 = scmp.ne.s32.totalorder %s244, %s245
      %p259 = scmp.eq.s32.totalorder %s34, 2
      %p260 = por %p258, %p259
      %p262 = scmp.ne.s32.totalorder %s245, %s261
      %p263 = scmp.eq.s32.totalorder %s34, 0
      %p264 = por %p262, %p263
      %s265 = ssub.s32 %s28, %s35
      %p266 = scmp.eq.s32.totalorder %s265, 0
      %s268 = sadd.s32 %s267, 1
      %s269 = scalar_select %p266, %s267, %s268
      %p272 = pneg %p266
      %p273 = scmp.eq.s32.totalorder %s28, 2
      %p274 = por %p272, %p273
      %p275 = scmp.ne.s32.totalorder %s267, %s270
      %p276 = scmp.eq.s32.totalorder %s28, 0
      %p277 = por %p275, %p276
      %p278 = scmp.ne.s32.totalorder %s267, %s270
      %p279 = scmp.eq.s32.totalorder %s33, 2
      %p280 = por %p278, %p279
      %p281 = scmp.ne.s32.totalorder %s270, %s271
      %p282 = scmp.eq.s32.totalorder %s33, 0
      %p283 = por %p281, %p282
      %p284 = scmp.ne.s32.totalorder %s270, %s271
      %p285 = scmp.eq.s32.totalorder %s34, 2
      %p286 = por %p284, %p285
      %p288 = scmp.ne.s32.totalorder %s271, %s287
      %p289 = scmp.eq.s32.totalorder %s34, 0
      %p290 = por %p288, %p289
      %p291 = scmp.le.s32.totalorder 1, %s28
      %p292 = scmp.lt.s32.totalorder %s28, 4
      %p293 = pnand %p291, %p292
      %p294 = pneg %p293
      // Predicated region
      $region9: #{hifd2_forward.2} parent=5 // pred_check
        _
      $region10: #{hifd2_forward.2} parent=5 // pred_check_branch
        %296 = sbr.rel (%p293) target = $region12
      $region11: #{hifd2_forward.2} parent=5 // pred_region
        %s297 = ssub.s32 %s28, 1
        // Predicated region
        $region13: #{hifd2_forward.2} parent=11 // pred_check
          %p298 = pneg %p49
        $region14: #{hifd2_forward.2} parent=11 // pred_check_branch
          %300 = sbr.rel (%p298) target = $region16
        $region15: #{hifd2_forward.2} parent=11 // pred_region
          %302 = vsyncadd [#allocation4], 0
          %s303 = sshll.u32 %s0, 4
          %s304 = int_to_ptr.hbm [resolvable:$true] %s303
          %s305 = sshll.u32 [#allocation3], 4
          %s306 = int_to_ptr.vmem [resolvable:$true] %s305
          %311 = dma.hbm_to_vmem [thread:$0]  %s304, 4096, %s306, [#allocation4], 256, 256, 16
        $region16: #{hifd2_forward.2} parent=11 // pred_fallthru
          _
      $region12: #{hifd2_forward.2} parent=5 // pred_fallthru
        _
      %p312 = scmp.lt.s32.totalorder %s28, 3
      // Predicated region
      $region17: #{hifd2_forward.2} parent=5 // pred_check
        %p313 = pneg %p312
      $region18: #{hifd2_forward.2} parent=5 // pred_check_branch
        %315 = sbr.rel (%p313) target = $region20
      $region19: #{hifd2_forward.2} parent=5 // pred_region
        // Predicated region
        $region21: #{hifd2_forward.2} parent=19 // pred_check
          %p316 = pneg %p69
        $region22: #{hifd2_forward.2} parent=19 // pred_check_branch
          %318 = sbr.rel (%p316) target = $region24
        $region23: #{hifd2_forward.2} parent=19 // pred_region
          %s319 = sand.u32 %s28, 1
          %s320 = scalar_lea.sflag [#allocation6], %s319
          %s321 = sand.u32 %s59, 1
          %s322 = smul.addr %s321, 256
          %s323 = scalar_lea.vmem [#allocation5], %s322
          %325 = vsyncadd %s320, 0
          %s326 = smul.addr %s28, 32
          %s327 = smul.addr %s326, 8
          %s328 = scalar_lea.hbm %s1, %s327
          %s329 = sshll.u32 %s328, 4
          %s330 = int_to_ptr.hbm [resolvable:$true] %s329
          %s331 = sshll.u32 %s323, 4
          %s332 = int_to_ptr.vmem [resolvable:$true] %s331
          %337 = dma.hbm_to_vmem [thread:$0]  %s330, 4096, %s332, %s320, 128, 128, 8
        $region24: #{hifd2_forward.2} parent=19 // pred_fallthru
          _
        // Predicated region
        $region25: #{hifd2_forward.2} parent=19 // pred_check
          %p338 = pneg %p95
        $region26: #{hifd2_forward.2} parent=19 // pred_check_branch
          %340 = sbr.rel (%p338) target = $region28
        $region27: #{hifd2_forward.2} parent=19 // pred_region
          %s341 = sand.u32 %s28, 1
          %s342 = scalar_lea.sflag [#allocation6], %s341
          %s343 = sand.u32 %s85, 1
          %s344 = scalar_lea.vmem [#allocation7], %s343
          %346 = vsyncadd %s342, 0
          %s347 = scalar_lea.hbm %s2, %s28
          %s349 = sshll.u32 %s347, 4
          %s350 = int_to_ptr.hbm [resolvable:$true] %s349
          %s351 = sshll.u32 %s344, 4
          %s352 = int_to_ptr.vmem [resolvable:$true] %s351
          %354 = dma.hbm_to_vmem [thread:$0]  %s350, 16, %s352, %s342
        $region28: #{hifd2_forward.2} parent=19 // pred_fallthru
          _
        // Predicated region
        $region29: #{hifd2_forward.2} parent=19 // pred_check
          %p355 = pneg %p121
        $region30: #{hifd2_forward.2} parent=19 // pred_check_branch
          %357 = sbr.rel (%p355) target = $region32
        $region31: #{hifd2_forward.2} parent=19 // pred_region
          %s358 = sand.u32 %s28, 1
          %s359 = scalar_lea.sflag [#allocation9], %s358
          %s360 = sand.u32 %s111, 1
          %s361 = smul.addr %s360, 2304
          %s362 = scalar_lea.vmem [#allocation8], %s361
          %364 = vsyncadd %s359, 0
          %s365 = smul.addr %s28, 288
          %s366 = smul.addr %s365, 8
          %s367 = scalar_lea.hbm %s3, %s366
          %s368 = sshll.u32 %s367, 4
          %s369 = int_to_ptr.hbm [resolvable:$true] %s368
          %s370 = sshll.u32 %s362, 4
          %s371 = int_to_ptr.vmem [resolvable:$true] %s370
          %376 = dma.hbm_to_vmem [thread:$0]  %s369, 36864, %s371, %s359, 256, 256, 16
        $region32: #{hifd2_forward.2} parent=19 // pred_fallthru
          _
        // Predicated region
        $region33: #{hifd2_forward.2} parent=19 // pred_check
          %p377 = pneg %p147
        $region34: #{hifd2_forward.2} parent=19 // pred_check_branch
          %379 = sbr.rel (%p377) target = $region36
        $region35: #{hifd2_forward.2} parent=19 // pred_region
          %s380 = sand.u32 %s28, 1
          %s381 = scalar_lea.sflag [#allocation9], %s380
          %s382 = sand.u32 %s137, 1
          %s383 = smul.addr %s382, 2
          %s384 = scalar_lea.vmem [#allocation10], %s383
          %386 = vsyncadd %s381, 0
          %s387 = smul.addr %s28, 2
          %s388 = scalar_lea.hbm %s4, %s387
          %s390 = sshll.u32 %s388, 4
          %s391 = int_to_ptr.hbm [resolvable:$true] %s390
          %s392 = sshll.u32 %s384, 4
          %s393 = int_to_ptr.vmem [resolvable:$true] %s392
          %395 = dma.hbm_to_vmem [thread:$0]  %s391, 32, %s393, %s381
        $region36: #{hifd2_forward.2} parent=19 // pred_fallthru
          _
        // Predicated region
        $region37: #{hifd2_forward.2} parent=19 // pred_check
          %p396 = pneg %p173
        $region38: #{hifd2_forward.2} parent=19 // pred_check_branch
          %398 = sbr.rel (%p396) target = $region40
        $region39: #{hifd2_forward.2} parent=19 // pred_region
          %s399 = sand.u32 %s28, 1
          %s400 = scalar_lea.sflag [#allocation12], %s399
          %s401 = sand.u32 %s163, 1
          %s402 = smul.addr %s401, 256
          %s403 = scalar_lea.vmem [#allocation11], %s402
          %405 = vsyncadd %s400, 0
          %s406 = smul.addr %s28, 32
          %s407 = smul.addr %s406, 8
          %s408 = scalar_lea.hbm %s5, %s407
          %s409 = sshll.u32 %s408, 4
          %s410 = int_to_ptr.hbm [resolvable:$true] %s409
          %s411 = sshll.u32 %s403, 4
          %s412 = int_to_ptr.vmem [resolvable:$true] %s411
          %417 = dma.hbm_to_vmem [thread:$0]  %s410, 4096, %s412, %s400, 128, 128, 8
        $region40: #{hifd2_forward.2} parent=19 // pred_fallthru
          _
        // Predicated region
        $region41: #{hifd2_forward.2} parent=19 // pred_check
          %p418 = pneg %p199
        $region42: #{hifd2_forward.2} parent=19 // pred_check_branch
          %420 = sbr.rel (%p418) target = $region44
        $region43: #{hifd2_forward.2} parent=19 // pred_region
          %s421 = sand.u32 %s28, 1
          %s422 = scalar_lea.sflag [#allocation12], %s421
          %s423 = sand.u32 %s189, 1
          %s424 = scalar_lea.vmem [#allocation13], %s423
          %426 = vsyncadd %s422, 0
          %s427 = scalar_lea.hbm %s6, %s28
          %s429 = sshll.u32 %s427, 4
          %s430 = int_to_ptr.hbm [resolvable:$true] %s429
          %s431 = sshll.u32 %s424, 4
          %s432 = int_to_ptr.vmem [resolvable:$true] %s431
          %434 = dma.hbm_to_vmem [thread:$0]  %s430, 16, %s432, %s422
        $region44: #{hifd2_forward.2} parent=19 // pred_fallthru
          _
        // Predicated region
        $region45: #{hifd2_forward.2} parent=19 // pred_check
          %p435 = pneg %p225
        $region46: #{hifd2_forward.2} parent=19 // pred_check_branch
          %437 = sbr.rel (%p435) target = $region48
        $region47: #{hifd2_forward.2} parent=19 // pred_region
          %s438 = sand.u32 %s28, 1
          %s439 = scalar_lea.sflag [#allocation15], %s438
          %s440 = sand.u32 %s215, 1
          %s441 = smul.addr %s440, 512
          %s442 = scalar_lea.vmem [#allocation14], %s441
          %444 = vsyncadd %s439, 0
          %s445 = smul.addr %s28, 64
          %s446 = smul.addr %s445, 8
          %s447 = scalar_lea.hbm %s7, %s446
          %s448 = sshll.u32 %s447, 4
          %s449 = int_to_ptr.hbm [resolvable:$true] %s448
          %s450 = sshll.u32 %s442, 4
          %s451 = int_to_ptr.vmem [resolvable:$true] %s450
          %456 = dma.hbm_to_vmem [thread:$0]  %s449, 8192, %s451, %s439, 512, 512, 32
        $region48: #{hifd2_forward.2} parent=19 // pred_fallthru
          _
        // Predicated region
        $region49: #{hifd2_forward.2} parent=19 // pred_check
          %p457 = pneg %p251
        $region50: #{hifd2_forward.2} parent=19 // pred_check_branch
          %459 = sbr.rel (%p457) target = $region52
        $region51: #{hifd2_forward.2} parent=19 // pred_region
          %s460 = sand.u32 %s28, 1
          %s461 = scalar_lea.sflag [#allocation15], %s460
          %s462 = sand.u32 %s241, 1
          %s463 = smul.addr %s462, 4
          %s464 = scalar_lea.vmem [#allocation16], %s463
          %466 = vsyncadd %s461, 0
          %s467 = smul.addr %s28, 4
          %s468 = scalar_lea.hbm %s8, %s467
          %s470 = sshll.u32 %s468, 4
          %s471 = int_to_ptr.hbm [resolvable:$true] %s470
          %s472 = sshll.u32 %s464, 4
          %s473 = int_to_ptr.vmem [resolvable:$true] %s472
          %475 = dma.hbm_to_vmem [thread:$0]  %s471, 64, %s473, %s461
        $region52: #{hifd2_forward.2} parent=19 // pred_fallthru
          _
      $region20: #{hifd2_forward.2} parent=5 // pred_fallthru
        _
      %p476 = scmp.le.s32.totalorder 1, %s28
      %p477 = scmp.lt.s32.totalorder %s28, 4
      %p478 = pnand %p476, %p477
      %p479 = pneg %p478
      // Predicated region
      $region53: #{hifd2_forward.2} parent=5 // pred_check
        _
      $region54: #{hifd2_forward.2} parent=5 // pred_check_branch
        %481 = sbr.rel (%p478) target = $region56
      $region55: #{hifd2_forward.2} parent=5 // pred_region
        %s482 = ssub.s32 %s28, 1
        // Predicated region
        $region57: #{hifd2_forward.2} parent=55 // pred_check
          %p483 = pneg %p49
        $region58: #{hifd2_forward.2} parent=55 // pred_check_branch
          %485 = sbr.rel (%p483) target = $region60
        $region59: #{hifd2_forward.2} parent=55 // pred_region
          %487 = dma.done [#allocation4], 4096
        $region60: #{hifd2_forward.2} parent=55 // pred_fallthru
          _
        %s488 = sand.u32 %s33, 1
        %s489 = scalar_lea.sflag [#allocation6], %s488
        %s490 = sand.u32 %s62, 1
        %s491 = smul.addr %s490, 256
        %s492 = scalar_lea.vmem [#allocation5], %s491
        // Predicated region
        $region61: #{hifd2_forward.2} parent=55 // pred_check
          %p493 = pneg %p75
        $region62: #{hifd2_forward.2} parent=55 // pred_check_branch
          %495 = sbr.rel (%p493) target = $region64
        $region63: #{hifd2_forward.2} parent=55 // pred_region
          %497 = dma.done %s489, 4096
        $region64: #{hifd2_forward.2} parent=55 // pred_fallthru
          _
        %s498 = sand.u32 %s33, 1
        %s499 = scalar_lea.sflag [#allocation6], %s498
        %s500 = sand.u32 %s88, 1
        %s501 = scalar_lea.vmem [#allocation7], %s500
        // Predicated region
        $region65: #{hifd2_forward.2} parent=55 // pred_check
          %p502 = pneg %p101
        $region66: #{hifd2_forward.2} parent=55 // pred_check_branch
          %504 = sbr.rel (%p502) target = $region68
        $region67: #{hifd2_forward.2} parent=55 // pred_region
          %506 = dma.done %s499, 16
        $region68: #{hifd2_forward.2} parent=55 // pred_fallthru
          _
        %s507 = sand.u32 %s33, 1
        %s508 = scalar_lea.sflag [#allocation9], %s507
        %s509 = sand.u32 %s114, 1
        %s510 = smul.addr %s509, 2304
        %s511 = scalar_lea.vmem [#allocation8], %s510
        // Predicated region
        $region69: #{hifd2_forward.2} parent=55 // pred_check
          %p512 = pneg %p127
        $region70: #{hifd2_forward.2} parent=55 // pred_check_branch
          %514 = sbr.rel (%p512) target = $region72
        $region71: #{hifd2_forward.2} parent=55 // pred_region
          %516 = dma.done %s508, 36864
        $region72: #{hifd2_forward.2} parent=55 // pred_fallthru
          _
        %s517 = sand.u32 %s33, 1
        %s518 = scalar_lea.sflag [#allocation9], %s517
        %s519 = sand.u32 %s140, 1
        %s520 = smul.addr %s519, 2
        %s521 = scalar_lea.vmem [#allocation10], %s520
        // Predicated region
        $region73: #{hifd2_forward.2} parent=55 // pred_check
          %p522 = pneg %p153
        $region74: #{hifd2_forward.2} parent=55 // pred_check_branch
          %524 = sbr.rel (%p522) target = $region76
        $region75: #{hifd2_forward.2} parent=55 // pred_region
          %526 = dma.done %s518, 32
        $region76: #{hifd2_forward.2} parent=55 // pred_fallthru
          _
        %s527 = sand.u32 %s33, 1
        %s528 = scalar_lea.sflag [#allocation12], %s527
        %s529 = sand.u32 %s166, 1
        %s530 = smul.addr %s529, 256
        %s531 = scalar_lea.vmem [#allocation11], %s530
        // Predicated region
        $region77: #{hifd2_forward.2} parent=55 // pred_check
          %p532 = pneg %p179
        $region78: #{hifd2_forward.2} parent=55 // pred_check_branch
          %534 = sbr.rel (%p532) target = $region80
        $region79: #{hifd2_forward.2} parent=55 // pred_region
          %536 = dma.done %s528, 4096
        $region80: #{hifd2_forward.2} parent=55 // pred_fallthru
          _
        %s537 = sand.u32 %s33, 1
        %s538 = scalar_lea.sflag [#allocation12], %s537
        %s539 = sand.u32 %s192, 1
        %s540 = scalar_lea.vmem [#allocation13], %s539
        // Predicated region
        $region81: #{hifd2_forward.2} parent=55 // pred_check
          %p541 = pneg %p205
        $region82: #{hifd2_forward.2} parent=55 // pred_check_branch
          %543 = sbr.rel (%p541) target = $region84
        $region83: #{hifd2_forward.2} parent=55 // pred_region
          %545 = dma.done %s538, 16
        $region84: #{hifd2_forward.2} parent=55 // pred_fallthru
          _
        %s546 = sand.u32 %s33, 1
        %s547 = scalar_lea.sflag [#allocation15], %s546
        %s548 = sand.u32 %s218, 1
        %s549 = smul.addr %s548, 512
        %s550 = scalar_lea.vmem [#allocation14], %s549
        // Predicated region
        $region85: #{hifd2_forward.2} parent=55 // pred_check
          %p551 = pneg %p231
        $region86: #{hifd2_forward.2} parent=55 // pred_check_branch
          %553 = sbr.rel (%p551) target = $region88
        $region87: #{hifd2_forward.2} parent=55 // pred_region
          %555 = dma.done %s547, 8192
        $region88: #{hifd2_forward.2} parent=55 // pred_fallthru
          _
        %s556 = sand.u32 %s33, 1
        %s557 = scalar_lea.sflag [#allocation15], %s556
        %s558 = sand.u32 %s244, 1
        %s559 = smul.addr %s558, 4
        %s560 = scalar_lea.vmem [#allocation16], %s559
        // Predicated region
        $region89: #{hifd2_forward.2} parent=55 // pred_check
          %p561 = pneg %p257
        $region90: #{hifd2_forward.2} parent=55 // pred_check_branch
          %563 = sbr.rel (%p561) target = $region92
        $region91: #{hifd2_forward.2} parent=55 // pred_region
          %565 = dma.done %s557, 64
        $region92: #{hifd2_forward.2} parent=55 // pred_fallthru
          _
        %p566 = pneg %p49
        %p567 = pneg %p46
        %s568 = sand.u32 %s33, 1
        %s569 = scalar_lea.sflag [#allocation6], %s568
        %s570 = sand.u32 %s62, 1
        %s571 = smul.addr %s570, 256
        %s572 = scalar_lea.vmem [#allocation5], %s571
        %p573 = pneg %p75
        %p574 = pneg %p72
        %s575 = sand.u32 %s33, 1
        %s576 = scalar_lea.sflag [#allocation6], %s575
        %s577 = sand.u32 %s88, 1
        %s578 = scalar_lea.vmem [#allocation7], %s577
        %p579 = pneg %p101
        %p580 = pneg %p98
        %s581 = sand.u32 %s33, 1
        %s582 = scalar_lea.sflag [#allocation9], %s581
        %s583 = sand.u32 %s114, 1
        %s584 = smul.addr %s583, 2304
        %s585 = scalar_lea.vmem [#allocation8], %s584
        %p586 = pneg %p127
        %p587 = pneg %p124
        %s588 = sand.u32 %s33, 1
        %s589 = scalar_lea.sflag [#allocation9], %s588
        %s590 = sand.u32 %s140, 1
        %s591 = smul.addr %s590, 2
        %s592 = scalar_lea.vmem [#allocation10], %s591
        %p593 = pneg %p153
        %p594 = pneg %p150
        %s595 = sand.u32 %s33, 1
        %s596 = scalar_lea.sflag [#allocation12], %s595
        %s597 = sand.u32 %s166, 1
        %s598 = smul.addr %s597, 256
        %s599 = scalar_lea.vmem [#allocation11], %s598
        %p600 = pneg %p179
        %p601 = pneg %p176
        %s602 = sand.u32 %s33, 1
        %s603 = scalar_lea.sflag [#allocation12], %s602
        %s604 = sand.u32 %s192, 1
        %s605 = scalar_lea.vmem [#allocation13], %s604
        %p606 = pneg %p205
        %p607 = pneg %p202
        %s608 = sand.u32 %s33, 1
        %s609 = scalar_lea.sflag [#allocation15], %s608
        %s610 = sand.u32 %s218, 1
        %s611 = smul.addr %s610, 512
        %s612 = scalar_lea.vmem [#allocation14], %s611
        %p613 = pneg %p231
        %p614 = pneg %p228
        %s615 = sand.u32 %s33, 1
        %s616 = scalar_lea.sflag [#allocation15], %s615
        %s617 = sand.u32 %s244, 1
        %s618 = smul.addr %s617, 4
        %s619 = scalar_lea.vmem [#allocation16], %s618
        %p620 = pneg %p257
        %p621 = pneg %p254
        %p622 = pneg %p283
        %p623 = pneg %p280
        %p624 = scmp.lt.s32.totalorder %s33, 2
        %s625 = scalar_select %p624, %s33, 2
        %s626 = smul.addr %s625, 4
        %s627 = smul.addr %s626, 2
        %s628 = scalar_lea.vmem %s9, %s627
        %p629 = scmp.lt.s32.totalorder %s33, 2
        %s630 = scalar_select %p629, %s33, 2
        %s631 = smul.addr %s630, 4
        %s632 = smul.addr %s631, 2
        %s633 = scalar_lea.vmem %s9, %s632
        %v634 = vld [vmem:[#allocation3] sm:$0xff]
        %v635 = vld [vmem:[#allocation3 + $0x8] sm:$0xff]
        %v636 = vld [vmem:[#allocation3 + $0x10] sm:$0xff]
        %v637 = vld [vmem:[#allocation3 + $0x18] sm:$0xff]
        %v638 = vld [vmem:[#allocation3 + $0x20] sm:$0xff]
        %v639 = vld [vmem:[#allocation3 + $0x28] sm:$0xff]
        %v640 = vld [vmem:[#allocation3 + $0x30] sm:$0xff]
        %v641 = vld [vmem:[#allocation3 + $0x38] sm:$0xff]
        %v642 = vld [vmem:[#allocation3 + $0x40] sm:$0xff]
        %v643 = vld [vmem:[#allocation3 + $0x48] sm:$0xff]
        %v644 = vld [vmem:[#allocation3 + $0x50] sm:$0xff]
        %v645 = vld [vmem:[#allocation3 + $0x58] sm:$0xff]
        %v646 = vld [vmem:[#allocation3 + $0x60] sm:$0xff]
        %v647 = vld [vmem:[#allocation3 + $0x68] sm:$0xff]
        %v648 = vld [vmem:[#allocation3 + $0x70] sm:$0xff]
        %v649 = vld [vmem:[#allocation3 + $0x78] sm:$0xff]
        %v650 = vld [vmem:[#allocation3 + $0x80] sm:$0xff]
        %v651 = vld [vmem:[#allocation3 + $0x88] sm:$0xff]
        %v652 = vld [vmem:[#allocation3 + $0x90] sm:$0xff]
        %v653 = vld [vmem:[#allocation3 + $0x98] sm:$0xff]
        %v654 = vld [vmem:[#allocation3 + $0xa0] sm:$0xff]
        %v655 = vld [vmem:[#allocation3 + $0xa8] sm:$0xff]
        %v656 = vld [vmem:[#allocation3 + $0xb0] sm:$0xff]
        %v657 = vld [vmem:[#allocation3 + $0xb8] sm:$0xff]
        %v658 = vld [vmem:[#allocation3 + $0xc0] sm:$0xff]
        %v659 = vld [vmem:[#allocation3 + $0xc8] sm:$0xff]
        %v660 = vld [vmem:[#allocation3 + $0xd0] sm:$0xff]
        %v661 = vld [vmem:[#allocation3 + $0xd8] sm:$0xff]
        %v662 = vld [vmem:[#allocation3 + $0xe0] sm:$0xff]
        %v663 = vld [vmem:[#allocation3 + $0xe8] sm:$0xff]
        %v664 = vld [vmem:[#allocation3 + $0xf0] sm:$0xff]
        %v665 = vld [vmem:[#allocation3 + $0xf8] sm:$0xff]
        %v666 = vld [vmem:[%s492] sm:$0xff]
        %v667 = vld [vmem:[%s492 + $0x8] sm:$0xff]
        %v668 = vld [vmem:[%s492 + $0x10] sm:$0xff]
        %v669 = vld [vmem:[%s492 + $0x18] sm:$0xff]
        %v670 = vld [vmem:[%s492 + $0x20] sm:$0xff]
        %v671 = vld [vmem:[%s492 + $0x28] sm:$0xff]
        %v672 = vld [vmem:[%s492 + $0x30] sm:$0xff]
        %v673 = vld [vmem:[%s492 + $0x38] sm:$0xff]
        %v674 = vld [vmem:[%s492 + $0x40] sm:$0xff]
        %v675 = vld [vmem:[%s492 + $0x48] sm:$0xff]
        %v676 = vld [vmem:[%s492 + $0x50] sm:$0xff]
        %v677 = vld [vmem:[%s492 + $0x58] sm:$0xff]
        %v678 = vld [vmem:[%s492 + $0x60] sm:$0xff]
        %v679 = vld [vmem:[%s492 + $0x68] sm:$0xff]
        %v680 = vld [vmem:[%s492 + $0x70] sm:$0xff]
        %v681 = vld [vmem:[%s492 + $0x78] sm:$0xff]
        %v682 = vld [vmem:[%s492 + $0x80] sm:$0xff]
        %v683 = vld [vmem:[%s492 + $0x88] sm:$0xff]
        %v684 = vld [vmem:[%s492 + $0x90] sm:$0xff]
        %v685 = vld [vmem:[%s492 + $0x98] sm:$0xff]
        %v686 = vld [vmem:[%s492 + $0xa0] sm:$0xff]
        %v687 = vld [vmem:[%s492 + $0xa8] sm:$0xff]
        %v688 = vld [vmem:[%s492 + $0xb0] sm:$0xff]
        %v689 = vld [vmem:[%s492 + $0xb8] sm:$0xff]
        %v690 = vld [vmem:[%s492 + $0xc0] sm:$0xff]
        %v691 = vld [vmem:[%s492 + $0xc8] sm:$0xff]
        %v692 = vld [vmem:[%s492 + $0xd0] sm:$0xff]
        %v693 = vld [vmem:[%s492 + $0xd8] sm:$0xff]
        %v694 = vld [vmem:[%s492 + $0xe0] sm:$0xff]
        %v695 = vld [vmem:[%s492 + $0xe8] sm:$0xff]
        %v696 = vld [vmem:[%s492 + $0xf0] sm:$0xff]
        %v697 = vld [vmem:[%s492 + $0xf8] sm:$0xff]
        %v698 = vld [vmem:[%s501] sm:$0x1]
        %v700 = vperm.slane %v698, 0
        %702 = vmatpush.msra.mxu0 %v681
        %703 = vmatpush.msra.mxu0 %v680
        %704 = vmatpush.msra.mxu0 %v679
        %705 = vmatpush.msra.mxu0 %v678
        %706 = vmatpush.msra.mxu0 %v677
        %707 = vmatpush.msra.mxu0 %v676
        %708 = vmatpush.msra.mxu0 %v675
        %709 = vmatpush.msra.mxu0 %v674
        %710 = vmatpush.msra.mxu0 %v673
        %711 = vmatpush.msra.mxu0 %v672
        %712 = vmatpush.msra.mxu0 %v671
        %713 = vmatpush.msra.mxu0 %v670
        %714 = vmatpush.msra.mxu0 %v669
        %715 = vmatpush.msra.mxu0 %v668
        %716 = vmatpush.msra.mxu0 %v667
        %717 = vmatpush.msra.mxu0 %v666
        %718 = vmatmul.f32.gmra.mxu0 %v634
        %v719 = vpop.f32.mrf.mxu0
        %v720 = vadd.f32 %v700, %v719
        %721 = vmatmul.f32.gmra.mxu0 %v636
        %v722 = vpop.f32.mrf.mxu0
        %v723 = vadd.f32 %v700, %v722
        %724 = vmatmul.f32.gmra.mxu0 %v638
        %v725 = vpop.f32.mrf.mxu0
        %v726 = vadd.f32 %v700, %v725
        %727 = vmatmul.f32.gmra.mxu0 %v640
        %v728 = vpop.f32.mrf.mxu0
        %v729 = vadd.f32 %v700, %v728
        %730 = vmatmul.f32.gmra.mxu0 %v642
        %v731 = vpop.f32.mrf.mxu0
        %v732 = vadd.f32 %v700, %v731
        %733 = vmatmul.f32.gmra.mxu0 %v644
        %v734 = vpop.f32.mrf.mxu0
        %v735 = vadd.f32 %v700, %v734
        %736 = vmatmul.f32.gmra.mxu0 %v646
        %v737 = vpop.f32.mrf.mxu0
        %v738 = vadd.f32 %v700, %v737
        %739 = vmatmul.f32.gmra.mxu0 %v648
        %v740 = vpop.f32.mrf.mxu0
        %v741 = vadd.f32 %v700, %v740
        %742 = vmatmul.f32.gmra.mxu0 %v650
        %v743 = vpop.f32.mrf.mxu0
        %v744 = vadd.f32 %v700, %v743
        %745 = vmatmul.f32.gmra.mxu0 %v652
        %v746 = vpop.f32.mrf.mxu0
        %v747 = vadd.f32 %v700, %v746
        %748 = vmatmul.f32.gmra.mxu0 %v654
        %v749 = vpop.f32.mrf.mxu0
        %v750 = vadd.f32 %v700, %v749
        %751 = vmatmul.f32.gmra.mxu0 %v656
        %v752 = vpop.f32.mrf.mxu0
        %v753 = vadd.f32 %v700, %v752
        %754 = vmatmul.f32.gmra.mxu0 %v658
        %v755 = vpop.f32.mrf.mxu0
        %v756 = vadd.f32 %v700, %v755
        %757 = vmatmul.f32.gmra.mxu0 %v660
        %v758 = vpop.f32.mrf.mxu0
        %v759 = vadd.f32 %v700, %v758
        %760 = vmatmul.f32.gmra.mxu0 %v662
        %v761 = vpop.f32.mrf.mxu0
        %v762 = vadd.f32 %v700, %v761
        %763 = vmatmul.f32.gmra.mxu0 %v664
        %v764 = vpop.f32.mrf.mxu0
        %v765 = vadd.f32 %v700, %v764
        %766 = vdwg.mxu0
        %767 = vmatpush.msra.mxu0 %v697
        %768 = vmatpush.msra.mxu0 %v696
        %769 = vmatpush.msra.mxu0 %v695
        %770 = vmatpush.msra.mxu0 %v694
        %771 = vmatpush.msra.mxu0 %v693
        %772 = vmatpush.msra.mxu0 %v692
        %773 = vmatpush.msra.mxu0 %v691
        %774 = vmatpush.msra.mxu0 %v690
        %775 = vmatpush.msra.mxu0 %v689
        %776 = vmatpush.msra.mxu0 %v688
        %777 = vmatpush.msra.mxu0 %v687
        %778 = vmatpush.msra.mxu0 %v686
        %779 = vmatpush.msra.mxu0 %v685
        %780 = vmatpush.msra.mxu0 %v684
        %781 = vmatpush.msra.mxu0 %v683
        %782 = vmatpush.msra.mxu0 %v682
        %783 = vmatmul.f32.gmra.mxu0 %v635
        %v784 = vpop.f32.mrf.mxu0
        %v785 = vadd.f32 %v720, %v784
        %786 = vmatmul.f32.gmra.mxu0 %v637
        %v787 = vpop.f32.mrf.mxu0
        %v788 = vadd.f32 %v723, %v787
        %789 = vmatmul.f32.gmra.mxu0 %v639
        %v790 = vpop.f32.mrf.mxu0
        %v791 = vadd.f32 %v726, %v790
        %792 = vmatmul.f32.gmra.mxu0 %v641
        %v793 = vpop.f32.mrf.mxu0
        %v794 = vadd.f32 %v729, %v793
        %795 = vmatmul.f32.gmra.mxu0 %v643
        %v796 = vpop.f32.mrf.mxu0
        %v797 = vadd.f32 %v732, %v796
        %798 = vmatmul.f32.gmra.mxu0 %v645
        %v799 = vpop.f32.mrf.mxu0
        %v800 = vadd.f32 %v735, %v799
        %801 = vmatmul.f32.gmra.mxu0 %v647
        %v802 = vpop.f32.mrf.mxu0
        %v803 = vadd.f32 %v738, %v802
        %804 = vmatmul.f32.gmra.mxu0 %v649
        %v805 = vpop.f32.mrf.mxu0
        %v806 = vadd.f32 %v741, %v805
        %807 = vmatmul.f32.gmra.mxu0 %v651
        %v808 = vpop.f32.mrf.mxu0
        %v809 = vadd.f32 %v744, %v808
        %810 = vmatmul.f32.gmra.mxu0 %v653
        %v811 = vpop.f32.mrf.mxu0
        %v812 = vadd.f32 %v747, %v811
        %813 = vmatmul.f32.gmra.mxu0 %v655
        %v814 = vpop.f32.mrf.mxu0
        %v815 = vadd.f32 %v750, %v814
        %816 = vmatmul.f32.gmra.mxu0 %v657
        %v817 = vpop.f32.mrf.mxu0
        %v818 = vadd.f32 %v753, %v817
        %819 = vmatmul.f32.gmra.mxu0 %v659
        %v820 = vpop.f32.mrf.mxu0
        %v821 = vadd.f32 %v756, %v820
        %822 = vmatmul.f32.gmra.mxu0 %v661
        %v823 = vpop.f32.mrf.mxu0
        %v824 = vadd.f32 %v759, %v823
        %825 = vmatmul.f32.gmra.mxu0 %v663
        %v826 = vpop.f32.mrf.mxu0
        %v827 = vadd.f32 %v762, %v826
        %828 = vmatmul.f32.gmra.mxu0 %v665
        %v829 = vpop.f32.mrf.mxu0
        %v830 = vadd.f32 %v765, %v829
        %831 = vdwg.mxu0
        %v832 = vmax.f32 %v785, 0.0
        %v833 = vmax.f32 %v788, 0.0
        %v834 = vmax.f32 %v791, 0.0
        %v835 = vmax.f32 %v794, 0.0
        %v836 = vmax.f32 %v797, 0.0
        %v837 = vmax.f32 %v800, 0.0
        %v838 = vmax.f32 %v803, 0.0
        %v839 = vmax.f32 %v806, 0.0
        %v840 = vmax.f32 %v809, 0.0
        %v841 = vmax.f32 %v812, 0.0
        %v842 = vmax.f32 %v815, 0.0
        %v843 = vmax.f32 %v818, 0.0
        %v844 = vmax.f32 %v821, 0.0
        %v845 = vmax.f32 %v824, 0.0
        %v846 = vmax.f32 %v827, 0.0
        %v847 = vmax.f32 %v830, 0.0
        %848 = vst [vmem:[#allocation2] sm:$0xff] 0.0
        %849 = vst [vmem:[#allocation2 + $0x8] sm:$0xff] 0.0
        %850 = vst [vmem:[#allocation2 + $0x10] sm:$0xff] 0.0
        %851 = vst [vmem:[#allocation2 + $0x18] sm:$0xff] 0.0
        %852 = vst [vmem:[#allocation2 + $0x20] sm:$0xff] 0.0
        %853 = vst [vmem:[#allocation2 + $0x28] sm:$0xff] 0.0
        %854 = vst [vmem:[#allocation2 + $0x30] sm:$0xff] 0.0
        %855 = vst [vmem:[#allocation2 + $0x38] sm:$0xff] 0.0
        %856 = vst [vmem:[#allocation2 + $0x40] sm:$0xff] 0.0
        %857 = vst [vmem:[#allocation2 + $0x48] sm:$0xff] 0.0
        %858 = vst [vmem:[#allocation2 + $0x50] sm:$0xff] 0.0
        %859 = vst [vmem:[#allocation2 + $0x58] sm:$0xff] 0.0
        %860 = vst [vmem:[#allocation2 + $0x60] sm:$0xff] 0.0
        %861 = vst [vmem:[#allocation2 + $0x68] sm:$0xff] 0.0
        %862 = vst [vmem:[#allocation2 + $0x70] sm:$0xff] 0.0
        %863 = vst [vmem:[#allocation2 + $0x78] sm:$0xff] 0.0
        %864 = vst [vmem:[#allocation2 + $0x80] sm:$0xff] 0.0
        %865 = vst [vmem:[#allocation2 + $0x88] sm:$0xff] 0.0
        %866 = vst [vmem:[#allocation2 + $0x90] sm:$0x3] 0.0
        %867 = vst [vmem:[#allocation2 + $0x9] sm:$0xff] %v832
        %868 = vst [vmem:[#allocation2 + $0x11] sm:$0xff] %v833
        %869 = vst [vmem:[#allocation2 + $0x19] sm:$0xff] %v834
        %870 = vst [vmem:[#allocation2 + $0x21] sm:$0xff] %v835
        %871 = vst [vmem:[#allocation2 + $0x29] sm:$0xff] %v836
        %872 = vst [vmem:[#allocation2 + $0x31] sm:$0xff] %v837
        %873 = vst [vmem:[#allocation2 + $0x39] sm:$0xff] %v838
        %874 = vst [vmem:[#allocation2 + $0x41] sm:$0xff] %v839
        %875 = vst [vmem:[#allocation2 + $0x49] sm:$0xff] %v840
        %876 = vst [vmem:[#allocation2 + $0x51] sm:$0xff] %v841
        %877 = vst [vmem:[#allocation2 + $0x59] sm:$0xff] %v842
        %878 = vst [vmem:[#allocation2 + $0x61] sm:$0xff] %v843
        %879 = vst [vmem:[#allocation2 + $0x69] sm:$0xff] %v844
        %880 = vst [vmem:[#allocation2 + $0x71] sm:$0xff] %v845
        %881 = vst [vmem:[#allocation2 + $0x79] sm:$0xff] %v846
        %882 = vst [vmem:[#allocation2 + $0x81] sm:$0xff] %v847
        %v883 = vlaneseq
        %v884 = vshrl.u32 %v883, 7
        %v885 = vadd.s32 %v884, 8
        %v886 = vadd.s32 %v884, 16
        %v887 = vadd.s32 %v884, 24
        %v888 = vadd.s32 %v884, 32
        %v889 = vadd.s32 %v884, 40
        %v890 = vadd.s32 %v884, 48
        %v891 = vadd.s32 %v884, 56
        %v892 = vadd.s32 %v884, 64
        %v893 = vadd.s32 %v884, 72
        %v894 = vadd.s32 %v884, 80
        %v895 = vadd.s32 %v884, 88
        %v896 = vadd.s32 %v884, 96
        %v897 = vadd.s32 %v884, 104
        %v898 = vadd.s32 %v884, 112
        %v899 = vadd.s32 %v884, 120
        %v900 = vand.u32 %v884, 7
        %v901 = vand.u32 %v885, 7
        %v902 = vand.u32 %v886, 7
        %v903 = vand.u32 %v887, 7
        %v904 = vand.u32 %v888, 7
        %v905 = vand.u32 %v889, 7
        %v906 = vand.u32 %v890, 7
        %v907 = vand.u32 %v891, 7
        %v908 = vand.u32 %v892, 7
        %v909 = vand.u32 %v893, 7
        %v910 = vand.u32 %v894, 7
        %v911 = vand.u32 %v895, 7
        %v912 = vand.u32 %v896, 7
        %v913 = vand.u32 %v897, 7
        %v914 = vand.u32 %v898, 7
        %v915 = vand.u32 %v899, 7
        %v916 = vshra.s32 %v884, 3
        %v917 = vshra.s32 %v885, 3
        %v918 = vshra.s32 %v886, 3
        %v919 = vshra.s32 %v887, 3
        %v920 = vshra.s32 %v888, 3
        %v921 = vshra.s32 %v889, 3
        %v922 = vshra.s32 %v890, 3
        %v923 = vshra.s32 %v891, 3
        %v924 = vshra.s32 %v892, 3
        %v925 = vshra.s32 %v893, 3
        %v926 = vshra.s32 %v894, 3
        %v927 = vshra.s32 %v895, 3
        %v928 = vshra.s32 %v896, 3
        %v929 = vshra.s32 %v897, 3
        %v930 = vshra.s32 %v898, 3
        %v931 = vshra.s32 %v899, 3
        %v932 = vand.u32 %v916, 7
        %v933 = vand.u32 %v917, 7
        %v934 = vand.u32 %v918, 7
        %v935 = vand.u32 %v919, 7
        %v936 = vand.u32 %v920, 7
        %v937 = vand.u32 %v921, 7
        %v938 = vand.u32 %v922, 7
        %v939 = vand.u32 %v923, 7
        %v940 = vand.u32 %v924, 7
        %v941 = vand.u32 %v925, 7
        %v942 = vand.u32 %v926, 7
        %v943 = vand.u32 %v927, 7
        %v944 = vand.u32 %v928, 7
        %v945 = vand.u32 %v929, 7
        %v946 = vand.u32 %v930, 7
        %v947 = vand.u32 %v931, 7
        %v948 = vld [vmem:[#allocation2] sm:$0xff]
        %v949 = vld [vmem:[#allocation2 + $0x8] sm:$0xff]
        %v950 = vld [vmem:[#allocation2 + $0x10] sm:$0xff]
        %v951 = vld [vmem:[#allocation2 + $0x18] sm:$0xff]
        %v952 = vld [vmem:[#allocation2 + $0x20] sm:$0xff]
        %v953 = vld [vmem:[#allocation2 + $0x28] sm:$0xff]
        %v954 = vld [vmem:[#allocation2 + $0x30] sm:$0xff]
        %v955 = vld [vmem:[#allocation2 + $0x38] sm:$0xff]
        %v956 = vld [vmem:[#allocation2 + $0x40] sm:$0xff]
        %v957 = vld [vmem:[#allocation2 + $0x48] sm:$0xff]
        %v958 = vld [vmem:[#allocation2 + $0x50] sm:$0xff]
        %v959 = vld [vmem:[#allocation2 + $0x58] sm:$0xff]
        %v960 = vld [vmem:[#allocation2 + $0x60] sm:$0xff]
        %v961 = vld [vmem:[#allocation2 + $0x68] sm:$0xff]
        %v962 = vld [vmem:[#allocation2 + $0x70] sm:$0xff]
        %v963 = vld [vmem:[#allocation2 + $0x78] sm:$0xff]
        %v964 = vadd.s32 %v932, 4294967295
        %v965 = vadd.s32 %v933, 4294967295
        %v966 = vadd.s32 %v934, 4294967295
        %v967 = vadd.s32 %v935, 4294967295
        %v968 = vadd.s32 %v936, 4294967295
        %v969 = vadd.s32 %v937, 4294967295
        %v970 = vadd.s32 %v938, 4294967295
        %v971 = vadd.s32 %v939, 4294967295
        %v972 = vadd.s32 %v940, 4294967295
        %v973 = vadd.s32 %v941, 4294967295
        %v974 = vadd.s32 %v942, 4294967295
        %v975 = vadd.s32 %v943, 4294967295
        %v976 = vadd.s32 %v944, 4294967295
        %v977 = vadd.s32 %v945, 4294967295
        %v978 = vadd.s32 %v946, 4294967295
        %v979 = vadd.s32 %v947, 4294967295
        %vm980 = vcmp.ge.s32.totalorder %v964, 0
        %vm981 = vcmp.ge.s32.totalorder %v965, 0
        %vm982 = vcmp.ge.s32.totalorder %v966, 0
        %vm983 = vcmp.ge.s32.totalorder %v967, 0
        %vm984 = vcmp.ge.s32.totalorder %v968, 0
        %vm985 = vcmp.ge.s32.totalorder %v969, 0
        %vm986 = vcmp.ge.s32.totalorder %v970, 0
        %vm987 = vcmp.ge.s32.totalorder %v971, 0
        %vm988 = vcmp.ge.s32.totalorder %v972, 0
        %vm989 = vcmp.ge.s32.totalorder %v973, 0
        %vm990 = vcmp.ge.s32.totalorder %v974, 0
        %vm991 = vcmp.ge.s32.totalorder %v975, 0
        %vm992 = vcmp.ge.s32.totalorder %v976, 0
        %vm993 = vcmp.ge.s32.totalorder %v977, 0
        %vm994 = vcmp.ge.s32.totalorder %v978, 0
        %vm995 = vcmp.ge.s32.totalorder %v979, 0
        %vm996 = vcmp.lt.s32.totalorder %v964, 8
        %vm997 = vcmp.lt.s32.totalorder %v965, 8
        %vm998 = vcmp.lt.s32.totalorder %v966, 8
        %vm999 = vcmp.lt.s32.totalorder %v967, 8
        %vm1000 = vcmp.lt.s32.totalorder %v968, 8
        %vm1001 = vcmp.lt.s32.totalorder %v969, 8
        %vm1002 = vcmp.lt.s32.totalorder %v970, 8
        %vm1003 = vcmp.lt.s32.totalorder %v971, 8
        %vm1004 = vcmp.lt.s32.totalorder %v972, 8
        %vm1005 = vcmp.lt.s32.totalorder %v973, 8
        %vm1006 = vcmp.lt.s32.totalorder %v974, 8
        %vm1007 = vcmp.lt.s32.totalorder %v975, 8
        %vm1008 = vcmp.lt.s32.totalorder %v976, 8
        %vm1009 = vcmp.lt.s32.totalorder %v977, 8
        %vm1010 = vcmp.lt.s32.totalorder %v978, 8
        %vm1011 = vcmp.lt.s32.totalorder %v979, 8
        %vm1012 = vmand %vm980, %vm996
        %vm1013 = vmand %vm981, %vm997
        %vm1014 = vmand %vm982, %vm998
        %vm1015 = vmand %vm983, %vm999
        %vm1016 = vmand %vm984, %vm1000
        %vm1017 = vmand %vm985, %vm1001
        %vm1018 = vmand %vm986, %vm1002
        %vm1019 = vmand %vm987, %vm1003
        %vm1020 = vmand %vm988, %vm1004
        %vm1021 = vmand %vm989, %vm1005
        %vm1022 = vmand %vm990, %vm1006
        %vm1023 = vmand %vm991, %vm1007
        %vm1024 = vmand %vm992, %vm1008
        %vm1025 = vmand %vm993, %vm1009
        %vm1026 = vmand %vm994, %vm1010
        %vm1027 = vmand %vm995, %vm1011
        %v1028 = vadd.s32 %v900, 4294967295
        %v1029 = vadd.s32 %v901, 4294967295
        %v1030 = vadd.s32 %v902, 4294967295
        %v1031 = vadd.s32 %v903, 4294967295
        %v1032 = vadd.s32 %v904, 4294967295
        %v1033 = vadd.s32 %v905, 4294967295
        %v1034 = vadd.s32 %v906, 4294967295
        %v1035 = vadd.s32 %v907, 4294967295
        %v1036 = vadd.s32 %v908, 4294967295
        %v1037 = vadd.s32 %v909, 4294967295
        %v1038 = vadd.s32 %v910, 4294967295
        %v1039 = vadd.s32 %v911, 4294967295
        %v1040 = vadd.s32 %v912, 4294967295
        %v1041 = vadd.s32 %v913, 4294967295
        %v1042 = vadd.s32 %v914, 4294967295
        %v1043 = vadd.s32 %v915, 4294967295
        %vm1044 = vcmp.ge.s32.totalorder %v1028, 0
        %vm1045 = vcmp.ge.s32.totalorder %v1029, 0
        %vm1046 = vcmp.ge.s32.totalorder %v1030, 0
        %vm1047 = vcmp.ge.s32.totalorder %v1031, 0
        %vm1048 = vcmp.ge.s32.totalorder %v1032, 0
        %vm1049 = vcmp.ge.s32.totalorder %v1033, 0
        %vm1050 = vcmp.ge.s32.totalorder %v1034, 0
        %vm1051 = vcmp.ge.s32.totalorder %v1035, 0
        %vm1052 = vcmp.ge.s32.totalorder %v1036, 0
        %vm1053 = vcmp.ge.s32.totalorder %v1037, 0
        %vm1054 = vcmp.ge.s32.totalorder %v1038, 0
        %vm1055 = vcmp.ge.s32.totalorder %v1039, 0
        %vm1056 = vcmp.ge.s32.totalorder %v1040, 0
        %vm1057 = vcmp.ge.s32.totalorder %v1041, 0
        %vm1058 = vcmp.ge.s32.totalorder %v1042, 0
        %vm1059 = vcmp.ge.s32.totalorder %v1043, 0
        %vm1060 = vmand %vm1012, %vm1044
        %vm1061 = vmand %vm1013, %vm1045
        %vm1062 = vmand %vm1014, %vm1046
        %vm1063 = vmand %vm1015, %vm1047
        %vm1064 = vmand %vm1016, %vm1048
        %vm1065 = vmand %vm1017, %vm1049
        %vm1066 = vmand %vm1018, %vm1050
        %vm1067 = vmand %vm1019, %vm1051
        %vm1068 = vmand %vm1020, %vm1052
        %vm1069 = vmand %vm1021, %vm1053
        %vm1070 = vmand %vm1022, %vm1054
        %vm1071 = vmand %vm1023, %vm1055
        %vm1072 = vmand %vm1024, %vm1056
        %vm1073 = vmand %vm1025, %vm1057
        %vm1074 = vmand %vm1026, %vm1058
        %vm1075 = vmand %vm1027, %vm1059
        %vm1076 = vcmp.lt.s32.totalorder %v1028, 8
        %vm1077 = vcmp.lt.s32.totalorder %v1029, 8
        %vm1078 = vcmp.lt.s32.totalorder %v1030, 8
        %vm1079 = vcmp.lt.s32.totalorder %v1031, 8
        %vm1080 = vcmp.lt.s32.totalorder %v1032, 8
        %vm1081 = vcmp.lt.s32.totalorder %v1033, 8
        %vm1082 = vcmp.lt.s32.totalorder %v1034, 8
        %vm1083 = vcmp.lt.s32.totalorder %v1035, 8
        %vm1084 = vcmp.lt.s32.totalorder %v1036, 8
        %vm1085 = vcmp.lt.s32.totalorder %v1037, 8
        %vm1086 = vcmp.lt.s32.totalorder %v1038, 8
        %vm1087 = vcmp.lt.s32.totalorder %v1039, 8
        %vm1088 = vcmp.lt.s32.totalorder %v1040, 8
        %vm1089 = vcmp.lt.s32.totalorder %v1041, 8
        %vm1090 = vcmp.lt.s32.totalorder %v1042, 8
        %vm1091 = vcmp.lt.s32.totalorder %v1043, 8
        %vm1092 = vmand %vm1060, %vm1076
        %vm1093 = vmand %vm1061, %vm1077
        %vm1094 = vmand %vm1062, %vm1078
        %vm1095 = vmand %vm1063, %vm1079
        %vm1096 = vmand %vm1064, %vm1080
        %vm1097 = vmand %vm1065, %vm1081
        %vm1098 = vmand %vm1066, %vm1082
        %vm1099 = vmand %vm1067, %vm1083
        %vm1100 = vmand %vm1068, %vm1084
        %vm1101 = vmand %vm1069, %vm1085
        %vm1102 = vmand %vm1070, %vm1086
        %vm1103 = vmand %vm1071, %vm1087
        %vm1104 = vmand %vm1072, %vm1088
        %vm1105 = vmand %vm1073, %vm1089
        %vm1106 = vmand %vm1074, %vm1090
        %vm1107 = vmand %vm1075, %vm1091
        %v1108 = vsel %vm1092, 1, 0
        %v1109 = vsel %vm1093, 1, 0
        %v1110 = vsel %vm1094, 1, 0
        %v1111 = vsel %vm1095, 1, 0
        %v1112 = vsel %vm1096, 1, 0
        %v1113 = vsel %vm1097, 1, 0
        %v1114 = vsel %vm1098, 1, 0
        %v1115 = vsel %vm1099, 1, 0
        %v1116 = vsel %vm1100, 1, 0
        %v1117 = vsel %vm1101, 1, 0
        %v1118 = vsel %vm1102, 1, 0
        %v1119 = vsel %vm1103, 1, 0
        %v1120 = vsel %vm1104, 1, 0
        %v1121 = vsel %vm1105, 1, 0
        %v1122 = vsel %vm1106, 1, 0
        %v1123 = vsel %vm1107, 1, 0
        %vm1124 = vcmp.eq.s32.totalorder %v1108, 1
        %vm1125 = vcmp.eq.s32.totalorder %v1109, 1
        %vm1126 = vcmp.eq.s32.totalorder %v1110, 1
        %vm1127 = vcmp.eq.s32.totalorder %v1111, 1
        %vm1128 = vcmp.eq.s32.totalorder %v1112, 1
        %vm1129 = vcmp.eq.s32.totalorder %v1113, 1
        %vm1130 = vcmp.eq.s32.totalorder %v1114, 1
        %vm1131 = vcmp.eq.s32.totalorder %v1115, 1
        %vm1132 = vcmp.eq.s32.totalorder %v1116, 1
        %vm1133 = vcmp.eq.s32.totalorder %v1117, 1
        %vm1134 = vcmp.eq.s32.totalorder %v1118, 1
        %vm1135 = vcmp.eq.s32.totalorder %v1119, 1
        %vm1136 = vcmp.eq.s32.totalorder %v1120, 1
        %vm1137 = vcmp.eq.s32.totalorder %v1121, 1
        %vm1138 = vcmp.eq.s32.totalorder %v1122, 1
        %vm1139 = vcmp.eq.s32.totalorder %v1123, 1
        %v1140 = vsel %vm1124, %v948, 0.0
        %v1141 = vsel %vm1125, %v949, 0.0
        %v1142 = vsel %vm1126, %v950, 0.0
        %v1143 = vsel %vm1127, %v951, 0.0
        %v1144 = vsel %vm1128, %v952, 0.0
        %v1145 = vsel %vm1129, %v953, 0.0
        %v1146 = vsel %vm1130, %v954, 0.0
        %v1147 = vsel %vm1131, %v955, 0.0
        %v1148 = vsel %vm1132, %v956, 0.0
        %v1149 = vsel %vm1133, %v957, 0.0
        %v1150 = vsel %vm1134, %v958, 0.0
        %v1151 = vsel %vm1135, %v959, 0.0
        %v1152 = vsel %vm1136, %v960, 0.0
        %v1153 = vsel %vm1137, %v961, 0.0
        %v1154 = vsel %vm1138, %v962, 0.0
        %v1155 = vsel %vm1139, %v963, 0.0
        %v1156 = vld [vmem:[#allocation2 + $0x1] sm:$0xff]
        %v1157 = vld [vmem:[#allocation2 + $0x9] sm:$0xff]
        %v1158 = vld [vmem:[#allocation2 + $0x11] sm:$0xff]
        %v1159 = vld [vmem:[#allocation2 + $0x19] sm:$0xff]
        %v1160 = vld [vmem:[#allocation2 + $0x21] sm:$0xff]
        %v1161 = vld [vmem:[#allocation2 + $0x29] sm:$0xff]
        %v1162 = vld [vmem:[#allocation2 + $0x31] sm:$0xff]
        %v1163 = vld [vmem:[#allocation2 + $0x39] sm:$0xff]
        %v1164 = vld [vmem:[#allocation2 + $0x41] sm:$0xff]
        %v1165 = vld [vmem:[#allocation2 + $0x49] sm:$0xff]
        %v1166 = vld [vmem:[#allocation2 + $0x51] sm:$0xff]
        %v1167 = vld [vmem:[#allocation2 + $0x59] sm:$0xff]
        %v1168 = vld [vmem:[#allocation2 + $0x61] sm:$0xff]
        %v1169 = vld [vmem:[#allocation2 + $0x69] sm:$0xff]
        %v1170 = vld [vmem:[#allocation2 + $0x71] sm:$0xff]
        %v1171 = vld [vmem:[#allocation2 + $0x79] sm:$0xff]
        %vm1172 = vcmp.ge.s32.totalorder %v900, 0
        %vm1173 = vcmp.ge.s32.totalorder %v901, 0
        %vm1174 = vcmp.ge.s32.totalorder %v902, 0
        %vm1175 = vcmp.ge.s32.totalorder %v903, 0
        %vm1176 = vcmp.ge.s32.totalorder %v904, 0
        %vm1177 = vcmp.ge.s32.totalorder %v905, 0
        %vm1178 = vcmp.ge.s32.totalorder %v906, 0
        %vm1179 = vcmp.ge.s32.totalorder %v907, 0
        %vm1180 = vcmp.ge.s32.totalorder %v908, 0
        %vm1181 = vcmp.ge.s32.totalorder %v909, 0
        %vm1182 = vcmp.ge.s32.totalorder %v910, 0
        %vm1183 = vcmp.ge.s32.totalorder %v911, 0
        %vm1184 = vcmp.ge.s32.totalorder %v912, 0
        %vm1185 = vcmp.ge.s32.totalorder %v913, 0
        %vm1186 = vcmp.ge.s32.totalorder %v914, 0
        %vm1187 = vcmp.ge.s32.totalorder %v915, 0
        %vm1188 = vmand %vm1012, %vm1172
        %vm1189 = vmand %vm1013, %vm1173
        %vm1190 = vmand %vm1014, %vm1174
        %vm1191 = vmand %vm1015, %vm1175
        %vm1192 = vmand %vm1016, %vm1176
        %vm1193 = vmand %vm1017, %vm1177
        %vm1194 = vmand %vm1018, %vm1178
        %vm1195 = vmand %vm1019, %vm1179
        %vm1196 = vmand %vm1020, %vm1180
        %vm1197 = vmand %vm1021, %vm1181
        %vm1198 = vmand %vm1022, %vm1182
        %vm1199 = vmand %vm1023, %vm1183
        %vm1200 = vmand %vm1024, %vm1184
        %vm1201 = vmand %vm1025, %vm1185
        %vm1202 = vmand %vm1026, %vm1186
        %vm1203 = vmand %vm1027, %vm1187
        %vm1204 = vcmp.lt.s32.totalorder %v900, 8
        %vm1205 = vcmp.lt.s32.totalorder %v901, 8
        %vm1206 = vcmp.lt.s32.totalorder %v902, 8
        %vm1207 = vcmp.lt.s32.totalorder %v903, 8
        %vm1208 = vcmp.lt.s32.totalorder %v904, 8
        %vm1209 = vcmp.lt.s32.totalorder %v905, 8
        %vm1210 = vcmp.lt.s32.totalorder %v906, 8
        %vm1211 = vcmp.lt.s32.totalorder %v907, 8
        %vm1212 = vcmp.lt.s32.totalorder %v908, 8
        %vm1213 = vcmp.lt.s32.totalorder %v909, 8
        %vm1214 = vcmp.lt.s32.totalorder %v910, 8
        %vm1215 = vcmp.lt.s32.totalorder %v911, 8
        %vm1216 = vcmp.lt.s32.totalorder %v912, 8
        %vm1217 = vcmp.lt.s32.totalorder %v913, 8
        %vm1218 = vcmp.lt.s32.totalorder %v914, 8
        %vm1219 = vcmp.lt.s32.totalorder %v915, 8
        %vm1220 = vmand %vm1188, %vm1204
        %vm1221 = vmand %vm1189, %vm1205
        %vm1222 = vmand %vm1190, %vm1206
        %vm1223 = vmand %vm1191, %vm1207
        %vm1224 = vmand %vm1192, %vm1208
        %vm1225 = vmand %vm1193, %vm1209
        %vm1226 = vmand %vm1194, %vm1210
        %vm1227 = vmand %vm1195, %vm1211
        %vm1228 = vmand %vm1196, %vm1212
        %vm1229 = vmand %vm1197, %vm1213
        %vm1230 = vmand %vm1198, %vm1214
        %vm1231 = vmand %vm1199, %vm1215
        %vm1232 = vmand %vm1200, %vm1216
        %vm1233 = vmand %vm1201, %vm1217
        %vm1234 = vmand %vm1202, %vm1218
        %vm1235 = vmand %vm1203, %vm1219
        %v1236 = vsel %vm1220, 1, 0
        %v1237 = vsel %vm1221, 1, 0
        %v1238 = vsel %vm1222, 1, 0
        %v1239 = vsel %vm1223, 1, 0
        %v1240 = vsel %vm1224, 1, 0
        %v1241 = vsel %vm1225, 1, 0
        %v1242 = vsel %vm1226, 1, 0
        %v1243 = vsel %vm1227, 1, 0
        %v1244 = vsel %vm1228, 1, 0
        %v1245 = vsel %vm1229, 1, 0
        %v1246 = vsel %vm1230, 1, 0
        %v1247 = vsel %vm1231, 1, 0
        %v1248 = vsel %vm1232, 1, 0
        %v1249 = vsel %vm1233, 1, 0
        %v1250 = vsel %vm1234, 1, 0
        %v1251 = vsel %vm1235, 1, 0
        %vm1252 = vcmp.eq.s32.totalorder %v1236, 1
        %vm1253 = vcmp.eq.s32.totalorder %v1237, 1
        %vm1254 = vcmp.eq.s32.totalorder %v1238, 1
        %vm1255 = vcmp.eq.s32.totalorder %v1239, 1
        %vm1256 = vcmp.eq.s32.totalorder %v1240, 1
        %vm1257 = vcmp.eq.s32.totalorder %v1241, 1
        %vm1258 = vcmp.eq.s32.totalorder %v1242, 1
        %vm1259 = vcmp.eq.s32.totalorder %v1243, 1
        %vm1260 = vcmp.eq.s32.totalorder %v1244, 1
        %vm1261 = vcmp.eq.s32.totalorder %v1245, 1
        %vm1262 = vcmp.eq.s32.totalorder %v1246, 1
        %vm1263 = vcmp.eq.s32.totalorder %v1247, 1
        %vm1264 = vcmp.eq.s32.totalorder %v1248, 1
        %vm1265 = vcmp.eq.s32.totalorder %v1249, 1
        %vm1266 = vcmp.eq.s32.totalorder %v1250, 1
        %vm1267 = vcmp.eq.s32.totalorder %v1251, 1
        %v1268 = vsel %vm1252, %v1156, 0.0
        %v1269 = vsel %vm1253, %v1157, 0.0
        %v1270 = vsel %vm1254, %v1158, 0.0
        %v1271 = vsel %vm1255, %v1159, 0.0
        %v1272 = vsel %vm1256, %v1160, 0.0
        %v1273 = vsel %vm1257, %v1161, 0.0
        %v1274 = vsel %vm1258, %v1162, 0.0
        %v1275 = vsel %vm1259, %v1163, 0.0
        %v1276 = vsel %vm1260, %v1164, 0.0
        %v1277 = vsel %vm1261, %v1165, 0.0
        %v1278 = vsel %vm1262, %v1166, 0.0
        %v1279 = vsel %vm1263, %v1167, 0.0
        %v1280 = vsel %vm1264, %v1168, 0.0
        %v1281 = vsel %vm1265, %v1169, 0.0
        %v1282 = vsel %vm1266, %v1170, 0.0
        %v1283 = vsel %vm1267, %v1171, 0.0
        %v1284 = vld [vmem:[#allocation2 + $0x2] sm:$0xff]
        %v1285 = vld [vmem:[#allocation2 + $0xa] sm:$0xff]
        %v1286 = vld [vmem:[#allocation2 + $0x12] sm:$0xff]
        %v1287 = vld [vmem:[#allocation2 + $0x1a] sm:$0xff]
        %v1288 = vld [vmem:[#allocation2 + $0x22] sm:$0xff]
        %v1289 = vld [vmem:[#allocation2 + $0x2a] sm:$0xff]
        %v1290 = vld [vmem:[#allocation2 + $0x32] sm:$0xff]
        %v1291 = vld [vmem:[#allocation2 + $0x3a] sm:$0xff]
        %v1292 = vld [vmem:[#allocation2 + $0x42] sm:$0xff]
        %v1293 = vld [vmem:[#allocation2 + $0x4a] sm:$0xff]
        %v1294 = vld [vmem:[#allocation2 + $0x52] sm:$0xff]
        %v1295 = vld [vmem:[#allocation2 + $0x5a] sm:$0xff]
        %v1296 = vld [vmem:[#allocation2 + $0x62] sm:$0xff]
        %v1297 = vld [vmem:[#allocation2 + $0x6a] sm:$0xff]
        %v1298 = vld [vmem:[#allocation2 + $0x72] sm:$0xff]
        %v1299 = vld [vmem:[#allocation2 + $0x7a] sm:$0xff]
        %v1300 = vadd.s32 %v900, 1
        %v1301 = vadd.s32 %v901, 1
        %v1302 = vadd.s32 %v902, 1
        %v1303 = vadd.s32 %v903, 1
        %v1304 = vadd.s32 %v904, 1
        %v1305 = vadd.s32 %v905, 1
        %v1306 = vadd.s32 %v906, 1
        %v1307 = vadd.s32 %v907, 1
        %v1308 = vadd.s32 %v908, 1
        %v1309 = vadd.s32 %v909, 1
        %v1310 = vadd.s32 %v910, 1
        %v1311 = vadd.s32 %v911, 1
        %v1312 = vadd.s32 %v912, 1
        %v1313 = vadd.s32 %v913, 1
        %v1314 = vadd.s32 %v914, 1
        %v1315 = vadd.s32 %v915, 1
        %vm1316 = vcmp.ge.s32.totalorder %v1300, 0
        %vm1317 = vcmp.ge.s32.totalorder %v1301, 0
        %vm1318 = vcmp.ge.s32.totalorder %v1302, 0
        %vm1319 = vcmp.ge.s32.totalorder %v1303, 0
        %vm1320 = vcmp.ge.s32.totalorder %v1304, 0
        %vm1321 = vcmp.ge.s32.totalorder %v1305, 0
        %vm1322 = vcmp.ge.s32.totalorder %v1306, 0
        %vm1323 = vcmp.ge.s32.totalorder %v1307, 0
        %vm1324 = vcmp.ge.s32.totalorder %v1308, 0
        %vm1325 = vcmp.ge.s32.totalorder %v1309, 0
        %vm1326 = vcmp.ge.s32.totalorder %v1310, 0
        %vm1327 = vcmp.ge.s32.totalorder %v1311, 0
        %vm1328 = vcmp.ge.s32.totalorder %v1312, 0
        %vm1329 = vcmp.ge.s32.totalorder %v1313, 0
        %vm1330 = vcmp.ge.s32.totalorder %v1314, 0
        %vm1331 = vcmp.ge.s32.totalorder %v1315, 0
        %vm1332 = vmand %vm1012, %vm1316
        %vm1333 = vmand %vm1013, %vm1317
        %vm1334 = vmand %vm1014, %vm1318
        %vm1335 = vmand %vm1015, %vm1319
        %vm1336 = vmand %vm1016, %vm1320
        %vm1337 = vmand %vm1017, %vm1321
        %vm1338 = vmand %vm1018, %vm1322
        %vm1339 = vmand %vm1019, %vm1323
        %vm1340 = vmand %vm1020, %vm1324
        %vm1341 = vmand %vm1021, %vm1325
        %vm1342 = vmand %vm1022, %vm1326
        %vm1343 = vmand %vm1023, %vm1327
        %vm1344 = vmand %vm1024, %vm1328
        %vm1345 = vmand %vm1025, %vm1329
        %vm1346 = vmand %vm1026, %vm1330
        %vm1347 = vmand %vm1027, %vm1331
        %vm1348 = vcmp.lt.s32.totalorder %v1300, 8
        %vm1349 = vcmp.lt.s32.totalorder %v1301, 8
        %vm1350 = vcmp.lt.s32.totalorder %v1302, 8
        %vm1351 = vcmp.lt.s32.totalorder %v1303, 8
        %vm1352 = vcmp.lt.s32.totalorder %v1304, 8
        %vm1353 = vcmp.lt.s32.totalorder %v1305, 8
        %vm1354 = vcmp.lt.s32.totalorder %v1306, 8
        %vm1355 = vcmp.lt.s32.totalorder %v1307, 8
        %vm1356 = vcmp.lt.s32.totalorder %v1308, 8
        %vm1357 = vcmp.lt.s32.totalorder %v1309, 8
        %vm1358 = vcmp.lt.s32.totalorder %v1310, 8
        %vm1359 = vcmp.lt.s32.totalorder %v1311, 8
        %vm1360 = vcmp.lt.s32.totalorder %v1312, 8
        %vm1361 = vcmp.lt.s32.totalorder %v1313, 8
        %vm1362 = vcmp.lt.s32.totalorder %v1314, 8
        %vm1363 = vcmp.lt.s32.totalorder %v1315, 8
        %vm1364 = vmand %vm1332, %vm1348
        %vm1365 = vmand %vm1333, %vm1349
        %vm1366 = vmand %vm1334, %vm1350
        %vm1367 = vmand %vm1335, %vm1351
        %vm1368 = vmand %vm1336, %vm1352
        %vm1369 = vmand %vm1337, %vm1353
        %vm1370 = vmand %vm1338, %vm1354
        %vm1371 = vmand %vm1339, %vm1355
        %vm1372 = vmand %vm1340, %vm1356
        %vm1373 = vmand %vm1341, %vm1357
        %vm1374 = vmand %vm1342, %vm1358
        %vm1375 = vmand %vm1343, %vm1359
        %vm1376 = vmand %vm1344, %vm1360
        %vm1377 = vmand %vm1345, %vm1361
        %vm1378 = vmand %vm1346, %vm1362
        %vm1379 = vmand %vm1347, %vm1363
        %v1380 = vsel %vm1364, 1, 0
        %v1381 = vsel %vm1365, 1, 0
        %v1382 = vsel %vm1366, 1, 0
        %v1383 = vsel %vm1367, 1, 0
        %v1384 = vsel %vm1368, 1, 0
        %v1385 = vsel %vm1369, 1, 0
        %v1386 = vsel %vm1370, 1, 0
        %v1387 = vsel %vm1371, 1, 0
        %v1388 = vsel %vm1372, 1, 0
        %v1389 = vsel %vm1373, 1, 0
        %v1390 = vsel %vm1374, 1, 0
        %v1391 = vsel %vm1375, 1, 0
        %v1392 = vsel %vm1376, 1, 0
        %v1393 = vsel %vm1377, 1, 0
        %v1394 = vsel %vm1378, 1, 0
        %v1395 = vsel %vm1379, 1, 0
        %vm1396 = vcmp.eq.s32.totalorder %v1380, 1
        %vm1397 = vcmp.eq.s32.totalorder %v1381, 1
        %vm1398 = vcmp.eq.s32.totalorder %v1382, 1
        %vm1399 = vcmp.eq.s32.totalorder %v1383, 1
        %vm1400 = vcmp.eq.s32.totalorder %v1384, 1
        %vm1401 = vcmp.eq.s32.totalorder %v1385, 1
        %vm1402 = vcmp.eq.s32.totalorder %v1386, 1
        %vm1403 = vcmp.eq.s32.totalorder %v1387, 1
        %vm1404 = vcmp.eq.s32.totalorder %v1388, 1
        %vm1405 = vcmp.eq.s32.totalorder %v1389, 1
        %vm1406 = vcmp.eq.s32.totalorder %v1390, 1
        %vm1407 = vcmp.eq.s32.totalorder %v1391, 1
        %vm1408 = vcmp.eq.s32.totalorder %v1392, 1
        %vm1409 = vcmp.eq.s32.totalorder %v1393, 1
        %vm1410 = vcmp.eq.s32.totalorder %v1394, 1
        %vm1411 = vcmp.eq.s32.totalorder %v1395, 1
        %v1412 = vsel %vm1396, %v1284, 0.0
        %v1413 = vsel %vm1397, %v1285, 0.0
        %v1414 = vsel %vm1398, %v1286, 0.0
        %v1415 = vsel %vm1399, %v1287, 0.0
        %v1416 = vsel %vm1400, %v1288, 0.0
        %v1417 = vsel %vm1401, %v1289, 0.0
        %v1418 = vsel %vm1402, %v1290, 0.0
        %v1419 = vsel %vm1403, %v1291, 0.0
        %v1420 = vsel %vm1404, %v1292, 0.0
        %v1421 = vsel %vm1405, %v1293, 0.0
        %v1422 = vsel %vm1406, %v1294, 0.0
        %v1423 = vsel %vm1407, %v1295, 0.0
        %v1424 = vsel %vm1408, %v1296, 0.0
        %v1425 = vsel %vm1409, %v1297, 0.0
        %v1426 = vsel %vm1410, %v1298, 0.0
        %v1427 = vsel %vm1411, %v1299, 0.0
        %v1428 = vld [vmem:[#allocation2 + $0x80] sm:$0xff]
        %vm1429 = vcmp.ge.s32.totalorder %v932, 0
        %vm1430 = vcmp.ge.s32.totalorder %v933, 0
        %vm1431 = vcmp.ge.s32.totalorder %v934, 0
        %vm1432 = vcmp.ge.s32.totalorder %v935, 0
        %vm1433 = vcmp.ge.s32.totalorder %v936, 0
        %vm1434 = vcmp.ge.s32.totalorder %v937, 0
        %vm1435 = vcmp.ge.s32.totalorder %v938, 0
        %vm1436 = vcmp.ge.s32.totalorder %v939, 0
        %vm1437 = vcmp.ge.s32.totalorder %v940, 0
        %vm1438 = vcmp.ge.s32.totalorder %v941, 0
        %vm1439 = vcmp.ge.s32.totalorder %v942, 0
        %vm1440 = vcmp.ge.s32.totalorder %v943, 0
        %vm1441 = vcmp.ge.s32.totalorder %v944, 0
        %vm1442 = vcmp.ge.s32.totalorder %v945, 0
        %vm1443 = vcmp.ge.s32.totalorder %v946, 0
        %vm1444 = vcmp.ge.s32.totalorder %v947, 0
        %vm1445 = vcmp.lt.s32.totalorder %v932, 8
        %vm1446 = vcmp.lt.s32.totalorder %v933, 8
        %vm1447 = vcmp.lt.s32.totalorder %v934, 8
        %vm1448 = vcmp.lt.s32.totalorder %v935, 8
        %vm1449 = vcmp.lt.s32.totalorder %v936, 8
        %vm1450 = vcmp.lt.s32.totalorder %v937, 8
        %vm1451 = vcmp.lt.s32.totalorder %v938, 8
        %vm1452 = vcmp.lt.s32.totalorder %v939, 8
        %vm1453 = vcmp.lt.s32.totalorder %v940, 8
        %vm1454 = vcmp.lt.s32.totalorder %v941, 8
        %vm1455 = vcmp.lt.s32.totalorder %v942, 8
        %vm1456 = vcmp.lt.s32.totalorder %v943, 8
        %vm1457 = vcmp.lt.s32.totalorder %v944, 8
        %vm1458 = vcmp.lt.s32.totalorder %v945, 8
        %vm1459 = vcmp.lt.s32.totalorder %v946, 8
        %vm1460 = vcmp.lt.s32.totalorder %v947, 8
        %vm1461 = vmand %vm1429, %vm1445
        %vm1462 = vmand %vm1430, %vm1446
        %vm1463 = vmand %vm1431, %vm1447
        %vm1464 = vmand %vm1432, %vm1448
        %vm1465 = vmand %vm1433, %vm1449
        %vm1466 = vmand %vm1434, %vm1450
        %vm1467 = vmand %vm1435, %vm1451
        %vm1468 = vmand %vm1436, %vm1452
        %vm1469 = vmand %vm1437, %vm1453
        %vm1470 = vmand %vm1438, %vm1454
        %vm1471 = vmand %vm1439, %vm1455
        %vm1472 = vmand %vm1440, %vm1456
        %vm1473 = vmand %vm1441, %vm1457
        %vm1474 = vmand %vm1442, %vm1458
        %vm1475 = vmand %vm1443, %vm1459
        %vm1476 = vmand %vm1444, %vm1460
        %vm1477 = vmand %vm1461, %vm1044
        %vm1478 = vmand %vm1462, %vm1045
        %vm1479 = vmand %vm1463, %vm1046
        %vm1480 = vmand %vm1464, %vm1047
        %vm1481 = vmand %vm1465, %vm1048
        %vm1482 = vmand %vm1466, %vm1049
        %vm1483 = vmand %vm1467, %vm1050
        %vm1484 = vmand %vm1468, %vm1051
        %vm1485 = vmand %vm1469, %vm1052
        %vm1486 = vmand %vm1470, %vm1053
        %vm1487 = vmand %vm1471, %vm1054
        %vm1488 = vmand %vm1472, %vm1055
        %vm1489 = vmand %vm1473, %vm1056
        %vm1490 = vmand %vm1474, %vm1057
        %vm1491 = vmand %vm1475, %vm1058
        %vm1492 = vmand %vm1476, %vm1059
        %vm1493 = vmand %vm1477, %vm1076
        %vm1494 = vmand %vm1478, %vm1077
        %vm1495 = vmand %vm1479, %vm1078
        %vm1496 = vmand %vm1480, %vm1079
        %vm1497 = vmand %vm1481, %vm1080
        %vm1498 = vmand %vm1482, %vm1081
        %vm1499 = vmand %vm1483, %vm1082
        %vm1500 = vmand %vm1484, %vm1083
        %vm1501 = vmand %vm1485, %vm1084
        %vm1502 = vmand %vm1486, %vm1085
        %vm1503 = vmand %vm1487, %vm1086
        %vm1504 = vmand %vm1488, %vm1087
        %vm1505 = vmand %vm1489, %vm1088
        %vm1506 = vmand %vm1490, %vm1089
        %vm1507 = vmand %vm1491, %vm1090
        %vm1508 = vmand %vm1492, %vm1091
        %v1509 = vsel %vm1493, 1, 0
        %v1510 = vsel %vm1494, 1, 0
        %v1511 = vsel %vm1495, 1, 0
        %v1512 = vsel %vm1496, 1, 0
        %v1513 = vsel %vm1497, 1, 0
        %v1514 = vsel %vm1498, 1, 0
        %v1515 = vsel %vm1499, 1, 0
        %v1516 = vsel %vm1500, 1, 0
        %v1517 = vsel %vm1501, 1, 0
        %v1518 = vsel %vm1502, 1, 0
        %v1519 = vsel %vm1503, 1, 0
        %v1520 = vsel %vm1504, 1, 0
        %v1521 = vsel %vm1505, 1, 0
        %v1522 = vsel %vm1506, 1, 0
        %v1523 = vsel %vm1507, 1, 0
        %v1524 = vsel %vm1508, 1, 0
        %vm1525 = vcmp.eq.s32.totalorder %v1509, 1
        %vm1526 = vcmp.eq.s32.totalorder %v1510, 1
        %vm1527 = vcmp.eq.s32.totalorder %v1511, 1
        %vm1528 = vcmp.eq.s32.totalorder %v1512, 1
        %vm1529 = vcmp.eq.s32.totalorder %v1513, 1
        %vm1530 = vcmp.eq.s32.totalorder %v1514, 1
        %vm1531 = vcmp.eq.s32.totalorder %v1515, 1
        %vm1532 = vcmp.eq.s32.totalorder %v1516, 1
        %vm1533 = vcmp.eq.s32.totalorder %v1517, 1
        %vm1534 = vcmp.eq.s32.totalorder %v1518, 1
        %vm1535 = vcmp.eq.s32.totalorder %v1519, 1
        %vm1536 = vcmp.eq.s32.totalorder %v1520, 1
        %vm1537 = vcmp.eq.s32.totalorder %v1521, 1
        %vm1538 = vcmp.eq.s32.totalorder %v1522, 1
        %vm1539 = vcmp.eq.s32.totalorder %v1523, 1
        %vm1540 = vcmp.eq.s32.totalorder %v1524, 1
        %v1541 = vsel %vm1525, %v949, 0.0
        %v1542 = vsel %vm1526, %v950, 0.0
        %v1543 = vsel %vm1527, %v951, 0.0
        %v1544 = vsel %vm1528, %v952, 0.0
        %v1545 = vsel %vm1529, %v953, 0.0
        %v1546 = vsel %vm1530, %v954, 0.0
        %v1547 = vsel %vm1531, %v955, 0.0
        %v1548 = vsel %vm1532, %v956, 0.0
        %v1549 = vsel %vm1533, %v957, 0.0
        %v1550 = vsel %vm1534, %v958, 0.0
        %v1551 = vsel %vm1535, %v959, 0.0
        %v1552 = vsel %vm1536, %v960, 0.0
        %v1553 = vsel %vm1537, %v961, 0.0
        %v1554 = vsel %vm1538, %v962, 0.0
        %v1555 = vsel %vm1539, %v963, 0.0
        %v1556 = vsel %vm1540, %v1428, 0.0
        %v1557 = vld [vmem:[#allocation2 + $0x81] sm:$0xff]
        %vm1558 = vmand %vm1461, %vm1172
        %vm1559 = vmand %vm1462, %vm1173
        %vm1560 = vmand %vm1463, %vm1174
        %vm1561 = vmand %vm1464, %vm1175
        %vm1562 = vmand %vm1465, %vm1176
        %vm1563 = vmand %vm1466, %vm1177
        %vm1564 = vmand %vm1467, %vm1178
        %vm1565 = vmand %vm1468, %vm1179
        %vm1566 = vmand %vm1469, %vm1180
        %vm1567 = vmand %vm1470, %vm1181
        %vm1568 = vmand %vm1471, %vm1182
        %vm1569 = vmand %vm1472, %vm1183
        %vm1570 = vmand %vm1473, %vm1184
        %vm1571 = vmand %vm1474, %vm1185
        %vm1572 = vmand %vm1475, %vm1186
        %vm1573 = vmand %vm1476, %vm1187
        %vm1574 = vmand %vm1558, %vm1204
        %vm1575 = vmand %vm1559, %vm1205
        %vm1576 = vmand %vm1560, %vm1206
        %vm1577 = vmand %vm1561, %vm1207
        %vm1578 = vmand %vm1562, %vm1208
        %vm1579 = vmand %vm1563, %vm1209
        %vm1580 = vmand %vm1564, %vm1210
        %vm1581 = vmand %vm1565, %vm1211
        %vm1582 = vmand %vm1566, %vm1212
        %vm1583 = vmand %vm1567, %vm1213
        %vm1584 = vmand %vm1568, %vm1214
        %vm1585 = vmand %vm1569, %vm1215
        %vm1586 = vmand %vm1570, %vm1216
        %vm1587 = vmand %vm1571, %vm1217
        %vm1588 = vmand %vm1572, %vm1218
        %vm1589 = vmand %vm1573, %vm1219
        %v1590 = vsel %vm1574, 1, 0
        %v1591 = vsel %vm1575, 1, 0
        %v1592 = vsel %vm1576, 1, 0
        %v1593 = vsel %vm1577, 1, 0
        %v1594 = vsel %vm1578, 1, 0
        %v1595 = vsel %vm1579, 1, 0
        %v1596 = vsel %vm1580, 1, 0
        %v1597 = vsel %vm1581, 1, 0
        %v1598 = vsel %vm1582, 1, 0
        %v1599 = vsel %vm1583, 1, 0
        %v1600 = vsel %vm1584, 1, 0
        %v1601 = vsel %vm1585, 1, 0
        %v1602 = vsel %vm1586, 1, 0
        %v1603 = vsel %vm1587, 1, 0
        %v1604 = vsel %vm1588, 1, 0
        %v1605 = vsel %vm1589, 1, 0
        %vm1606 = vcmp.eq.s32.totalorder %v1590, 1
        %vm1607 = vcmp.eq.s32.totalorder %v1591, 1
        %vm1608 = vcmp.eq.s32.totalorder %v1592, 1
        %vm1609 = vcmp.eq.s32.totalorder %v1593, 1
        %vm1610 = vcmp.eq.s32.totalorder %v1594, 1
        %vm1611 = vcmp.eq.s32.totalorder %v1595, 1
        %vm1612 = vcmp.eq.s32.totalorder %v1596, 1
        %vm1613 = vcmp.eq.s32.totalorder %v1597, 1
        %vm1614 = vcmp.eq.s32.totalorder %v1598, 1
        %vm1615 = vcmp.eq.s32.totalorder %v1599, 1
        %vm1616 = vcmp.eq.s32.totalorder %v1600, 1
        %vm1617 = vcmp.eq.s32.totalorder %v1601, 1
        %vm1618 = vcmp.eq.s32.totalorder %v1602, 1
        %vm1619 = vcmp.eq.s32.totalorder %v1603, 1
        %vm1620 = vcmp.eq.s32.totalorder %v1604, 1
        %vm1621 = vcmp.eq.s32.totalorder %v1605, 1
        %v1622 = vsel %vm1606, %v1157, 0.0
        %v1623 = vsel %vm1607, %v1158, 0.0
        %v1624 = vsel %vm1608, %v1159, 0.0
        %v1625 = vsel %vm1609, %v1160, 0.0
        %v1626 = vsel %vm1610, %v1161, 0.0
        %v1627 = vsel %vm1611, %v1162, 0.0
        %v1628 = vsel %vm1612, %v1163, 0.0
        %v1629 = vsel %vm1613, %v1164, 0.0
        %v1630 = vsel %vm1614, %v1165, 0.0
        %v1631 = vsel %vm1615, %v1166, 0.0
        %v1632 = vsel %vm1616, %v1167, 0.0
        %v1633 = vsel %vm1617, %v1168, 0.0
        %v1634 = vsel %vm1618, %v1169, 0.0
        %v1635 = vsel %vm1619, %v1170, 0.0
        %v1636 = vsel %vm1620, %v1171, 0.0
        %v1637 = vsel %vm1621, %v1557, 0.0
        %v1638 = vld [vmem:[#allocation2 + $0x82] sm:$0xff]
        %vm1639 = vmand %vm1461, %vm1316
        %vm1640 = vmand %vm1462, %vm1317
        %vm1641 = vmand %vm1463, %vm1318
        %vm1642 = vmand %vm1464, %vm1319
        %vm1643 = vmand %vm1465, %vm1320
        %vm1644 = vmand %vm1466, %vm1321
        %vm1645 = vmand %vm1467, %vm1322
        %vm1646 = vmand %vm1468, %vm1323
        %vm1647 = vmand %vm1469, %vm1324
        %vm1648 = vmand %vm1470, %vm1325
        %vm1649 = vmand %vm1471, %vm1326
        %vm1650 = vmand %vm1472, %vm1327
        %vm1651 = vmand %vm1473, %vm1328
        %vm1652 = vmand %vm1474, %vm1329
        %vm1653 = vmand %vm1475, %vm1330
        %vm1654 = vmand %vm1476, %vm1331
        %vm1655 = vmand %vm1639, %vm1348
        %vm1656 = vmand %vm1640, %vm1349
        %vm1657 = vmand %vm1641, %vm1350
        %vm1658 = vmand %vm1642, %vm1351
        %vm1659 = vmand %vm1643, %vm1352
        %vm1660 = vmand %vm1644, %vm1353
        %vm1661 = vmand %vm1645, %vm1354
        %vm1662 = vmand %vm1646, %vm1355
        %vm1663 = vmand %vm1647, %vm1356
        %vm1664 = vmand %vm1648, %vm1357
        %vm1665 = vmand %vm1649, %vm1358
        %vm1666 = vmand %vm1650, %vm1359
        %vm1667 = vmand %vm1651, %vm1360
        %vm1668 = vmand %vm1652, %vm1361
        %vm1669 = vmand %vm1653, %vm1362
        %vm1670 = vmand %vm1654, %vm1363
        %v1671 = vsel %vm1655, 1, 0
        %v1672 = vsel %vm1656, 1, 0
        %v1673 = vsel %vm1657, 1, 0
        %v1674 = vsel %vm1658, 1, 0
        %v1675 = vsel %vm1659, 1, 0
        %v1676 = vsel %vm1660, 1, 0
        %v1677 = vsel %vm1661, 1, 0
        %v1678 = vsel %vm1662, 1, 0
        %v1679 = vsel %vm1663, 1, 0
        %v1680 = vsel %vm1664, 1, 0
        %v1681 = vsel %vm1665, 1, 0
        %v1682 = vsel %vm1666, 1, 0
        %v1683 = vsel %vm1667, 1, 0
        %v1684 = vsel %vm1668, 1, 0
        %v1685 = vsel %vm1669, 1, 0
        %v1686 = vsel %vm1670, 1, 0
        %vm1687 = vcmp.eq.s32.totalorder %v1671, 1
        %vm1688 = vcmp.eq.s32.totalorder %v1672, 1
        %vm1689 = vcmp.eq.s32.totalorder %v1673, 1
        %vm1690 = vcmp.eq.s32.totalorder %v1674, 1
        %vm1691 = vcmp.eq.s32.totalorder %v1675, 1
        %vm1692 = vcmp.eq.s32.totalorder %v1676, 1
        %vm1693 = vcmp.eq.s32.totalorder %v1677, 1
        %vm1694 = vcmp.eq.s32.totalorder %v1678, 1
        %vm1695 = vcmp.eq.s32.totalorder %v1679, 1
        %vm1696 = vcmp.eq.s32.totalorder %v1680, 1
        %vm1697 = vcmp.eq.s32.totalorder %v1681, 1
        %vm1698 = vcmp.eq.s32.totalorder %v1682, 1
        %vm1699 = vcmp.eq.s32.totalorder %v1683, 1
        %vm1700 = vcmp.eq.s32.totalorder %v1684, 1
        %vm1701 = vcmp.eq.s32.totalorder %v1685, 1
        %vm1702 = vcmp.eq.s32.totalorder %v1686, 1
        %v1703 = vsel %vm1687, %v1285, 0.0
        %v1704 = vsel %vm1688, %v1286, 0.0
        %v1705 = vsel %vm1689, %v1287, 0.0
        %v1706 = vsel %vm1690, %v1288, 0.0
        %v1707 = vsel %vm1691, %v1289, 0.0
        %v1708 = vsel %vm1692, %v1290, 0.0
        %v1709 = vsel %vm1693, %v1291, 0.0
        %v1710 = vsel %vm1694, %v1292, 0.0
        %v1711 = vsel %vm1695, %v1293, 0.0
        %v1712 = vsel %vm1696, %v1294, 0.0
        %v1713 = vsel %vm1697, %v1295, 0.0
        %v1714 = vsel %vm1698, %v1296, 0.0
        %v1715 = vsel %vm1699, %v1297, 0.0
        %v1716 = vsel %vm1700, %v1298, 0.0
        %v1717 = vsel %vm1701, %v1299, 0.0
        %v1718 = vsel %vm1702, %v1638, 0.0
        %v1719 = vld [vmem:[#allocation2 + $0x88] sm:$0xff]
        %v1720 = vadd.s32 %v932, 1
        %v1721 = vadd.s32 %v933, 1
        %v1722 = vadd.s32 %v934, 1
        %v1723 = vadd.s32 %v935, 1
        %v1724 = vadd.s32 %v936, 1
        %v1725 = vadd.s32 %v937, 1
        %v1726 = vadd.s32 %v938, 1
        %v1727 = vadd.s32 %v939, 1
        %v1728 = vadd.s32 %v940, 1
        %v1729 = vadd.s32 %v941, 1
        %v1730 = vadd.s32 %v942, 1
        %v1731 = vadd.s32 %v943, 1
        %v1732 = vadd.s32 %v944, 1
        %v1733 = vadd.s32 %v945, 1
        %v1734 = vadd.s32 %v946, 1
        %v1735 = vadd.s32 %v947, 1
        %vm1736 = vcmp.ge.s32.totalorder %v1720, 0
        %vm1737 = vcmp.ge.s32.totalorder %v1721, 0
        %vm1738 = vcmp.ge.s32.totalorder %v1722, 0
        %vm1739 = vcmp.ge.s32.totalorder %v1723, 0
        %vm1740 = vcmp.ge.s32.totalorder %v1724, 0
        %vm1741 = vcmp.ge.s32.totalorder %v1725, 0
        %vm1742 = vcmp.ge.s32.totalorder %v1726, 0
        %vm1743 = vcmp.ge.s32.totalorder %v1727, 0
        %vm1744 = vcmp.ge.s32.totalorder %v1728, 0
        %vm1745 = vcmp.ge.s32.totalorder %v1729, 0
        %vm1746 = vcmp.ge.s32.totalorder %v1730, 0
        %vm1747 = vcmp.ge.s32.totalorder %v1731, 0
        %vm1748 = vcmp.ge.s32.totalorder %v1732, 0
        %vm1749 = vcmp.ge.s32.totalorder %v1733, 0
        %vm1750 = vcmp.ge.s32.totalorder %v1734, 0
        %vm1751 = vcmp.ge.s32.totalorder %v1735, 0
        %vm1752 = vcmp.lt.s32.totalorder %v1720, 8
        %vm1753 = vcmp.lt.s32.totalorder %v1721, 8
        %vm1754 = vcmp.lt.s32.totalorder %v1722, 8
        %vm1755 = vcmp.lt.s32.totalorder %v1723, 8
        %vm1756 = vcmp.lt.s32.totalorder %v1724, 8
        %vm1757 = vcmp.lt.s32.totalorder %v1725, 8
        %vm1758 = vcmp.lt.s32.totalorder %v1726, 8
        %vm1759 = vcmp.lt.s32.totalorder %v1727, 8
        %vm1760 = vcmp.lt.s32.totalorder %v1728, 8
        %vm1761 = vcmp.lt.s32.totalorder %v1729, 8
        %vm1762 = vcmp.lt.s32.totalorder %v1730, 8
        %vm1763 = vcmp.lt.s32.totalorder %v1731, 8
        %vm1764 = vcmp.lt.s32.totalorder %v1732, 8
        %vm1765 = vcmp.lt.s32.totalorder %v1733, 8
        %vm1766 = vcmp.lt.s32.totalorder %v1734, 8
        %vm1767 = vcmp.lt.s32.totalorder %v1735, 8
        %vm1768 = vmand %vm1736, %vm1752
        %vm1769 = vmand %vm1737, %vm1753
        %vm1770 = vmand %vm1738, %vm1754
        %vm1771 = vmand %vm1739, %vm1755
        %vm1772 = vmand %vm1740, %vm1756
        %vm1773 = vmand %vm1741, %vm1757
        %vm1774 = vmand %vm1742, %vm1758
        %vm1775 = vmand %vm1743, %vm1759
        %vm1776 = vmand %vm1744, %vm1760
        %vm1777 = vmand %vm1745, %vm1761
        %vm1778 = vmand %vm1746, %vm1762
        %vm1779 = vmand %vm1747, %vm1763
        %vm1780 = vmand %vm1748, %vm1764
        %vm1781 = vmand %vm1749, %vm1765
        %vm1782 = vmand %vm1750, %vm1766
        %vm1783 = vmand %vm1751, %vm1767
        %vm1784 = vmand %vm1768, %vm1044
        %vm1785 = vmand %vm1769, %vm1045
        %vm1786 = vmand %vm1770, %vm1046
        %vm1787 = vmand %vm1771, %vm1047
        %vm1788 = vmand %vm1772, %vm1048
        %vm1789 = vmand %vm1773, %vm1049
        %vm1790 = vmand %vm1774, %vm1050
        %vm1791 = vmand %vm1775, %vm1051
        %vm1792 = vmand %vm1776, %vm1052
        %vm1793 = vmand %vm1777, %vm1053
        %vm1794 = vmand %vm1778, %vm1054
        %vm1795 = vmand %vm1779, %vm1055
        %vm1796 = vmand %vm1780, %vm1056
        %vm1797 = vmand %vm1781, %vm1057
        %vm1798 = vmand %vm1782, %vm1058
        %vm1799 = vmand %vm1783, %vm1059
        %vm1800 = vmand %vm1784, %vm1076
        %vm1801 = vmand %vm1785, %vm1077
        %vm1802 = vmand %vm1786, %vm1078
        %vm1803 = vmand %vm1787, %vm1079
        %vm1804 = vmand %vm1788, %vm1080
        %vm1805 = vmand %vm1789, %vm1081
        %vm1806 = vmand %vm1790, %vm1082
        %vm1807 = vmand %vm1791, %vm1083
        %vm1808 = vmand %vm1792, %vm1084
        %vm1809 = vmand %vm1793, %vm1085
        %vm1810 = vmand %vm1794, %vm1086
        %vm1811 = vmand %vm1795, %vm1087
        %vm1812 = vmand %vm1796, %vm1088
        %vm1813 = vmand %vm1797, %vm1089
        %vm1814 = vmand %vm1798, %vm1090
        %vm1815 = vmand %vm1799, %vm1091
        %v1816 = vsel %vm1800, 1, 0
        %v1817 = vsel %vm1801, 1, 0
        %v1818 = vsel %vm1802, 1, 0
        %v1819 = vsel %vm1803, 1, 0
        %v1820 = vsel %vm1804, 1, 0
        %v1821 = vsel %vm1805, 1, 0
        %v1822 = vsel %vm1806, 1, 0
        %v1823 = vsel %vm1807, 1, 0
        %v1824 = vsel %vm1808, 1, 0
        %v1825 = vsel %vm1809, 1, 0
        %v1826 = vsel %vm1810, 1, 0
        %v1827 = vsel %vm1811, 1, 0
        %v1828 = vsel %vm1812, 1, 0
        %v1829 = vsel %vm1813, 1, 0
        %v1830 = vsel %vm1814, 1, 0
        %v1831 = vsel %vm1815, 1, 0
        %vm1832 = vcmp.eq.s32.totalorder %v1816, 1
        %vm1833 = vcmp.eq.s32.totalorder %v1817, 1
        %vm1834 = vcmp.eq.s32.totalorder %v1818, 1
        %vm1835 = vcmp.eq.s32.totalorder %v1819, 1
        %vm1836 = vcmp.eq.s32.totalorder %v1820, 1
        %vm1837 = vcmp.eq.s32.totalorder %v1821, 1
        %vm1838 = vcmp.eq.s32.totalorder %v1822, 1
        %vm1839 = vcmp.eq.s32.totalorder %v1823, 1
        %vm1840 = vcmp.eq.s32.totalorder %v1824, 1
        %vm1841 = vcmp.eq.s32.totalorder %v1825, 1
        %vm1842 = vcmp.eq.s32.totalorder %v1826, 1
        %vm1843 = vcmp.eq.s32.totalorder %v1827, 1
        %vm1844 = vcmp.eq.s32.totalorder %v1828, 1
        %vm1845 = vcmp.eq.s32.totalorder %v1829, 1
        %vm1846 = vcmp.eq.s32.totalorder %v1830, 1
        %vm1847 = vcmp.eq.s32.totalorder %v1831, 1
        %v1848 = vsel %vm1832, %v950, 0.0
        %v1849 = vsel %vm1833, %v951, 0.0
        %v1850 = vsel %vm1834, %v952, 0.0
        %v1851 = vsel %vm1835, %v953, 0.0
        %v1852 = vsel %vm1836, %v954, 0.0
        %v1853 = vsel %vm1837, %v955, 0.0
        %v1854 = vsel %vm1838, %v956, 0.0
        %v1855 = vsel %vm1839, %v957, 0.0
        %v1856 = vsel %vm1840, %v958, 0.0
        %v1857 = vsel %vm1841, %v959, 0.0
        %v1858 = vsel %vm1842, %v960, 0.0
        %v1859 = vsel %vm1843, %v961, 0.0
        %v1860 = vsel %vm1844, %v962, 0.0
        %v1861 = vsel %vm1845, %v963, 0.0
        %v1862 = vsel %vm1846, %v1428, 0.0
        %v1863 = vsel %vm1847, %v1719, 0.0
        %v1864 = vld [vmem:[#allocation2 + $0x89] sm:$0xff]
        %vm1865 = vmand %vm1768, %vm1172
        %vm1866 = vmand %vm1769, %vm1173
        %vm1867 = vmand %vm1770, %vm1174
        %vm1868 = vmand %vm1771, %vm1175
        %vm1869 = vmand %vm1772, %vm1176
        %vm1870 = vmand %vm1773, %vm1177
        %vm1871 = vmand %vm1774, %vm1178
        %vm1872 = vmand %vm1775, %vm1179
        %vm1873 = vmand %vm1776, %vm1180
        %vm1874 = vmand %vm1777, %vm1181
        %vm1875 = vmand %vm1778, %vm1182
        %vm1876 = vmand %vm1779, %vm1183
        %vm1877 = vmand %vm1780, %vm1184
        %vm1878 = vmand %vm1781, %vm1185
        %vm1879 = vmand %vm1782, %vm1186
        %vm1880 = vmand %vm1783, %vm1187
        %vm1881 = vmand %vm1865, %vm1204
        %vm1882 = vmand %vm1866, %vm1205
        %vm1883 = vmand %vm1867, %vm1206
        %vm1884 = vmand %vm1868, %vm1207
        %vm1885 = vmand %vm1869, %vm1208
        %vm1886 = vmand %vm1870, %vm1209
        %vm1887 = vmand %vm1871, %vm1210
        %vm1888 = vmand %vm1872, %vm1211
        %vm1889 = vmand %vm1873, %vm1212
        %vm1890 = vmand %vm1874, %vm1213
        %vm1891 = vmand %vm1875, %vm1214
        %vm1892 = vmand %vm1876, %vm1215
        %vm1893 = vmand %vm1877, %vm1216
        %vm1894 = vmand %vm1878, %vm1217
        %vm1895 = vmand %vm1879, %vm1218
        %vm1896 = vmand %vm1880, %vm1219
        %v1897 = vsel %vm1881, 1, 0
        %v1898 = vsel %vm1882, 1, 0
        %v1899 = vsel %vm1883, 1, 0
        %v1900 = vsel %vm1884, 1, 0
        %v1901 = vsel %vm1885, 1, 0
        %v1902 = vsel %vm1886, 1, 0
        %v1903 = vsel %vm1887, 1, 0
        %v1904 = vsel %vm1888, 1, 0
        %v1905 = vsel %vm1889, 1, 0
        %v1906 = vsel %vm1890, 1, 0
        %v1907 = vsel %vm1891, 1, 0
        %v1908 = vsel %vm1892, 1, 0
        %v1909 = vsel %vm1893, 1, 0
        %v1910 = vsel %vm1894, 1, 0
        %v1911 = vsel %vm1895, 1, 0
        %v1912 = vsel %vm1896, 1, 0
        %vm1913 = vcmp.eq.s32.totalorder %v1897, 1
        %vm1914 = vcmp.eq.s32.totalorder %v1898, 1
        %vm1915 = vcmp.eq.s32.totalorder %v1899, 1
        %vm1916 = vcmp.eq.s32.totalorder %v1900, 1
        %vm1917 = vcmp.eq.s32.totalorder %v1901, 1
        %vm1918 = vcmp.eq.s32.totalorder %v1902, 1
        %vm1919 = vcmp.eq.s32.totalorder %v1903, 1
        %vm1920 = vcmp.eq.s32.totalorder %v1904, 1
        %vm1921 = vcmp.eq.s32.totalorder %v1905, 1
        %vm1922 = vcmp.eq.s32.totalorder %v1906, 1
        %vm1923 = vcmp.eq.s32.totalorder %v1907, 1
        %vm1924 = vcmp.eq.s32.totalorder %v1908, 1
        %vm1925 = vcmp.eq.s32.totalorder %v1909, 1
        %vm1926 = vcmp.eq.s32.totalorder %v1910, 1
        %vm1927 = vcmp.eq.s32.totalorder %v1911, 1
        %vm1928 = vcmp.eq.s32.totalorder %v1912, 1
        %v1929 = vsel %vm1913, %v1158, 0.0
        %v1930 = vsel %vm1914, %v1159, 0.0
        %v1931 = vsel %vm1915, %v1160, 0.0
        %v1932 = vsel %vm1916, %v1161, 0.0
        %v1933 = vsel %vm1917, %v1162, 0.0
        %v1934 = vsel %vm1918, %v1163, 0.0
        %v1935 = vsel %vm1919, %v1164, 0.0
        %v1936 = vsel %vm1920, %v1165, 0.0
        %v1937 = vsel %vm1921, %v1166, 0.0
        %v1938 = vsel %vm1922, %v1167, 0.0
        %v1939 = vsel %vm1923, %v1168, 0.0
        %v1940 = vsel %vm1924, %v1169, 0.0
        %v1941 = vsel %vm1925, %v1170, 0.0
        %v1942 = vsel %vm1926, %v1171, 0.0
        %v1943 = vsel %vm1927, %v1557, 0.0
        %v1944 = vsel %vm1928, %v1864, 0.0
        %v1945 = vld [vmem:[#allocation2 + $0x12] sm:$0xff]
        %v1946 = vld [vmem:[#allocation2 + $0x1a] sm:$0xff]
        %v1947 = vld [vmem:[#allocation2 + $0x22] sm:$0xff]
        %v1948 = vld [vmem:[#allocation2 + $0x2a] sm:$0xff]
        %v1949 = vld [vmem:[#allocation2 + $0x32] sm:$0xff]
        %v1950 = vld [vmem:[#allocation2 + $0x3a] sm:$0xff]
        %v1951 = vld [vmem:[#allocation2 + $0x42] sm:$0xff]
        %v1952 = vld [vmem:[#allocation2 + $0x4a] sm:$0xff]
        %v1953 = vld [vmem:[#allocation2 + $0x52] sm:$0xff]
        %v1954 = vld [vmem:[#allocation2 + $0x5a] sm:$0xff]
        %v1955 = vld [vmem:[#allocation2 + $0x62] sm:$0xff]
        %v1956 = vld [vmem:[#allocation2 + $0x6a] sm:$0xff]
        %v1957 = vld [vmem:[#allocation2 + $0x72] sm:$0xff]
        %v1958 = vld [vmem:[#allocation2 + $0x7a] sm:$0xff]
        %v1959 = vld [vmem:[#allocation2 + $0x82] sm:$0xff]
        %v1960 = vld [vmem:[#allocation2 + $0x8a] sm:$0xff]
        %vm1961 = vmand %vm1768, %vm1316
        %vm1962 = vmand %vm1769, %vm1317
        %vm1963 = vmand %vm1770, %vm1318
        %vm1964 = vmand %vm1771, %vm1319
        %vm1965 = vmand %vm1772, %vm1320
        %vm1966 = vmand %vm1773, %vm1321
        %vm1967 = vmand %vm1774, %vm1322
        %vm1968 = vmand %vm1775, %vm1323
        %vm1969 = vmand %vm1776, %vm1324
        %vm1970 = vmand %vm1777, %vm1325
        %vm1971 = vmand %vm1778, %vm1326
        %vm1972 = vmand %vm1779, %vm1327
        %vm1973 = vmand %vm1780, %vm1328
        %vm1974 = vmand %vm1781, %vm1329
        %vm1975 = vmand %vm1782, %vm1330
        %vm1976 = vmand %vm1783, %vm1331
        %vm1977 = vmand %vm1961, %vm1348
        %vm1978 = vmand %vm1962, %vm1349
        %vm1979 = vmand %vm1963, %vm1350
        %vm1980 = vmand %vm1964, %vm1351
        %vm1981 = vmand %vm1965, %vm1352
        %vm1982 = vmand %vm1966, %vm1353
        %vm1983 = vmand %vm1967, %vm1354
        %vm1984 = vmand %vm1968, %vm1355
        %vm1985 = vmand %vm1969, %vm1356
        %vm1986 = vmand %vm1970, %vm1357
        %vm1987 = vmand %vm1971, %vm1358
        %vm1988 = vmand %vm1972, %vm1359
        %vm1989 = vmand %vm1973, %vm1360
        %vm1990 = vmand %vm1974, %vm1361
        %vm1991 = vmand %vm1975, %vm1362
        %vm1992 = vmand %vm1976, %vm1363
        %v1993 = vsel %vm1977, 1, 0
        %v1994 = vsel %vm1978, 1, 0
        %v1995 = vsel %vm1979, 1, 0
        %v1996 = vsel %vm1980, 1, 0
        %v1997 = vsel %vm1981, 1, 0
        %v1998 = vsel %vm1982, 1, 0
        %v1999 = vsel %vm1983, 1, 0
        %v2000 = vsel %vm1984, 1, 0
        %v2001 = vsel %vm1985, 1, 0
        %v2002 = vsel %vm1986, 1, 0
        %v2003 = vsel %vm1987, 1, 0
        %v2004 = vsel %vm1988, 1, 0
        %v2005 = vsel %vm1989, 1, 0
        %v2006 = vsel %vm1990, 1, 0
        %v2007 = vsel %vm1991, 1, 0
        %v2008 = vsel %vm1992, 1, 0
        %vm2009 = vcmp.eq.s32.totalorder %v1993, 1
        %vm2010 = vcmp.eq.s32.totalorder %v1994, 1
        %vm2011 = vcmp.eq.s32.totalorder %v1995, 1
        %vm2012 = vcmp.eq.s32.totalorder %v1996, 1
        %vm2013 = vcmp.eq.s32.totalorder %v1997, 1
        %vm2014 = vcmp.eq.s32.totalorder %v1998, 1
        %vm2015 = vcmp.eq.s32.totalorder %v1999, 1
        %vm2016 = vcmp.eq.s32.totalorder %v2000, 1
        %vm2017 = vcmp.eq.s32.totalorder %v2001, 1
        %vm2018 = vcmp.eq.s32.totalorder %v2002, 1
        %vm2019 = vcmp.eq.s32.totalorder %v2003, 1
        %vm2020 = vcmp.eq.s32.totalorder %v2004, 1
        %vm2021 = vcmp.eq.s32.totalorder %v2005, 1
        %vm2022 = vcmp.eq.s32.totalorder %v2006, 1
        %vm2023 = vcmp.eq.s32.totalorder %v2007, 1
        %vm2024 = vcmp.eq.s32.totalorder %v2008, 1
        %v2025 = vsel %vm2009, %v1945, 0.0
        %v2026 = vsel %vm2010, %v1946, 0.0
        %v2027 = vsel %vm2011, %v1947, 0.0
        %v2028 = vsel %vm2012, %v1948, 0.0
        %v2029 = vsel %vm2013, %v1949, 0.0
        %v2030 = vsel %vm2014, %v1950, 0.0
        %v2031 = vsel %vm2015, %v1951, 0.0
        %v2032 = vsel %vm2016, %v1952, 0.0
        %v2033 = vsel %vm2017, %v1953, 0.0
        %v2034 = vsel %vm2018, %v1954, 0.0
        %v2035 = vsel %vm2019, %v1955, 0.0
        %v2036 = vsel %vm2020, %v1956, 0.0
        %v2037 = vsel %vm2021, %v1957, 0.0
        %v2038 = vsel %vm2022, %v1958, 0.0
        %v2039 = vsel %vm2023, %v1959, 0.0
        %v2040 = vsel %vm2024, %v1960, 0.0
        %v2041 = vld [vmem:[%s511] sm:$0xff]
        %v2042 = vld [vmem:[%s511 + $0x8] sm:$0xff]
        %v2043 = vld [vmem:[%s511 + $0x10] sm:$0xff]
        %v2044 = vld [vmem:[%s511 + $0x18] sm:$0xff]
        %v2045 = vld [vmem:[%s511 + $0x20] sm:$0xff]
        %v2046 = vld [vmem:[%s511 + $0x28] sm:$0xff]
        %v2047 = vld [vmem:[%s511 + $0x30] sm:$0xff]
        %v2048 = vld [vmem:[%s511 + $0x38] sm:$0xff]
        %v2049 = vld [vmem:[%s511 + $0x40] sm:$0xff]
        %v2050 = vld [vmem:[%s511 + $0x48] sm:$0xff]
        %v2051 = vld [vmem:[%s511 + $0x50] sm:$0xff]
        %v2052 = vld [vmem:[%s511 + $0x58] sm:$0xff]
        %v2053 = vld [vmem:[%s511 + $0x60] sm:$0xff]
        %v2054 = vld [vmem:[%s511 + $0x68] sm:$0xff]
        %v2055 = vld [vmem:[%s511 + $0x70] sm:$0xff]
        %v2056 = vld [vmem:[%s511 + $0x78] sm:$0xff]
        %v2057 = vld [vmem:[%s511 + $0x80] sm:$0xff]
        %v2058 = vld [vmem:[%s511 + $0x88] sm:$0xff]
        %v2059 = vld [vmem:[%s511 + $0x90] sm:$0xff]
        %v2060 = vld [vmem:[%s511 + $0x98] sm:$0xff]
        %v2061 = vld [vmem:[%s511 + $0xa0] sm:$0xff]
        %v2062 = vld [vmem:[%s511 + $0xa8] sm:$0xff]
        %v2063 = vld [vmem:[%s511 + $0xb0] sm:$0xff]
        %v2064 = vld [vmem:[%s511 + $0xb8] sm:$0xff]
        %v2065 = vld [vmem:[%s511 + $0xc0] sm:$0xff]
        %v2066 = vld [vmem:[%s511 + $0xc8] sm:$0xff]
        %v2067 = vld [vmem:[%s511 + $0xd0] sm:$0xff]
        %v2068 = vld [vmem:[%s511 + $0xd8] sm:$0xff]
        %v2069 = vld [vmem:[%s511 + $0xe0] sm:$0xff]
        %v2070 = vld [vmem:[%s511 + $0xe8] sm:$0xff]
        %v2071 = vld [vmem:[%s511 + $0xf0] sm:$0xff]
        %v2072 = vld [vmem:[%s511 + $0xf8] sm:$0xff]
        %v2073 = vld [vmem:[%s511 + $0x100] sm:$0xff]
        %v2074 = vld [vmem:[%s511 + $0x108] sm:$0xff]
        %v2075 = vld [vmem:[%s511 + $0x110] sm:$0xff]
        %v2076 = vld [vmem:[%s511 + $0x118] sm:$0xff]
        %v2077 = vld [vmem:[%s511 + $0x120] sm:$0xff]
        %v2078 = vld [vmem:[%s511 + $0x128] sm:$0xff]
        %v2079 = vld [vmem:[%s511 + $0x130] sm:$0xff]
        %v2080 = vld [vmem:[%s511 + $0x138] sm:$0xff]
        %v2081 = vld [vmem:[%s511 + $0x140] sm:$0xff]
        %v2082 = vld [vmem:[%s511 + $0x148] sm:$0xff]
        %v2083 = vld [vmem:[%s511 + $0x150] sm:$0xff]
        %v2084 = vld [vmem:[%s511 + $0x158] sm:$0xff]
        %v2085 = vld [vmem:[%s511 + $0x160] sm:$0xff]
        %v2086 = vld [vmem:[%s511 + $0x168] sm:$0xff]
        %v2087 = vld [vmem:[%s511 + $0x170] sm:$0xff]
        %v2088 = vld [vmem:[%s511 + $0x178] sm:$0xff]
        %v2089 = vld [vmem:[%s511 + $0x180] sm:$0xff]
        %v2090 = vld [vmem:[%s511 + $0x188] sm:$0xff]
        %v2091 = vld [vmem:[%s511 + $0x190] sm:$0xff]
        %v2092 = vld [vmem:[%s511 + $0x198] sm:$0xff]
        %v2093 = vld [vmem:[%s511 + $0x1a0] sm:$0xff]
        %v2094 = vld [vmem:[%s511 + $0x1a8] sm:$0xff]
        %v2095 = vld [vmem:[%s511 + $0x1b0] sm:$0xff]
        %v2096 = vld [vmem:[%s511 + $0x1b8] sm:$0xff]
        %v2097 = vld [vmem:[%s511 + $0x1c0] sm:$0xff]
        %v2098 = vld [vmem:[%s511 + $0x1c8] sm:$0xff]
        %v2099 = vld [vmem:[%s511 + $0x1d0] sm:$0xff]
        %v2100 = vld [vmem:[%s511 + $0x1d8] sm:$0xff]
        %v2101 = vld [vmem:[%s511 + $0x1e0] sm:$0xff]
        %v2102 = vld [vmem:[%s511 + $0x1e8] sm:$0xff]
        %v2103 = vld [vmem:[%s511 + $0x1f0] sm:$0xff]
        %v2104 = vld [vmem:[%s511 + $0x1f8] sm:$0xff]
        %v2105 = vld [vmem:[%s511 + $0x200] sm:$0xff]
        %v2106 = vld [vmem:[%s511 + $0x208] sm:$0xff]
        %v2107 = vld [vmem:[%s511 + $0x210] sm:$0xff]
        %v2108 = vld [vmem:[%s511 + $0x218] sm:$0xff]
        %v2109 = vld [vmem:[%s511 + $0x220] sm:$0xff]
        %v2110 = vld [vmem:[%s511 + $0x228] sm:$0xff]
        %v2111 = vld [vmem:[%s511 + $0x230] sm:$0xff]
        %v2112 = vld [vmem:[%s511 + $0x238] sm:$0xff]
        %v2113 = vld [vmem:[%s511 + $0x240] sm:$0xff]
        %v2114 = vld [vmem:[%s511 + $0x248] sm:$0xff]
        %v2115 = vld [vmem:[%s511 + $0x250] sm:$0xff]
        %v2116 = vld [vmem:[%s511 + $0x258] sm:$0xff]
        %v2117 = vld [vmem:[%s511 + $0x260] sm:$0xff]
        %v2118 = vld [vmem:[%s511 + $0x268] sm:$0xff]
        %v2119 = vld [vmem:[%s511 + $0x270] sm:$0xff]
        %v2120 = vld [vmem:[%s511 + $0x278] sm:$0xff]
        %v2121 = vld [vmem:[%s511 + $0x280] sm:$0xff]
        %v2122 = vld [vmem:[%s511 + $0x288] sm:$0xff]
        %v2123 = vld [vmem:[%s511 + $0x290] sm:$0xff]
        %v2124 = vld [vmem:[%s511 + $0x298] sm:$0xff]
        %v2125 = vld [vmem:[%s511 + $0x2a0] sm:$0xff]
        %v2126 = vld [vmem:[%s511 + $0x2a8] sm:$0xff]
        %v2127 = vld [vmem:[%s511 + $0x2b0] sm:$0xff]
        %v2128 = vld [vmem:[%s511 + $0x2b8] sm:$0xff]
        %v2129 = vld [vmem:[%s511 + $0x2c0] sm:$0xff]
        %v2130 = vld [vmem:[%s511 + $0x2c8] sm:$0xff]
        %v2131 = vld [vmem:[%s511 + $0x2d0] sm:$0xff]
        %v2132 = vld [vmem:[%s511 + $0x2d8] sm:$0xff]
        %v2133 = vld [vmem:[%s511 + $0x2e0] sm:$0xff]
        %v2134 = vld [vmem:[%s511 + $0x2e8] sm:$0xff]
        %v2135 = vld [vmem:[%s511 + $0x2f0] sm:$0xff]
        %v2136 = vld [vmem:[%s511 + $0x2f8] sm:$0xff]
        %v2137 = vld [vmem:[%s511 + $0x300] sm:$0xff]
        %v2138 = vld [vmem:[%s511 + $0x308] sm:$0xff]
        %v2139 = vld [vmem:[%s511 + $0x310] sm:$0xff]
        %v2140 = vld [vmem:[%s511 + $0x318] sm:$0xff]
        %v2141 = vld [vmem:[%s511 + $0x320] sm:$0xff]
        %v2142 = vld [vmem:[%s511 + $0x328] sm:$0xff]
        %v2143 = vld [vmem:[%s511 + $0x330] sm:$0xff]
        %v2144 = vld [vmem:[%s511 + $0x338] sm:$0xff]
        %v2145 = vld [vmem:[%s511 + $0x340] sm:$0xff]
        %v2146 = vld [vmem:[%s511 + $0x348] sm:$0xff]
        %v2147 = vld [vmem:[%s511 + $0x350] sm:$0xff]
        %v2148 = vld [vmem:[%s511 + $0x358] sm:$0xff]
        %v2149 = vld [vmem:[%s511 + $0x360] sm:$0xff]
        %v2150 = vld [vmem:[%s511 + $0x368] sm:$0xff]
        %v2151 = vld [vmem:[%s511 + $0x370] sm:$0xff]
        %v2152 = vld [vmem:[%s511 + $0x378] sm:$0xff]
        %v2153 = vld [vmem:[%s511 + $0x380] sm:$0xff]
        %v2154 = vld [vmem:[%s511 + $0x388] sm:$0xff]
        %v2155 = vld [vmem:[%s511 + $0x390] sm:$0xff]
        %v2156 = vld [vmem:[%s511 + $0x398] sm:$0xff]
        %v2157 = vld [vmem:[%s511 + $0x3a0] sm:$0xff]
        %v2158 = vld [vmem:[%s511 + $0x3a8] sm:$0xff]
        %v2159 = vld [vmem:[%s511 + $0x3b0] sm:$0xff]
        %v2160 = vld [vmem:[%s511 + $0x3b8] sm:$0xff]
        %v2161 = vld [vmem:[%s511 + $0x3c0] sm:$0xff]
        %v2162 = vld [vmem:[%s511 + $0x3c8] sm:$0xff]
        %v2163 = vld [vmem:[%s511 + $0x3d0] sm:$0xff]
        %v2164 = vld [vmem:[%s511 + $0x3d8] sm:$0xff]
        %v2165 = vld [vmem:[%s511 + $0x3e0] sm:$0xff]
        %v2166 = vld [vmem:[%s511 + $0x3e8] sm:$0xff]
        %v2167 = vld [vmem:[%s511 + $0x3f0] sm:$0xff]
        %v2168 = vld [vmem:[%s511 + $0x3f8] sm:$0xff]
        %v2169 = vld [vmem:[%s511 + $0x400] sm:$0xff]
        %v2170 = vld [vmem:[%s511 + $0x408] sm:$0xff]
        %v2171 = vld [vmem:[%s511 + $0x410] sm:$0xff]
        %v2172 = vld [vmem:[%s511 + $0x418] sm:$0xff]
        %v2173 = vld [vmem:[%s511 + $0x420] sm:$0xff]
        %v2174 = vld [vmem:[%s511 + $0x428] sm:$0xff]
        %v2175 = vld [vmem:[%s511 + $0x430] sm:$0xff]
        %v2176 = vld [vmem:[%s511 + $0x438] sm:$0xff]
        %v2177 = vld [vmem:[%s511 + $0x440] sm:$0xff]
        %v2178 = vld [vmem:[%s511 + $0x448] sm:$0xff]
        %v2179 = vld [vmem:[%s511 + $0x450] sm:$0xff]
        %v2180 = vld [vmem:[%s511 + $0x458] sm:$0xff]
        %v2181 = vld [vmem:[%s511 + $0x460] sm:$0xff]
        %v2182 = vld [vmem:[%s511 + $0x468] sm:$0xff]
        %v2183 = vld [vmem:[%s511 + $0x470] sm:$0xff]
        %v2184 = vld [vmem:[%s511 + $0x478] sm:$0xff]
        %v2185 = vld [vmem:[%s511 + $0x480] sm:$0xff]
        %v2186 = vld [vmem:[%s511 + $0x488] sm:$0xff]
        %v2187 = vld [vmem:[%s511 + $0x490] sm:$0xff]
        %v2188 = vld [vmem:[%s511 + $0x498] sm:$0xff]
        %v2189 = vld [vmem:[%s511 + $0x4a0] sm:$0xff]
        %v2190 = vld [vmem:[%s511 + $0x4a8] sm:$0xff]
        %v2191 = vld [vmem:[%s511 + $0x4b0] sm:$0xff]
        %v2192 = vld [vmem:[%s511 + $0x4b8] sm:$0xff]
        %v2193 = vld [vmem:[%s511 + $0x4c0] sm:$0xff]
        %v2194 = vld [vmem:[%s511 + $0x4c8] sm:$0xff]
        %v2195 = vld [vmem:[%s511 + $0x4d0] sm:$0xff]
        %v2196 = vld [vmem:[%s511 + $0x4d8] sm:$0xff]
        %v2197 = vld [vmem:[%s511 + $0x4e0] sm:$0xff]
        %v2198 = vld [vmem:[%s511 + $0x4e8] sm:$0xff]
        %v2199 = vld [vmem:[%s511 + $0x4f0] sm:$0xff]
        %v2200 = vld [vmem:[%s511 + $0x4f8] sm:$0xff]
        %v2201 = vld [vmem:[%s511 + $0x500] sm:$0xff]
        %v2202 = vld [vmem:[%s511 + $0x508] sm:$0xff]
        %v2203 = vld [vmem:[%s511 + $0x510] sm:$0xff]
        %v2204 = vld [vmem:[%s511 + $0x518] sm:$0xff]
        %v2205 = vld [vmem:[%s511 + $0x520] sm:$0xff]
        %v2206 = vld [vmem:[%s511 + $0x528] sm:$0xff]
        %v2207 = vld [vmem:[%s511 + $0x530] sm:$0xff]
        %v2208 = vld [vmem:[%s511 + $0x538] sm:$0xff]
        %v2209 = vld [vmem:[%s511 + $0x540] sm:$0xff]
        %v2210 = vld [vmem:[%s511 + $0x548] sm:$0xff]
        %v2211 = vld [vmem:[%s511 + $0x550] sm:$0xff]
        %v2212 = vld [vmem:[%s511 + $0x558] sm:$0xff]
        %v2213 = vld [vmem:[%s511 + $0x560] sm:$0xff]
        %v2214 = vld [vmem:[%s511 + $0x568] sm:$0xff]
        %v2215 = vld [vmem:[%s511 + $0x570] sm:$0xff]
        %v2216 = vld [vmem:[%s511 + $0x578] sm:$0xff]
        %v2217 = vld [vmem:[%s511 + $0x580] sm:$0xff]
        %v2218 = vld [vmem:[%s511 + $0x588] sm:$0xff]
        %v2219 = vld [vmem:[%s511 + $0x590] sm:$0xff]
        %v2220 = vld [vmem:[%s511 + $0x598] sm:$0xff]
        %v2221 = vld [vmem:[%s511 + $0x5a0] sm:$0xff]
        %v2222 = vld [vmem:[%s511 + $0x5a8] sm:$0xff]
        %v2223 = vld [vmem:[%s511 + $0x5b0] sm:$0xff]
        %v2224 = vld [vmem:[%s511 + $0x5b8] sm:$0xff]
        %v2225 = vld [vmem:[%s511 + $0x5c0] sm:$0xff]
        %v2226 = vld [vmem:[%s511 + $0x5c8] sm:$0xff]
        %v2227 = vld [vmem:[%s511 + $0x5d0] sm:$0xff]
        %v2228 = vld [vmem:[%s511 + $0x5d8] sm:$0xff]
        %v2229 = vld [vmem:[%s511 + $0x5e0] sm:$0xff]
        %v2230 = vld [vmem:[%s511 + $0x5e8] sm:$0xff]
        %v2231 = vld [vmem:[%s511 + $0x5f0] sm:$0xff]
        %v2232 = vld [vmem:[%s511 + $0x5f8] sm:$0xff]
        %v2233 = vld [vmem:[%s511 + $0x600] sm:$0xff]
        %v2234 = vld [vmem:[%s511 + $0x608] sm:$0xff]
        %v2235 = vld [vmem:[%s511 + $0x610] sm:$0xff]
        %v2236 = vld [vmem:[%s511 + $0x618] sm:$0xff]
        %v2237 = vld [vmem:[%s511 + $0x620] sm:$0xff]
        %v2238 = vld [vmem:[%s511 + $0x628] sm:$0xff]
        %v2239 = vld [vmem:[%s511 + $0x630] sm:$0xff]
        %v2240 = vld [vmem:[%s511 + $0x638] sm:$0xff]
        %v2241 = vld [vmem:[%s511 + $0x640] sm:$0xff]
        %v2242 = vld [vmem:[%s511 + $0x648] sm:$0xff]
        %v2243 = vld [vmem:[%s511 + $0x650] sm:$0xff]
        %v2244 = vld [vmem:[%s511 + $0x658] sm:$0xff]
        %v2245 = vld [vmem:[%s511 + $0x660] sm:$0xff]
        %v2246 = vld [vmem:[%s511 + $0x668] sm:$0xff]
        %v2247 = vld [vmem:[%s511 + $0x670] sm:$0xff]
        %v2248 = vld [vmem:[%s511 + $0x678] sm:$0xff]
        %v2249 = vld [vmem:[%s511 + $0x680] sm:$0xff]
        %v2250 = vld [vmem:[%s511 + $0x688] sm:$0xff]
        %v2251 = vld [vmem:[%s511 + $0x690] sm:$0xff]
        %v2252 = vld [vmem:[%s511 + $0x698] sm:$0xff]
        %v2253 = vld [vmem:[%s511 + $0x6a0] sm:$0xff]
        %v2254 = vld [vmem:[%s511 + $0x6a8] sm:$0xff]
        %v2255 = vld [vmem:[%s511 + $0x6b0] sm:$0xff]
        %v2256 = vld [vmem:[%s511 + $0x6b8] sm:$0xff]
        %v2257 = vld [vmem:[%s511 + $0x6c0] sm:$0xff]
        %v2258 = vld [vmem:[%s511 + $0x6c8] sm:$0xff]
        %v2259 = vld [vmem:[%s511 + $0x6d0] sm:$0xff]
        %v2260 = vld [vmem:[%s511 + $0x6d8] sm:$0xff]
        %v2261 = vld [vmem:[%s511 + $0x6e0] sm:$0xff]
        %v2262 = vld [vmem:[%s511 + $0x6e8] sm:$0xff]
        %v2263 = vld [vmem:[%s511 + $0x6f0] sm:$0xff]
        %v2264 = vld [vmem:[%s511 + $0x6f8] sm:$0xff]
        %v2265 = vld [vmem:[%s511 + $0x700] sm:$0xff]
        %v2266 = vld [vmem:[%s511 + $0x708] sm:$0xff]
        %v2267 = vld [vmem:[%s511 + $0x710] sm:$0xff]
        %v2268 = vld [vmem:[%s511 + $0x718] sm:$0xff]
        %v2269 = vld [vmem:[%s511 + $0x720] sm:$0xff]
        %v2270 = vld [vmem:[%s511 + $0x728] sm:$0xff]
        %v2271 = vld [vmem:[%s511 + $0x730] sm:$0xff]
        %v2272 = vld [vmem:[%s511 + $0x738] sm:$0xff]
        %v2273 = vld [vmem:[%s511 + $0x740] sm:$0xff]
        %v2274 = vld [vmem:[%s511 + $0x748] sm:$0xff]
        %v2275 = vld [vmem:[%s511 + $0x750] sm:$0xff]
        %v2276 = vld [vmem:[%s511 + $0x758] sm:$0xff]
        %v2277 = vld [vmem:[%s511 + $0x760] sm:$0xff]
        %v2278 = vld [vmem:[%s511 + $0x768] sm:$0xff]
        %v2279 = vld [vmem:[%s511 + $0x770] sm:$0xff]
        %v2280 = vld [vmem:[%s511 + $0x778] sm:$0xff]
        %v2281 = vld [vmem:[%s511 + $0x780] sm:$0xff]
        %v2282 = vld [vmem:[%s511 + $0x788] sm:$0xff]
        %v2283 = vld [vmem:[%s511 + $0x790] sm:$0xff]
        %v2284 = vld [vmem:[%s511 + $0x798] sm:$0xff]
        %v2285 = vld [vmem:[%s511 + $0x7a0] sm:$0xff]
        %v2286 = vld [vmem:[%s511 + $0x7a8] sm:$0xff]
        %v2287 = vld [vmem:[%s511 + $0x7b0] sm:$0xff]
        %v2288 = vld [vmem:[%s511 + $0x7b8] sm:$0xff]
        %v2289 = vld [vmem:[%s511 + $0x7c0] sm:$0xff]
        %v2290 = vld [vmem:[%s511 + $0x7c8] sm:$0xff]
        %v2291 = vld [vmem:[%s511 + $0x7d0] sm:$0xff]
        %v2292 = vld [vmem:[%s511 + $0x7d8] sm:$0xff]
        %v2293 = vld [vmem:[%s511 + $0x7e0] sm:$0xff]
        %v2294 = vld [vmem:[%s511 + $0x7e8] sm:$0xff]
        %v2295 = vld [vmem:[%s511 + $0x7f0] sm:$0xff]
        %v2296 = vld [vmem:[%s511 + $0x7f8] sm:$0xff]
        %v2297 = vld [vmem:[%s511 + $0x800] sm:$0xff]
        %v2298 = vld [vmem:[%s511 + $0x808] sm:$0xff]
        %v2299 = vld [vmem:[%s511 + $0x810] sm:$0xff]
        %v2300 = vld [vmem:[%s511 + $0x818] sm:$0xff]
        %v2301 = vld [vmem:[%s511 + $0x820] sm:$0xff]
        %v2302 = vld [vmem:[%s511 + $0x828] sm:$0xff]
        %v2303 = vld [vmem:[%s511 + $0x830] sm:$0xff]
        %v2304 = vld [vmem:[%s511 + $0x838] sm:$0xff]
        %v2305 = vld [vmem:[%s511 + $0x840] sm:$0xff]
        %v2306 = vld [vmem:[%s511 + $0x848] sm:$0xff]
        %v2307 = vld [vmem:[%s511 + $0x850] sm:$0xff]
        %v2308 = vld [vmem:[%s511 + $0x858] sm:$0xff]
        %v2309 = vld [vmem:[%s511 + $0x860] sm:$0xff]
        %v2310 = vld [vmem:[%s511 + $0x868] sm:$0xff]
        %v2311 = vld [vmem:[%s511 + $0x870] sm:$0xff]
        %v2312 = vld [vmem:[%s511 + $0x878] sm:$0xff]
        %v2313 = vld [vmem:[%s511 + $0x880] sm:$0xff]
        %v2314 = vld [vmem:[%s511 + $0x888] sm:$0xff]
        %v2315 = vld [vmem:[%s511 + $0x890] sm:$0xff]
        %v2316 = vld [vmem:[%s511 + $0x898] sm:$0xff]
        %v2317 = vld [vmem:[%s511 + $0x8a0] sm:$0xff]
        %v2318 = vld [vmem:[%s511 + $0x8a8] sm:$0xff]
        %v2319 = vld [vmem:[%s511 + $0x8b0] sm:$0xff]
        %v2320 = vld [vmem:[%s511 + $0x8b8] sm:$0xff]
        %v2321 = vld [vmem:[%s511 + $0x8c0] sm:$0xff]
        %v2322 = vld [vmem:[%s511 + $0x8c8] sm:$0xff]
        %v2323 = vld [vmem:[%s511 + $0x8d0] sm:$0xff]
        %v2324 = vld [vmem:[%s511 + $0x8d8] sm:$0xff]
        %v2325 = vld [vmem:[%s511 + $0x8e0] sm:$0xff]
        %v2326 = vld [vmem:[%s511 + $0x8e8] sm:$0xff]
        %v2327 = vld [vmem:[%s511 + $0x8f0] sm:$0xff]
        %v2328 = vld [vmem:[%s511 + $0x8f8] sm:$0xff]
        %v2329 = vld [vmem:[%s521] sm:$0x3]
        %v2331 = vperm.slane %v2329, 0
        %v2332 = vperm.slane %v2329, 1
        %2335 = vmatpush.msra.mxu0 %v2071
        %2336 = vmatpush.msra.mxu0 %v2069
        %2337 = vmatpush.msra.mxu0 %v2067
        %2338 = vmatpush.msra.mxu0 %v2065
        %2339 = vmatpush.msra.mxu0 %v2063
        %2340 = vmatpush.msra.mxu0 %v2061
        %2341 = vmatpush.msra.mxu0 %v2059
        %2342 = vmatpush.msra.mxu0 %v2057
        %2343 = vmatpush.msra.mxu0 %v2055
        %2344 = vmatpush.msra.mxu0 %v2053
        %2345 = vmatpush.msra.mxu0 %v2051
        %2346 = vmatpush.msra.mxu0 %v2049
        %2347 = vmatpush.msra.mxu0 %v2047
        %2348 = vmatpush.msra.mxu0 %v2045
        %2349 = vmatpush.msra.mxu0 %v2043
        %2350 = vmatpush.msra.mxu0 %v2041
        %2351 = vmatmul.f32.gmra.mxu0 %v1140
        %v2352 = vpop.f32.mrf.mxu0
        %v2353 = vadd.f32 %v2331, %v2352
        %2354 = vmatmul.f32.gmra.mxu0 %v1141
        %v2355 = vpop.f32.mrf.mxu0
        %v2356 = vadd.f32 %v2331, %v2355
        %2357 = vmatmul.f32.gmra.mxu0 %v1142
        %v2358 = vpop.f32.mrf.mxu0
        %v2359 = vadd.f32 %v2331, %v2358
        %2360 = vmatmul.f32.gmra.mxu0 %v1143
        %v2361 = vpop.f32.mrf.mxu0
        %v2362 = vadd.f32 %v2331, %v2361
        %2363 = vmatmul.f32.gmra.mxu0 %v1144
        %v2364 = vpop.f32.mrf.mxu0
        %v2365 = vadd.f32 %v2331, %v2364
        %2366 = vmatmul.f32.gmra.mxu0 %v1145
        %v2367 = vpop.f32.mrf.mxu0
        %v2368 = vadd.f32 %v2331, %v2367
        %2369 = vmatmul.f32.gmra.mxu0 %v1146
        %v2370 = vpop.f32.mrf.mxu0
        %v2371 = vadd.f32 %v2331, %v2370
        %2372 = vmatmul.f32.gmra.mxu0 %v1147
        %v2373 = vpop.f32.mrf.mxu0
        %v2374 = vadd.f32 %v2331, %v2373
        %2375 = vmatmul.f32.gmra.mxu0 %v1148
        %v2376 = vpop.f32.mrf.mxu0
        %v2377 = vadd.f32 %v2331, %v2376
        %2378 = vmatmul.f32.gmra.mxu0 %v1149
        %v2379 = vpop.f32.mrf.mxu0
        %v2380 = vadd.f32 %v2331, %v2379
        %2381 = vmatmul.f32.gmra.mxu0 %v1150
        %v2382 = vpop.f32.mrf.mxu0
        %v2383 = vadd.f32 %v2331, %v2382
        %2384 = vmatmul.f32.gmra.mxu0 %v1151
        %v2385 = vpop.f32.mrf.mxu0
        %v2386 = vadd.f32 %v2331, %v2385
        %2387 = vmatmul.f32.gmra.mxu0 %v1152
        %v2388 = vpop.f32.mrf.mxu0
        %v2389 = vadd.f32 %v2331, %v2388
        %2390 = vmatmul.f32.gmra.mxu0 %v1153
        %v2391 = vpop.f32.mrf.mxu0
        %v2392 = vadd.f32 %v2331, %v2391
        %2393 = vmatmul.f32.gmra.mxu0 %v1154
        %v2394 = vpop.f32.mrf.mxu0
        %v2395 = vadd.f32 %v2331, %v2394
        %2396 = vmatmul.f32.gmra.mxu0 %v1155
        %v2397 = vpop.f32.mrf.mxu0
        %v2398 = vadd.f32 %v2331, %v2397
        %2399 = vdwg.mxu0
        %2400 = vmatpush.msra.mxu0 %v2103
        %2401 = vmatpush.msra.mxu0 %v2101
        %2402 = vmatpush.msra.mxu0 %v2099
        %2403 = vmatpush.msra.mxu0 %v2097
        %2404 = vmatpush.msra.mxu0 %v2095
        %2405 = vmatpush.msra.mxu0 %v2093
        %2406 = vmatpush.msra.mxu0 %v2091
        %2407 = vmatpush.msra.mxu0 %v2089
        %2408 = vmatpush.msra.mxu0 %v2087
        %2409 = vmatpush.msra.mxu0 %v2085
        %2410 = vmatpush.msra.mxu0 %v2083
        %2411 = vmatpush.msra.mxu0 %v2081
        %2412 = vmatpush.msra.mxu0 %v2079
        %2413 = vmatpush.msra.mxu0 %v2077
        %2414 = vmatpush.msra.mxu0 %v2075
        %2415 = vmatpush.msra.mxu0 %v2073
        %2416 = vmatmul.f32.gmra.mxu0 %v1268
        %v2417 = vpop.f32.mrf.mxu0
        %v2418 = vadd.f32 %v2353, %v2417
        %2419 = vmatmul.f32.gmra.mxu0 %v1269
        %v2420 = vpop.f32.mrf.mxu0
        %v2421 = vadd.f32 %v2356, %v2420
        %2422 = vmatmul.f32.gmra.mxu0 %v1270
        %v2423 = vpop.f32.mrf.mxu0
        %v2424 = vadd.f32 %v2359, %v2423
        %2425 = vmatmul.f32.gmra.mxu0 %v1271
        %v2426 = vpop.f32.mrf.mxu0
        %v2427 = vadd.f32 %v2362, %v2426
        %2428 = vmatmul.f32.gmra.mxu0 %v1272
        %v2429 = vpop.f32.mrf.mxu0
        %v2430 = vadd.f32 %v2365, %v2429
        %2431 = vmatmul.f32.gmra.mxu0 %v1273
        %v2432 = vpop.f32.mrf.mxu0
        %v2433 = vadd.f32 %v2368, %v2432
        %2434 = vmatmul.f32.gmra.mxu0 %v1274
        %v2435 = vpop.f32.mrf.mxu0
        %v2436 = vadd.f32 %v2371, %v2435
        %2437 = vmatmul.f32.gmra.mxu0 %v1275
        %v2438 = vpop.f32.mrf.mxu0
        %v2439 = vadd.f32 %v2374, %v2438
        %2440 = vmatmul.f32.gmra.mxu0 %v1276
        %v2441 = vpop.f32.mrf.mxu0
        %v2442 = vadd.f32 %v2377, %v2441
        %2443 = vmatmul.f32.gmra.mxu0 %v1277
        %v2444 = vpop.f32.mrf.mxu0
        %v2445 = vadd.f32 %v2380, %v2444
        %2446 = vmatmul.f32.gmra.mxu0 %v1278
        %v2447 = vpop.f32.mrf.mxu0
        %v2448 = vadd.f32 %v2383, %v2447
        %2449 = vmatmul.f32.gmra.mxu0 %v1279
        %v2450 = vpop.f32.mrf.mxu0
        %v2451 = vadd.f32 %v2386, %v2450
        %2452 = vmatmul.f32.gmra.mxu0 %v1280
        %v2453 = vpop.f32.mrf.mxu0
        %v2454 = vadd.f32 %v2389, %v2453
        %2455 = vmatmul.f32.gmra.mxu0 %v1281
        %v2456 = vpop.f32.mrf.mxu0
        %v2457 = vadd.f32 %v2392, %v2456
        %2458 = vmatmul.f32.gmra.mxu0 %v1282
        %v2459 = vpop.f32.mrf.mxu0
        %v2460 = vadd.f32 %v2395, %v2459
        %2461 = vmatmul.f32.gmra.mxu0 %v1283
        %v2462 = vpop.f32.mrf.mxu0
        %v2463 = vadd.f32 %v2398, %v2462
        %2464 = vdwg.mxu0
        %2465 = vmatpush.msra.mxu0 %v2135
        %2466 = vmatpush.msra.mxu0 %v2133
        %2467 = vmatpush.msra.mxu0 %v2131
        %2468 = vmatpush.msra.mxu0 %v2129
        %2469 = vmatpush.msra.mxu0 %v2127
        %2470 = vmatpush.msra.mxu0 %v2125
        %2471 = vmatpush.msra.mxu0 %v2123
        %2472 = vmatpush.msra.mxu0 %v2121
        %2473 = vmatpush.msra.mxu0 %v2119
        %2474 = vmatpush.msra.mxu0 %v2117
        %2475 = vmatpush.msra.mxu0 %v2115
        %2476 = vmatpush.msra.mxu0 %v2113
        %2477 = vmatpush.msra.mxu0 %v2111
        %2478 = vmatpush.msra.mxu0 %v2109
        %2479 = vmatpush.msra.mxu0 %v2107
        %2480 = vmatpush.msra.mxu0 %v2105
        %2481 = vmatmul.f32.gmra.mxu0 %v1412
        %v2482 = vpop.f32.mrf.mxu0
        %v2483 = vadd.f32 %v2418, %v2482
        %2484 = vmatmul.f32.gmra.mxu0 %v1413
        %v2485 = vpop.f32.mrf.mxu0
        %v2486 = vadd.f32 %v2421, %v2485
        %2487 = vmatmul.f32.gmra.mxu0 %v1414
        %v2488 = vpop.f32.mrf.mxu0
        %v2489 = vadd.f32 %v2424, %v2488
        %2490 = vmatmul.f32.gmra.mxu0 %v1415
        %v2491 = vpop.f32.mrf.mxu0
        %v2492 = vadd.f32 %v2427, %v2491
        %2493 = vmatmul.f32.gmra.mxu0 %v1416
        %v2494 = vpop.f32.mrf.mxu0
        %v2495 = vadd.f32 %v2430, %v2494
        %2496 = vmatmul.f32.gmra.mxu0 %v1417
        %v2497 = vpop.f32.mrf.mxu0
        %v2498 = vadd.f32 %v2433, %v2497
        %2499 = vmatmul.f32.gmra.mxu0 %v1418
        %v2500 = vpop.f32.mrf.mxu0
        %v2501 = vadd.f32 %v2436, %v2500
        %2502 = vmatmul.f32.gmra.mxu0 %v1419
        %v2503 = vpop.f32.mrf.mxu0
        %v2504 = vadd.f32 %v2439, %v2503
        %2505 = vmatmul.f32.gmra.mxu0 %v1420
        %v2506 = vpop.f32.mrf.mxu0
        %v2507 = vadd.f32 %v2442, %v2506
        %2508 = vmatmul.f32.gmra.mxu0 %v1421
        %v2509 = vpop.f32.mrf.mxu0
        %v2510 = vadd.f32 %v2445, %v2509
        %2511 = vmatmul.f32.gmra.mxu0 %v1422
        %v2512 = vpop.f32.mrf.mxu0
        %v2513 = vadd.f32 %v2448, %v2512
        %2514 = vmatmul.f32.gmra.mxu0 %v1423
        %v2515 = vpop.f32.mrf.mxu0
        %v2516 = vadd.f32 %v2451, %v2515
        %2517 = vmatmul.f32.gmra.mxu0 %v1424
        %v2518 = vpop.f32.mrf.mxu0
        %v2519 = vadd.f32 %v2454, %v2518
        %2520 = vmatmul.f32.gmra.mxu0 %v1425
        %v2521 = vpop.f32.mrf.mxu0
        %v2522 = vadd.f32 %v2457, %v2521
        %2523 = vmatmul.f32.gmra.mxu0 %v1426
        %v2524 = vpop.f32.mrf.mxu0
        %v2525 = vadd.f32 %v2460, %v2524
        %2526 = vmatmul.f32.gmra.mxu0 %v1427
        %v2527 = vpop.f32.mrf.mxu0
        %v2528 = vadd.f32 %v2463, %v2527
        %2529 = vdwg.mxu0
        %2530 = vmatpush.msra.mxu0 %v2167
        %2531 = vmatpush.msra.mxu0 %v2165
        %2532 = vmatpush.msra.mxu0 %v2163
        %2533 = vmatpush.msra.mxu0 %v2161
        %2534 = vmatpush.msra.mxu0 %v2159
        %2535 = vmatpush.msra.mxu0 %v2157
        %2536 = vmatpush.msra.mxu0 %v2155
        %2537 = vmatpush.msra.mxu0 %v2153
        %2538 = vmatpush.msra.mxu0 %v2151
        %2539 = vmatpush.msra.mxu0 %v2149
        %2540 = vmatpush.msra.mxu0 %v2147
        %2541 = vmatpush.msra.mxu0 %v2145
        %2542 = vmatpush.msra.mxu0 %v2143
        %2543 = vmatpush.msra.mxu0 %v2141
        %2544 = vmatpush.msra.mxu0 %v2139
        %2545 = vmatpush.msra.mxu0 %v2137
        %2546 = vmatmul.f32.gmra.mxu0 %v1541
        %v2547 = vpop.f32.mrf.mxu0
        %v2548 = vadd.f32 %v2483, %v2547
        %2549 = vmatmul.f32.gmra.mxu0 %v1542
        %v2550 = vpop.f32.mrf.mxu0
        %v2551 = vadd.f32 %v2486, %v2550
        %2552 = vmatmul.f32.gmra.mxu0 %v1543
        %v2553 = vpop.f32.mrf.mxu0
        %v2554 = vadd.f32 %v2489, %v2553
        %2555 = vmatmul.f32.gmra.mxu0 %v1544
        %v2556 = vpop.f32.mrf.mxu0
        %v2557 = vadd.f32 %v2492, %v2556
        %2558 = vmatmul.f32.gmra.mxu0 %v1545
        %v2559 = vpop.f32.mrf.mxu0
        %v2560 = vadd.f32 %v2495, %v2559
        %2561 = vmatmul.f32.gmra.mxu0 %v1546
        %v2562 = vpop.f32.mrf.mxu0
        %v2563 = vadd.f32 %v2498, %v2562
        %2564 = vmatmul.f32.gmra.mxu0 %v1547
        %v2565 = vpop.f32.mrf.mxu0
        %v2566 = vadd.f32 %v2501, %v2565
        %2567 = vmatmul.f32.gmra.mxu0 %v1548
        %v2568 = vpop.f32.mrf.mxu0
        %v2569 = vadd.f32 %v2504, %v2568
        %2570 = vmatmul.f32.gmra.mxu0 %v1549
        %v2571 = vpop.f32.mrf.mxu0
        %v2572 = vadd.f32 %v2507, %v2571
        %2573 = vmatmul.f32.gmra.mxu0 %v1550
        %v2574 = vpop.f32.mrf.mxu0
        %v2575 = vadd.f32 %v2510, %v2574
        %2576 = vmatmul.f32.gmra.mxu0 %v1551
        %v2577 = vpop.f32.mrf.mxu0
        %v2578 = vadd.f32 %v2513, %v2577
        %2579 = vmatmul.f32.gmra.mxu0 %v1552
        %v2580 = vpop.f32.mrf.mxu0
        %v2581 = vadd.f32 %v2516, %v2580
        %2582 = vmatmul.f32.gmra.mxu0 %v1553
        %v2583 = vpop.f32.mrf.mxu0
        %v2584 = vadd.f32 %v2519, %v2583
        %2585 = vmatmul.f32.gmra.mxu0 %v1554
        %v2586 = vpop.f32.mrf.mxu0
        %v2587 = vadd.f32 %v2522, %v2586
        %2588 = vmatmul.f32.gmra.mxu0 %v1555
        %v2589 = vpop.f32.mrf.mxu0
        %v2590 = vadd.f32 %v2525, %v2589
        %2591 = vmatmul.f32.gmra.mxu0 %v1556
        %v2592 = vpop.f32.mrf.mxu0
        %v2593 = vadd.f32 %v2528, %v2592
        %2594 = vdwg.mxu0
        %2595 = vmatpush.msra.mxu0 %v2199
        %2596 = vmatpush.msra.mxu0 %v2197
        %2597 = vmatpush.msra.mxu0 %v2195
        %2598 = vmatpush.msra.mxu0 %v2193
        %2599 = vmatpush.msra.mxu0 %v2191
        %2600 = vmatpush.msra.mxu0 %v2189
        %2601 = vmatpush.msra.mxu0 %v2187
        %2602 = vmatpush.msra.mxu0 %v2185
        %2603 = vmatpush.msra.mxu0 %v2183
        %2604 = vmatpush.msra.mxu0 %v2181
        %2605 = vmatpush.msra.mxu0 %v2179
        %2606 = vmatpush.msra.mxu0 %v2177
        %2607 = vmatpush.msra.mxu0 %v2175
        %2608 = vmatpush.msra.mxu0 %v2173
        %2609 = vmatpush.msra.mxu0 %v2171
        %2610 = vmatpush.msra.mxu0 %v2169
        %2611 = vmatmul.f32.gmra.mxu0 %v1622
        %v2612 = vpop.f32.mrf.mxu0
        %v2613 = vadd.f32 %v2548, %v2612
        %2614 = vmatmul.f32.gmra.mxu0 %v1623
        %v2615 = vpop.f32.mrf.mxu0
        %v2616 = vadd.f32 %v2551, %v2615
        %2617 = vmatmul.f32.gmra.mxu0 %v1624
        %v2618 = vpop.f32.mrf.mxu0
        %v2619 = vadd.f32 %v2554, %v2618
        %2620 = vmatmul.f32.gmra.mxu0 %v1625
        %v2621 = vpop.f32.mrf.mxu0
        %v2622 = vadd.f32 %v2557, %v2621
        %2623 = vmatmul.f32.gmra.mxu0 %v1626
        %v2624 = vpop.f32.mrf.mxu0
        %v2625 = vadd.f32 %v2560, %v2624
        %2626 = vmatmul.f32.gmra.mxu0 %v1627
        %v2627 = vpop.f32.mrf.mxu0
        %v2628 = vadd.f32 %v2563, %v2627
        %2629 = vmatmul.f32.gmra.mxu0 %v1628
        %v2630 = vpop.f32.mrf.mxu0
        %v2631 = vadd.f32 %v2566, %v2630
        %2632 = vmatmul.f32.gmra.mxu0 %v1629
        %v2633 = vpop.f32.mrf.mxu0
        %v2634 = vadd.f32 %v2569, %v2633
        %2635 = vmatmul.f32.gmra.mxu0 %v1630
        %v2636 = vpop.f32.mrf.mxu0
        %v2637 = vadd.f32 %v2572, %v2636
        %2638 = vmatmul.f32.gmra.mxu0 %v1631
        %v2639 = vpop.f32.mrf.mxu0
        %v2640 = vadd.f32 %v2575, %v2639
        %2641 = vmatmul.f32.gmra.mxu0 %v1632
        %v2642 = vpop.f32.mrf.mxu0
        %v2643 = vadd.f32 %v2578, %v2642
        %2644 = vmatmul.f32.gmra.mxu0 %v1633
        %v2645 = vpop.f32.mrf.mxu0
        %v2646 = vadd.f32 %v2581, %v2645
        %2647 = vmatmul.f32.gmra.mxu0 %v1634
        %v2648 = vpop.f32.mrf.mxu0
        %v2649 = vadd.f32 %v2584, %v2648
        %2650 = vmatmul.f32.gmra.mxu0 %v1635
        %v2651 = vpop.f32.mrf.mxu0
        %v2652 = vadd.f32 %v2587, %v2651
        %2653 = vmatmul.f32.gmra.mxu0 %v1636
        %v2654 = vpop.f32.mrf.mxu0
        %v2655 = vadd.f32 %v2590, %v2654
        %2656 = vmatmul.f32.gmra.mxu0 %v1637
        %v2657 = vpop.f32.mrf.mxu0
        %v2658 = vadd.f32 %v2593, %v2657
        %2659 = vdwg.mxu0
        %2660 = vmatpush.msra.mxu0 %v2231
        %2661 = vmatpush.msra.mxu0 %v2229
        %2662 = vmatpush.msra.mxu0 %v2227
        %2663 = vmatpush.msra.mxu0 %v2225
        %2664 = vmatpush.msra.mxu0 %v2223
        %2665 = vmatpush.msra.mxu0 %v2221
        %2666 = vmatpush.msra.mxu0 %v2219
        %2667 = vmatpush.msra.mxu0 %v2217
        %2668 = vmatpush.msra.mxu0 %v2215
        %2669 = vmatpush.msra.mxu0 %v2213
        %2670 = vmatpush.msra.mxu0 %v2211
        %2671 = vmatpush.msra.mxu0 %v2209
        %2672 = vmatpush.msra.mxu0 %v2207
        %2673 = vmatpush.msra.mxu0 %v2205
        %2674 = vmatpush.msra.mxu0 %v2203
        %2675 = vmatpush.msra.mxu0 %v2201
        %2676 = vmatmul.f32.gmra.mxu0 %v1703
        %v2677 = vpop.f32.mrf.mxu0
        %v2678 = vadd.f32 %v2613, %v2677
        %2679 = vmatmul.f32.gmra.mxu0 %v1704
        %v2680 = vpop.f32.mrf.mxu0
        %v2681 = vadd.f32 %v2616, %v2680
        %2682 = vmatmul.f32.gmra.mxu0 %v1705
        %v2683 = vpop.f32.mrf.mxu0
        %v2684 = vadd.f32 %v2619, %v2683
        %2685 = vmatmul.f32.gmra.mxu0 %v1706
        %v2686 = vpop.f32.mrf.mxu0
        %v2687 = vadd.f32 %v2622, %v2686
        %2688 = vmatmul.f32.gmra.mxu0 %v1707
        %v2689 = vpop.f32.mrf.mxu0
        %v2690 = vadd.f32 %v2625, %v2689
        %2691 = vmatmul.f32.gmra.mxu0 %v1708
        %v2692 = vpop.f32.mrf.mxu0
        %v2693 = vadd.f32 %v2628, %v2692
        %2694 = vmatmul.f32.gmra.mxu0 %v1709
        %v2695 = vpop.f32.mrf.mxu0
        %v2696 = vadd.f32 %v2631, %v2695
        %2697 = vmatmul.f32.gmra.mxu0 %v1710
        %v2698 = vpop.f32.mrf.mxu0
        %v2699 = vadd.f32 %v2634, %v2698
        %2700 = vmatmul.f32.gmra.mxu0 %v1711
        %v2701 = vpop.f32.mrf.mxu0
        %v2702 = vadd.f32 %v2637, %v2701
        %2703 = vmatmul.f32.gmra.mxu0 %v1712
        %v2704 = vpop.f32.mrf.mxu0
        %v2705 = vadd.f32 %v2640, %v2704
        %2706 = vmatmul.f32.gmra.mxu0 %v1713
        %v2707 = vpop.f32.mrf.mxu0
        %v2708 = vadd.f32 %v2643, %v2707
        %2709 = vmatmul.f32.gmra.mxu0 %v1714
        %v2710 = vpop.f32.mrf.mxu0
        %v2711 = vadd.f32 %v2646, %v2710
        %2712 = vmatmul.f32.gmra.mxu0 %v1715
        %v2713 = vpop.f32.mrf.mxu0
        %v2714 = vadd.f32 %v2649, %v2713
        %2715 = vmatmul.f32.gmra.mxu0 %v1716
        %v2716 = vpop.f32.mrf.mxu0
        %v2717 = vadd.f32 %v2652, %v2716
        %2718 = vmatmul.f32.gmra.mxu0 %v1717
        %v2719 = vpop.f32.mrf.mxu0
        %v2720 = vadd.f32 %v2655, %v2719
        %2721 = vmatmul.f32.gmra.mxu0 %v1718
        %v2722 = vpop.f32.mrf.mxu0
        %v2723 = vadd.f32 %v2658, %v2722
        %2724 = vdwg.mxu0
        %2725 = vmatpush.msra.mxu0 %v2263
        %2726 = vmatpush.msra.mxu0 %v2261
        %2727 = vmatpush.msra.mxu0 %v2259
        %2728 = vmatpush.msra.mxu0 %v2257
        %2729 = vmatpush.msra.mxu0 %v2255
        %2730 = vmatpush.msra.mxu0 %v2253
        %2731 = vmatpush.msra.mxu0 %v2251
        %2732 = vmatpush.msra.mxu0 %v2249
        %2733 = vmatpush.msra.mxu0 %v2247
        %2734 = vmatpush.msra.mxu0 %v2245
        %2735 = vmatpush.msra.mxu0 %v2243
        %2736 = vmatpush.msra.mxu0 %v2241
        %2737 = vmatpush.msra.mxu0 %v2239
        %2738 = vmatpush.msra.mxu0 %v2237
        %2739 = vmatpush.msra.mxu0 %v2235
        %2740 = vmatpush.msra.mxu0 %v2233
        %2741 = vmatmul.f32.gmra.mxu0 %v1848
        %v2742 = vpop.f32.mrf.mxu0
        %v2743 = vadd.f32 %v2678, %v2742
        %2744 = vmatmul.f32.gmra.mxu0 %v1849
        %v2745 = vpop.f32.mrf.mxu0
        %v2746 = vadd.f32 %v2681, %v2745
        %2747 = vmatmul.f32.gmra.mxu0 %v1850
        %v2748 = vpop.f32.mrf.mxu0
        %v2749 = vadd.f32 %v2684, %v2748
        %2750 = vmatmul.f32.gmra.mxu0 %v1851
        %v2751 = vpop.f32.mrf.mxu0
        %v2752 = vadd.f32 %v2687, %v2751
        %2753 = vmatmul.f32.gmra.mxu0 %v1852
        %v2754 = vpop.f32.mrf.mxu0
        %v2755 = vadd.f32 %v2690, %v2754
        %2756 = vmatmul.f32.gmra.mxu0 %v1853
        %v2757 = vpop.f32.mrf.mxu0
        %v2758 = vadd.f32 %v2693, %v2757
        %2759 = vmatmul.f32.gmra.mxu0 %v1854
        %v2760 = vpop.f32.mrf.mxu0
        %v2761 = vadd.f32 %v2696, %v2760
        %2762 = vmatmul.f32.gmra.mxu0 %v1855
        %v2763 = vpop.f32.mrf.mxu0
        %v2764 = vadd.f32 %v2699, %v2763
        %2765 = vmatmul.f32.gmra.mxu0 %v1856
        %v2766 = vpop.f32.mrf.mxu0
        %v2767 = vadd.f32 %v2702, %v2766
        %2768 = vmatmul.f32.gmra.mxu0 %v1857
        %v2769 = vpop.f32.mrf.mxu0
        %v2770 = vadd.f32 %v2705, %v2769
        %2771 = vmatmul.f32.gmra.mxu0 %v1858
        %v2772 = vpop.f32.mrf.mxu0
        %v2773 = vadd.f32 %v2708, %v2772
        %2774 = vmatmul.f32.gmra.mxu0 %v1859
        %v2775 = vpop.f32.mrf.mxu0
        %v2776 = vadd.f32 %v2711, %v2775
        %2777 = vmatmul.f32.gmra.mxu0 %v1860
        %v2778 = vpop.f32.mrf.mxu0
        %v2779 = vadd.f32 %v2714, %v2778
        %2780 = vmatmul.f32.gmra.mxu0 %v1861
        %v2781 = vpop.f32.mrf.mxu0
        %v2782 = vadd.f32 %v2717, %v2781
        %2783 = vmatmul.f32.gmra.mxu0 %v1862
        %v2784 = vpop.f32.mrf.mxu0
        %v2785 = vadd.f32 %v2720, %v2784
        %2786 = vmatmul.f32.gmra.mxu0 %v1863
        %v2787 = vpop.f32.mrf.mxu0
        %v2788 = vadd.f32 %v2723, %v2787
        %2789 = vdwg.mxu0
        %2790 = vmatpush.msra.mxu0 %v2295
        %2791 = vmatpush.msra.mxu0 %v2293
        %2792 = vmatpush.msra.mxu0 %v2291
        %2793 = vmatpush.msra.mxu0 %v2289
        %2794 = vmatpush.msra.mxu0 %v2287
        %2795 = vmatpush.msra.mxu0 %v2285
        %2796 = vmatpush.msra.mxu0 %v2283
        %2797 = vmatpush.msra.mxu0 %v2281
        %2798 = vmatpush.msra.mxu0 %v2279
        %2799 = vmatpush.msra.mxu0 %v2277
        %2800 = vmatpush.msra.mxu0 %v2275
        %2801 = vmatpush.msra.mxu0 %v2273
        %2802 = vmatpush.msra.mxu0 %v2271
        %2803 = vmatpush.msra.mxu0 %v2269
        %2804 = vmatpush.msra.mxu0 %v2267
        %2805 = vmatpush.msra.mxu0 %v2265
        %2806 = vmatmul.f32.gmra.mxu0 %v1929
        %v2807 = vpop.f32.mrf.mxu0
        %v2808 = vadd.f32 %v2743, %v2807
        %2809 = vmatmul.f32.gmra.mxu0 %v1930
        %v2810 = vpop.f32.mrf.mxu0
        %v2811 = vadd.f32 %v2746, %v2810
        %2812 = vmatmul.f32.gmra.mxu0 %v1931
        %v2813 = vpop.f32.mrf.mxu0
        %v2814 = vadd.f32 %v2749, %v2813
        %2815 = vmatmul.f32.gmra.mxu0 %v1932
        %v2816 = vpop.f32.mrf.mxu0
        %v2817 = vadd.f32 %v2752, %v2816
        %2818 = vmatmul.f32.gmra.mxu0 %v1933
        %v2819 = vpop.f32.mrf.mxu0
        %v2820 = vadd.f32 %v2755, %v2819
        %2821 = vmatmul.f32.gmra.mxu0 %v1934
        %v2822 = vpop.f32.mrf.mxu0
        %v2823 = vadd.f32 %v2758, %v2822
        %2824 = vmatmul.f32.gmra.mxu0 %v1935
        %v2825 = vpop.f32.mrf.mxu0
        %v2826 = vadd.f32 %v2761, %v2825
        %2827 = vmatmul.f32.gmra.mxu0 %v1936
        %v2828 = vpop.f32.mrf.mxu0
        %v2829 = vadd.f32 %v2764, %v2828
        %2830 = vmatmul.f32.gmra.mxu0 %v1937
        %v2831 = vpop.f32.mrf.mxu0
        %v2832 = vadd.f32 %v2767, %v2831
        %2833 = vmatmul.f32.gmra.mxu0 %v1938
        %v2834 = vpop.f32.mrf.mxu0
        %v2835 = vadd.f32 %v2770, %v2834
        %2836 = vmatmul.f32.gmra.mxu0 %v1939
        %v2837 = vpop.f32.mrf.mxu0
        %v2838 = vadd.f32 %v2773, %v2837
        %2839 = vmatmul.f32.gmra.mxu0 %v1940
        %v2840 = vpop.f32.mrf.mxu0
        %v2841 = vadd.f32 %v2776, %v2840
        %2842 = vmatmul.f32.gmra.mxu0 %v1941
        %v2843 = vpop.f32.mrf.mxu0
        %v2844 = vadd.f32 %v2779, %v2843
        %2845 = vmatmul.f32.gmra.mxu0 %v1942
        %v2846 = vpop.f32.mrf.mxu0
        %v2847 = vadd.f32 %v2782, %v2846
        %2848 = vmatmul.f32.gmra.mxu0 %v1943
        %v2849 = vpop.f32.mrf.mxu0
        %v2850 = vadd.f32 %v2785, %v2849
        %2851 = vmatmul.f32.gmra.mxu0 %v1944
        %v2852 = vpop.f32.mrf.mxu0
        %v2853 = vadd.f32 %v2788, %v2852
        %2854 = vdwg.mxu0
        %2855 = vmatpush.msra.mxu0 %v2327
        %2856 = vmatpush.msra.mxu0 %v2325
        %2857 = vmatpush.msra.mxu0 %v2323
        %2858 = vmatpush.msra.mxu0 %v2321
        %2859 = vmatpush.msra.mxu0 %v2319
        %2860 = vmatpush.msra.mxu0 %v2317
        %2861 = vmatpush.msra.mxu0 %v2315
        %2862 = vmatpush.msra.mxu0 %v2313
        %2863 = vmatpush.msra.mxu0 %v2311
        %2864 = vmatpush.msra.mxu0 %v2309
        %2865 = vmatpush.msra.mxu0 %v2307
        %2866 = vmatpush.msra.mxu0 %v2305
        %2867 = vmatpush.msra.mxu0 %v2303
        %2868 = vmatpush.msra.mxu0 %v2301
        %2869 = vmatpush.msra.mxu0 %v2299
        %2870 = vmatpush.msra.mxu0 %v2297
        %2871 = vmatmul.f32.gmra.mxu0 %v2025
        %v2872 = vpop.f32.mrf.mxu0
        %v2873 = vadd.f32 %v2808, %v2872
        %2874 = vmatmul.f32.gmra.mxu0 %v2026
        %v2875 = vpop.f32.mrf.mxu0
        %v2876 = vadd.f32 %v2811, %v2875
        %2877 = vmatmul.f32.gmra.mxu0 %v2027
        %v2878 = vpop.f32.mrf.mxu0
        %v2879 = vadd.f32 %v2814, %v2878
        %2880 = vmatmul.f32.gmra.mxu0 %v2028
        %v2881 = vpop.f32.mrf.mxu0
        %v2882 = vadd.f32 %v2817, %v2881
        %2883 = vmatmul.f32.gmra.mxu0 %v2029
        %v2884 = vpop.f32.mrf.mxu0
        %v2885 = vadd.f32 %v2820, %v2884
        %2886 = vmatmul.f32.gmra.mxu0 %v2030
        %v2887 = vpop.f32.mrf.mxu0
        %v2888 = vadd.f32 %v2823, %v2887
        %2889 = vmatmul.f32.gmra.mxu0 %v2031
        %v2890 = vpop.f32.mrf.mxu0
        %v2891 = vadd.f32 %v2826, %v2890
        %2892 = vmatmul.f32.gmra.mxu0 %v2032
        %v2893 = vpop.f32.mrf.mxu0
        %v2894 = vadd.f32 %v2829, %v2893
        %2895 = vmatmul.f32.gmra.mxu0 %v2033
        %v2896 = vpop.f32.mrf.mxu0
        %v2897 = vadd.f32 %v2832, %v2896
        %2898 = vmatmul.f32.gmra.mxu0 %v2034
        %v2899 = vpop.f32.mrf.mxu0
        %v2900 = vadd.f32 %v2835, %v2899
        %2901 = vmatmul.f32.gmra.mxu0 %v2035
        %v2902 = vpop.f32.mrf.mxu0
        %v2903 = vadd.f32 %v2838, %v2902
        %2904 = vmatmul.f32.gmra.mxu0 %v2036
        %v2905 = vpop.f32.mrf.mxu0
        %v2906 = vadd.f32 %v2841, %v2905
        %2907 = vmatmul.f32.gmra.mxu0 %v2037
        %v2908 = vpop.f32.mrf.mxu0
        %v2909 = vadd.f32 %v2844, %v2908
        %2910 = vmatmul.f32.gmra.mxu0 %v2038
        %v2911 = vpop.f32.mrf.mxu0
        %v2912 = vadd.f32 %v2847, %v2911
        %2913 = vmatmul.f32.gmra.mxu0 %v2039
        %v2914 = vpop.f32.mrf.mxu0
        %v2915 = vadd.f32 %v2850, %v2914
        %2916 = vmatmul.f32.gmra.mxu0 %v2040
        %v2917 = vpop.f32.mrf.mxu0
        %v2918 = vadd.f32 %v2853, %v2917
        %2919 = vdwg.mxu0
        %2920 = vmatpush.msra.mxu0 %v2072
        %2921 = vmatpush.msra.mxu0 %v2070
        %2922 = vmatpush.msra.mxu0 %v2068
        %2923 = vmatpush.msra.mxu0 %v2066
        %2924 = vmatpush.msra.mxu0 %v2064
        %2925 = vmatpush.msra.mxu0 %v2062
        %2926 = vmatpush.msra.mxu0 %v2060
        %2927 = vmatpush.msra.mxu0 %v2058
        %2928 = vmatpush.msra.mxu0 %v2056
        %2929 = vmatpush.msra.mxu0 %v2054
        %2930 = vmatpush.msra.mxu0 %v2052
        %2931 = vmatpush.msra.mxu0 %v2050
        %2932 = vmatpush.msra.mxu0 %v2048
        %2933 = vmatpush.msra.mxu0 %v2046
        %2934 = vmatpush.msra.mxu0 %v2044
        %2935 = vmatpush.msra.mxu0 %v2042
        %2936 = vmatmul.f32.gmra.mxu0 %v1140
        %v2937 = vpop.f32.mrf.mxu0
        %v2938 = vadd.f32 %v2332, %v2937
        %2939 = vmatmul.f32.gmra.mxu0 %v1141
        %v2940 = vpop.f32.mrf.mxu0
        %v2941 = vadd.f32 %v2332, %v2940
        %2942 = vmatmul.f32.gmra.mxu0 %v1142
        %v2943 = vpop.f32.mrf.mxu0
        %v2944 = vadd.f32 %v2332, %v2943
        %2945 = vmatmul.f32.gmra.mxu0 %v1143
        %v2946 = vpop.f32.mrf.mxu0
        %v2947 = vadd.f32 %v2332, %v2946
        %2948 = vmatmul.f32.gmra.mxu0 %v1144
        %v2949 = vpop.f32.mrf.mxu0
        %v2950 = vadd.f32 %v2332, %v2949
        %2951 = vmatmul.f32.gmra.mxu0 %v1145
        %v2952 = vpop.f32.mrf.mxu0
        %v2953 = vadd.f32 %v2332, %v2952
        %2954 = vmatmul.f32.gmra.mxu0 %v1146
        %v2955 = vpop.f32.mrf.mxu0
        %v2956 = vadd.f32 %v2332, %v2955
        %2957 = vmatmul.f32.gmra.mxu0 %v1147
        %v2958 = vpop.f32.mrf.mxu0
        %v2959 = vadd.f32 %v2332, %v2958
        %2960 = vmatmul.f32.gmra.mxu0 %v1148
        %v2961 = vpop.f32.mrf.mxu0
        %v2962 = vadd.f32 %v2332, %v2961
        %2963 = vmatmul.f32.gmra.mxu0 %v1149
        %v2964 = vpop.f32.mrf.mxu0
        %v2965 = vadd.f32 %v2332, %v2964
        %2966 = vmatmul.f32.gmra.mxu0 %v1150
        %v2967 = vpop.f32.mrf.mxu0
        %v2968 = vadd.f32 %v2332, %v2967
        %2969 = vmatmul.f32.gmra.mxu0 %v1151
        %v2970 = vpop.f32.mrf.mxu0
        %v2971 = vadd.f32 %v2332, %v2970
        %2972 = vmatmul.f32.gmra.mxu0 %v1152
        %v2973 = vpop.f32.mrf.mxu0
        %v2974 = vadd.f32 %v2332, %v2973
        %2975 = vmatmul.f32.gmra.mxu0 %v1153
        %v2976 = vpop.f32.mrf.mxu0
        %v2977 = vadd.f32 %v2332, %v2976
        %2978 = vmatmul.f32.gmra.mxu0 %v1154
        %v2979 = vpop.f32.mrf.mxu0
        %v2980 = vadd.f32 %v2332, %v2979
        %2981 = vmatmul.f32.gmra.mxu0 %v1155
        %v2982 = vpop.f32.mrf.mxu0
        %v2983 = vadd.f32 %v2332, %v2982
        %2984 = vdwg.mxu0
        %2985 = vmatpush.msra.mxu0 %v2104
        %2986 = vmatpush.msra.mxu0 %v2102
        %2987 = vmatpush.msra.mxu0 %v2100
        %2988 = vmatpush.msra.mxu0 %v2098
        %2989 = vmatpush.msra.mxu0 %v2096
        %2990 = vmatpush.msra.mxu0 %v2094
        %2991 = vmatpush.msra.mxu0 %v2092
        %2992 = vmatpush.msra.mxu0 %v2090
        %2993 = vmatpush.msra.mxu0 %v2088
        %2994 = vmatpush.msra.mxu0 %v2086
        %2995 = vmatpush.msra.mxu0 %v2084
        %2996 = vmatpush.msra.mxu0 %v2082
        %2997 = vmatpush.msra.mxu0 %v2080
        %2998 = vmatpush.msra.mxu0 %v2078
        %2999 = vmatpush.msra.mxu0 %v2076
        %3000 = vmatpush.msra.mxu0 %v2074
        %3001 = vmatmul.f32.gmra.mxu0 %v1268
        %v3002 = vpop.f32.mrf.mxu0
        %v3003 = vadd.f32 %v2938, %v3002
        %3004 = vmatmul.f32.gmra.mxu0 %v1269
        %v3005 = vpop.f32.mrf.mxu0
        %v3006 = vadd.f32 %v2941, %v3005
        %3007 = vmatmul.f32.gmra.mxu0 %v1270
        %v3008 = vpop.f32.mrf.mxu0
        %v3009 = vadd.f32 %v2944, %v3008
        %3010 = vmatmul.f32.gmra.mxu0 %v1271
        %v3011 = vpop.f32.mrf.mxu0
        %v3012 = vadd.f32 %v2947, %v3011
        %3013 = vmatmul.f32.gmra.mxu0 %v1272
        %v3014 = vpop.f32.mrf.mxu0
        %v3015 = vadd.f32 %v2950, %v3014
        %3016 = vmatmul.f32.gmra.mxu0 %v1273
        %v3017 = vpop.f32.mrf.mxu0
        %v3018 = vadd.f32 %v2953, %v3017
        %3019 = vmatmul.f32.gmra.mxu0 %v1274
        %v3020 = vpop.f32.mrf.mxu0
        %v3021 = vadd.f32 %v2956, %v3020
        %3022 = vmatmul.f32.gmra.mxu0 %v1275
        %v3023 = vpop.f32.mrf.mxu0
        %v3024 = vadd.f32 %v2959, %v3023
        %3025 = vmatmul.f32.gmra.mxu0 %v1276
        %v3026 = vpop.f32.mrf.mxu0
        %v3027 = vadd.f32 %v2962, %v3026
        %3028 = vmatmul.f32.gmra.mxu0 %v1277
        %v3029 = vpop.f32.mrf.mxu0
        %v3030 = vadd.f32 %v2965, %v3029
        %3031 = vmatmul.f32.gmra.mxu0 %v1278
        %v3032 = vpop.f32.mrf.mxu0
        %v3033 = vadd.f32 %v2968, %v3032
        %3034 = vmatmul.f32.gmra.mxu0 %v1279
        %v3035 = vpop.f32.mrf.mxu0
        %v3036 = vadd.f32 %v2971, %v3035
        %3037 = vmatmul.f32.gmra.mxu0 %v1280
        %v3038 = vpop.f32.mrf.mxu0
        %v3039 = vadd.f32 %v2974, %v3038
        %3040 = vmatmul.f32.gmra.mxu0 %v1281
        %v3041 = vpop.f32.mrf.mxu0
        %v3042 = vadd.f32 %v2977, %v3041
        %3043 = vmatmul.f32.gmra.mxu0 %v1282
        %v3044 = vpop.f32.mrf.mxu0
        %v3045 = vadd.f32 %v2980, %v3044
        %3046 = vmatmul.f32.gmra.mxu0 %v1283
        %v3047 = vpop.f32.mrf.mxu0
        %v3048 = vadd.f32 %v2983, %v3047
        %3049 = vdwg.mxu0
        %3050 = vmatpush.msra.mxu0 %v2136
        %3051 = vmatpush.msra.mxu0 %v2134
        %3052 = vmatpush.msra.mxu0 %v2132
        %3053 = vmatpush.msra.mxu0 %v2130
        %3054 = vmatpush.msra.mxu0 %v2128
        %3055 = vmatpush.msra.mxu0 %v2126
        %3056 = vmatpush.msra.mxu0 %v2124
        %3057 = vmatpush.msra.mxu0 %v2122
        %3058 = vmatpush.msra.mxu0 %v2120
        %3059 = vmatpush.msra.mxu0 %v2118
        %3060 = vmatpush.msra.mxu0 %v2116
        %3061 = vmatpush.msra.mxu0 %v2114
        %3062 = vmatpush.msra.mxu0 %v2112
        %3063 = vmatpush.msra.mxu0 %v2110
        %3064 = vmatpush.msra.mxu0 %v2108
        %3065 = vmatpush.msra.mxu0 %v2106
        %3066 = vmatmul.f32.gmra.mxu0 %v1412
        %v3067 = vpop.f32.mrf.mxu0
        %v3068 = vadd.f32 %v3003, %v3067
        %3069 = vmatmul.f32.gmra.mxu0 %v1413
        %v3070 = vpop.f32.mrf.mxu0
        %v3071 = vadd.f32 %v3006, %v3070
        %3072 = vmatmul.f32.gmra.mxu0 %v1414
        %v3073 = vpop.f32.mrf.mxu0
        %v3074 = vadd.f32 %v3009, %v3073
        %3075 = vmatmul.f32.gmra.mxu0 %v1415
        %v3076 = vpop.f32.mrf.mxu0
        %v3077 = vadd.f32 %v3012, %v3076
        %3078 = vmatmul.f32.gmra.mxu0 %v1416
        %v3079 = vpop.f32.mrf.mxu0
        %v3080 = vadd.f32 %v3015, %v3079
        %3081 = vmatmul.f32.gmra.mxu0 %v1417
        %v3082 = vpop.f32.mrf.mxu0
        %v3083 = vadd.f32 %v3018, %v3082
        %3084 = vmatmul.f32.gmra.mxu0 %v1418
        %v3085 = vpop.f32.mrf.mxu0
        %v3086 = vadd.f32 %v3021, %v3085
        %3087 = vmatmul.f32.gmra.mxu0 %v1419
        %v3088 = vpop.f32.mrf.mxu0
        %v3089 = vadd.f32 %v3024, %v3088
        %3090 = vmatmul.f32.gmra.mxu0 %v1420
        %v3091 = vpop.f32.mrf.mxu0
        %v3092 = vadd.f32 %v3027, %v3091
        %3093 = vmatmul.f32.gmra.mxu0 %v1421
        %v3094 = vpop.f32.mrf.mxu0
        %v3095 = vadd.f32 %v3030, %v3094
        %3096 = vmatmul.f32.gmra.mxu0 %v1422
        %v3097 = vpop.f32.mrf.mxu0
        %v3098 = vadd.f32 %v3033, %v3097
        %3099 = vmatmul.f32.gmra.mxu0 %v1423
        %v3100 = vpop.f32.mrf.mxu0
        %v3101 = vadd.f32 %v3036, %v3100
        %3102 = vmatmul.f32.gmra.mxu0 %v1424
        %v3103 = vpop.f32.mrf.mxu0
        %v3104 = vadd.f32 %v3039, %v3103
        %3105 = vmatmul.f32.gmra.mxu0 %v1425
        %v3106 = vpop.f32.mrf.mxu0
        %v3107 = vadd.f32 %v3042, %v3106
        %3108 = vmatmul.f32.gmra.mxu0 %v1426
        %v3109 = vpop.f32.mrf.mxu0
        %v3110 = vadd.f32 %v3045, %v3109
        %3111 = vmatmul.f32.gmra.mxu0 %v1427
        %v3112 = vpop.f32.mrf.mxu0
        %v3113 = vadd.f32 %v3048, %v3112
        %3114 = vdwg.mxu0
        %3115 = vmatpush.msra.mxu0 %v2168
        %3116 = vmatpush.msra.mxu0 %v2166
        %3117 = vmatpush.msra.mxu0 %v2164
        %3118 = vmatpush.msra.mxu0 %v2162
        %3119 = vmatpush.msra.mxu0 %v2160
        %3120 = vmatpush.msra.mxu0 %v2158
        %3121 = vmatpush.msra.mxu0 %v2156
        %3122 = vmatpush.msra.mxu0 %v2154
        %3123 = vmatpush.msra.mxu0 %v2152
        %3124 = vmatpush.msra.mxu0 %v2150
        %3125 = vmatpush.msra.mxu0 %v2148
        %3126 = vmatpush.msra.mxu0 %v2146
        %3127 = vmatpush.msra.mxu0 %v2144
        %3128 = vmatpush.msra.mxu0 %v2142
        %3129 = vmatpush.msra.mxu0 %v2140
        %3130 = vmatpush.msra.mxu0 %v2138
        %3131 = vmatmul.f32.gmra.mxu0 %v1541
        %v3132 = vpop.f32.mrf.mxu0
        %v3133 = vadd.f32 %v3068, %v3132
        %3134 = vmatmul.f32.gmra.mxu0 %v1542
        %v3135 = vpop.f32.mrf.mxu0
        %v3136 = vadd.f32 %v3071, %v3135
        %3137 = vmatmul.f32.gmra.mxu0 %v1543
        %v3138 = vpop.f32.mrf.mxu0
        %v3139 = vadd.f32 %v3074, %v3138
        %3140 = vmatmul.f32.gmra.mxu0 %v1544
        %v3141 = vpop.f32.mrf.mxu0
        %v3142 = vadd.f32 %v3077, %v3141
        %3143 = vmatmul.f32.gmra.mxu0 %v1545
        %v3144 = vpop.f32.mrf.mxu0
        %v3145 = vadd.f32 %v3080, %v3144
        %3146 = vmatmul.f32.gmra.mxu0 %v1546
        %v3147 = vpop.f32.mrf.mxu0
        %v3148 = vadd.f32 %v3083, %v3147
        %3149 = vmatmul.f32.gmra.mxu0 %v1547
        %v3150 = vpop.f32.mrf.mxu0
        %v3151 = vadd.f32 %v3086, %v3150
        %3152 = vmatmul.f32.gmra.mxu0 %v1548
        %v3153 = vpop.f32.mrf.mxu0
        %v3154 = vadd.f32 %v3089, %v3153
        %3155 = vmatmul.f32.gmra.mxu0 %v1549
        %v3156 = vpop.f32.mrf.mxu0
        %v3157 = vadd.f32 %v3092, %v3156
        %3158 = vmatmul.f32.gmra.mxu0 %v1550
        %v3159 = vpop.f32.mrf.mxu0
        %v3160 = vadd.f32 %v3095, %v3159
        %3161 = vmatmul.f32.gmra.mxu0 %v1551
        %v3162 = vpop.f32.mrf.mxu0
        %v3163 = vadd.f32 %v3098, %v3162
        %3164 = vmatmul.f32.gmra.mxu0 %v1552
        %v3165 = vpop.f32.mrf.mxu0
        %v3166 = vadd.f32 %v3101, %v3165
        %3167 = vmatmul.f32.gmra.mxu0 %v1553
        %v3168 = vpop.f32.mrf.mxu0
        %v3169 = vadd.f32 %v3104, %v3168
        %3170 = vmatmul.f32.gmra.mxu0 %v1554
        %v3171 = vpop.f32.mrf.mxu0
        %v3172 = vadd.f32 %v3107, %v3171
        %3173 = vmatmul.f32.gmra.mxu0 %v1555
        %v3174 = vpop.f32.mrf.mxu0
        %v3175 = vadd.f32 %v3110, %v3174
        %3176 = vmatmul.f32.gmra.mxu0 %v1556
        %v3177 = vpop.f32.mrf.mxu0
        %v3178 = vadd.f32 %v3113, %v3177
        %3179 = vdwg.mxu0
        %3180 = vmatpush.msra.mxu0 %v2200
        %3181 = vmatpush.msra.mxu0 %v2198
        %3182 = vmatpush.msra.mxu0 %v2196
        %3183 = vmatpush.msra.mxu0 %v2194
        %3184 = vmatpush.msra.mxu0 %v2192
        %3185 = vmatpush.msra.mxu0 %v2190
        %3186 = vmatpush.msra.mxu0 %v2188
        %3187 = vmatpush.msra.mxu0 %v2186
        %3188 = vmatpush.msra.mxu0 %v2184
        %3189 = vmatpush.msra.mxu0 %v2182
        %3190 = vmatpush.msra.mxu0 %v2180
        %3191 = vmatpush.msra.mxu0 %v2178
        %3192 = vmatpush.msra.mxu0 %v2176
        %3193 = vmatpush.msra.mxu0 %v2174
        %3194 = vmatpush.msra.mxu0 %v2172
        %3195 = vmatpush.msra.mxu0 %v2170
        %3196 = vmatmul.f32.gmra.mxu0 %v1622
        %v3197 = vpop.f32.mrf.mxu0
        %v3198 = vadd.f32 %v3133, %v3197
        %3199 = vmatmul.f32.gmra.mxu0 %v1623
        %v3200 = vpop.f32.mrf.mxu0
        %v3201 = vadd.f32 %v3136, %v3200
        %3202 = vmatmul.f32.gmra.mxu0 %v1624
        %v3203 = vpop.f32.mrf.mxu0
        %v3204 = vadd.f32 %v3139, %v3203
        %3205 = vmatmul.f32.gmra.mxu0 %v1625
        %v3206 = vpop.f32.mrf.mxu0
        %v3207 = vadd.f32 %v3142, %v3206
        %3208 = vmatmul.f32.gmra.mxu0 %v1626
        %v3209 = vpop.f32.mrf.mxu0
        %v3210 = vadd.f32 %v3145, %v3209
        %3211 = vmatmul.f32.gmra.mxu0 %v1627
        %v3212 = vpop.f32.mrf.mxu0
        %v3213 = vadd.f32 %v3148, %v3212
        %3214 = vmatmul.f32.gmra.mxu0 %v1628
        %v3215 = vpop.f32.mrf.mxu0
        %v3216 = vadd.f32 %v3151, %v3215
        %3217 = vmatmul.f32.gmra.mxu0 %v1629
        %v3218 = vpop.f32.mrf.mxu0
        %v3219 = vadd.f32 %v3154, %v3218
        %3220 = vmatmul.f32.gmra.mxu0 %v1630
        %v3221 = vpop.f32.mrf.mxu0
        %v3222 = vadd.f32 %v3157, %v3221
        %3223 = vmatmul.f32.gmra.mxu0 %v1631
        %v3224 = vpop.f32.mrf.mxu0
        %v3225 = vadd.f32 %v3160, %v3224
        %3226 = vmatmul.f32.gmra.mxu0 %v1632
        %v3227 = vpop.f32.mrf.mxu0
        %v3228 = vadd.f32 %v3163, %v3227
        %3229 = vmatmul.f32.gmra.mxu0 %v1633
        %v3230 = vpop.f32.mrf.mxu0
        %v3231 = vadd.f32 %v3166, %v3230
        %3232 = vmatmul.f32.gmra.mxu0 %v1634
        %v3233 = vpop.f32.mrf.mxu0
        %v3234 = vadd.f32 %v3169, %v3233
        %3235 = vmatmul.f32.gmra.mxu0 %v1635
        %v3236 = vpop.f32.mrf.mxu0
        %v3237 = vadd.f32 %v3172, %v3236
        %3238 = vmatmul.f32.gmra.mxu0 %v1636
        %v3239 = vpop.f32.mrf.mxu0
        %v3240 = vadd.f32 %v3175, %v3239
        %3241 = vmatmul.f32.gmra.mxu0 %v1637
        %v3242 = vpop.f32.mrf.mxu0
        %v3243 = vadd.f32 %v3178, %v3242
        %3244 = vdwg.mxu0
        %3245 = vmatpush.msra.mxu0 %v2232
        %3246 = vmatpush.msra.mxu0 %v2230
        %3247 = vmatpush.msra.mxu0 %v2228
        %3248 = vmatpush.msra.mxu0 %v2226
        %3249 = vmatpush.msra.mxu0 %v2224
        %3250 = vmatpush.msra.mxu0 %v2222
        %3251 = vmatpush.msra.mxu0 %v2220
        %3252 = vmatpush.msra.mxu0 %v2218
        %3253 = vmatpush.msra.mxu0 %v2216
        %3254 = vmatpush.msra.mxu0 %v2214
        %3255 = vmatpush.msra.mxu0 %v2212
        %3256 = vmatpush.msra.mxu0 %v2210
        %3257 = vmatpush.msra.mxu0 %v2208
        %3258 = vmatpush.msra.mxu0 %v2206
        %3259 = vmatpush.msra.mxu0 %v2204
        %3260 = vmatpush.msra.mxu0 %v2202
        %3261 = vmatmul.f32.gmra.mxu0 %v1703
        %v3262 = vpop.f32.mrf.mxu0
        %v3263 = vadd.f32 %v3198, %v3262
        %3264 = vmatmul.f32.gmra.mxu0 %v1704
        %v3265 = vpop.f32.mrf.mxu0
        %v3266 = vadd.f32 %v3201, %v3265
        %3267 = vmatmul.f32.gmra.mxu0 %v1705
        %v3268 = vpop.f32.mrf.mxu0
        %v3269 = vadd.f32 %v3204, %v3268
        %3270 = vmatmul.f32.gmra.mxu0 %v1706
        %v3271 = vpop.f32.mrf.mxu0
        %v3272 = vadd.f32 %v3207, %v3271
        %3273 = vmatmul.f32.gmra.mxu0 %v1707
        %v3274 = vpop.f32.mrf.mxu0
        %v3275 = vadd.f32 %v3210, %v3274
        %3276 = vmatmul.f32.gmra.mxu0 %v1708
        %v3277 = vpop.f32.mrf.mxu0
        %v3278 = vadd.f32 %v3213, %v3277
        %3279 = vmatmul.f32.gmra.mxu0 %v1709
        %v3280 = vpop.f32.mrf.mxu0
        %v3281 = vadd.f32 %v3216, %v3280
        %3282 = vmatmul.f32.gmra.mxu0 %v1710
        %v3283 = vpop.f32.mrf.mxu0
        %v3284 = vadd.f32 %v3219, %v3283
        %3285 = vmatmul.f32.gmra.mxu0 %v1711
        %v3286 = vpop.f32.mrf.mxu0
        %v3287 = vadd.f32 %v3222, %v3286
        %3288 = vmatmul.f32.gmra.mxu0 %v1712
        %v3289 = vpop.f32.mrf.mxu0
        %v3290 = vadd.f32 %v3225, %v3289
        %3291 = vmatmul.f32.gmra.mxu0 %v1713
        %v3292 = vpop.f32.mrf.mxu0
        %v3293 = vadd.f32 %v3228, %v3292
        %3294 = vmatmul.f32.gmra.mxu0 %v1714
        %v3295 = vpop.f32.mrf.mxu0
        %v3296 = vadd.f32 %v3231, %v3295
        %3297 = vmatmul.f32.gmra.mxu0 %v1715
        %v3298 = vpop.f32.mrf.mxu0
        %v3299 = vadd.f32 %v3234, %v3298
        %3300 = vmatmul.f32.gmra.mxu0 %v1716
        %v3301 = vpop.f32.mrf.mxu0
        %v3302 = vadd.f32 %v3237, %v3301
        %3303 = vmatmul.f32.gmra.mxu0 %v1717
        %v3304 = vpop.f32.mrf.mxu0
        %v3305 = vadd.f32 %v3240, %v3304
        %3306 = vmatmul.f32.gmra.mxu0 %v1718
        %v3307 = vpop.f32.mrf.mxu0
        %v3308 = vadd.f32 %v3243, %v3307
        %3309 = vdwg.mxu0
        %3310 = vmatpush.msra.mxu0 %v2264
        %3311 = vmatpush.msra.mxu0 %v2262
        %3312 = vmatpush.msra.mxu0 %v2260
        %3313 = vmatpush.msra.mxu0 %v2258
        %3314 = vmatpush.msra.mxu0 %v2256
        %3315 = vmatpush.msra.mxu0 %v2254
        %3316 = vmatpush.msra.mxu0 %v2252
        %3317 = vmatpush.msra.mxu0 %v2250
        %3318 = vmatpush.msra.mxu0 %v2248
        %3319 = vmatpush.msra.mxu0 %v2246
        %3320 = vmatpush.msra.mxu0 %v2244
        %3321 = vmatpush.msra.mxu0 %v2242
        %3322 = vmatpush.msra.mxu0 %v2240
        %3323 = vmatpush.msra.mxu0 %v2238
        %3324 = vmatpush.msra.mxu0 %v2236
        %3325 = vmatpush.msra.mxu0 %v2234
        %3326 = vmatmul.f32.gmra.mxu0 %v1848
        %v3327 = vpop.f32.mrf.mxu0
        %v3328 = vadd.f32 %v3263, %v3327
        %3329 = vmatmul.f32.gmra.mxu0 %v1849
        %v3330 = vpop.f32.mrf.mxu0
        %v3331 = vadd.f32 %v3266, %v3330
        %3332 = vmatmul.f32.gmra.mxu0 %v1850
        %v3333 = vpop.f32.mrf.mxu0
        %v3334 = vadd.f32 %v3269, %v3333
        %3335 = vmatmul.f32.gmra.mxu0 %v1851
        %v3336 = vpop.f32.mrf.mxu0
        %v3337 = vadd.f32 %v3272, %v3336
        %3338 = vmatmul.f32.gmra.mxu0 %v1852
        %v3339 = vpop.f32.mrf.mxu0
        %v3340 = vadd.f32 %v3275, %v3339
        %3341 = vmatmul.f32.gmra.mxu0 %v1853
        %v3342 = vpop.f32.mrf.mxu0
        %v3343 = vadd.f32 %v3278, %v3342
        %3344 = vmatmul.f32.gmra.mxu0 %v1854
        %v3345 = vpop.f32.mrf.mxu0
        %v3346 = vadd.f32 %v3281, %v3345
        %3347 = vmatmul.f32.gmra.mxu0 %v1855
        %v3348 = vpop.f32.mrf.mxu0
        %v3349 = vadd.f32 %v3284, %v3348
        %3350 = vmatmul.f32.gmra.mxu0 %v1856
        %v3351 = vpop.f32.mrf.mxu0
        %v3352 = vadd.f32 %v3287, %v3351
        %3353 = vmatmul.f32.gmra.mxu0 %v1857
        %v3354 = vpop.f32.mrf.mxu0
        %v3355 = vadd.f32 %v3290, %v3354
        %3356 = vmatmul.f32.gmra.mxu0 %v1858
        %v3357 = vpop.f32.mrf.mxu0
        %v3358 = vadd.f32 %v3293, %v3357
        %3359 = vmatmul.f32.gmra.mxu0 %v1859
        %v3360 = vpop.f32.mrf.mxu0
        %v3361 = vadd.f32 %v3296, %v3360
        %3362 = vmatmul.f32.gmra.mxu0 %v1860
        %v3363 = vpop.f32.mrf.mxu0
        %v3364 = vadd.f32 %v3299, %v3363
        %3365 = vmatmul.f32.gmra.mxu0 %v1861
        %v3366 = vpop.f32.mrf.mxu0
        %v3367 = vadd.f32 %v3302, %v3366
        %3368 = vmatmul.f32.gmra.mxu0 %v1862
        %v3369 = vpop.f32.mrf.mxu0
        %v3370 = vadd.f32 %v3305, %v3369
        %3371 = vmatmul.f32.gmra.mxu0 %v1863
        %v3372 = vpop.f32.mrf.mxu0
        %v3373 = vadd.f32 %v3308, %v3372
        %3374 = vdwg.mxu0
        %3375 = vmatpush.msra.mxu0 %v2296
        %3376 = vmatpush.msra.mxu0 %v2294
        %3377 = vmatpush.msra.mxu0 %v2292
        %3378 = vmatpush.msra.mxu0 %v2290
        %3379 = vmatpush.msra.mxu0 %v2288
        %3380 = vmatpush.msra.mxu0 %v2286
        %3381 = vmatpush.msra.mxu0 %v2284
        %3382 = vmatpush.msra.mxu0 %v2282
        %3383 = vmatpush.msra.mxu0 %v2280
        %3384 = vmatpush.msra.mxu0 %v2278
        %3385 = vmatpush.msra.mxu0 %v2276
        %3386 = vmatpush.msra.mxu0 %v2274
        %3387 = vmatpush.msra.mxu0 %v2272
        %3388 = vmatpush.msra.mxu0 %v2270
        %3389 = vmatpush.msra.mxu0 %v2268
        %3390 = vmatpush.msra.mxu0 %v2266
        %3391 = vmatmul.f32.gmra.mxu0 %v1929
        %v3392 = vpop.f32.mrf.mxu0
        %v3393 = vadd.f32 %v3328, %v3392
        %3394 = vmatmul.f32.gmra.mxu0 %v1930
        %v3395 = vpop.f32.mrf.mxu0
        %v3396 = vadd.f32 %v3331, %v3395
        %3397 = vmatmul.f32.gmra.mxu0 %v1931
        %v3398 = vpop.f32.mrf.mxu0
        %v3399 = vadd.f32 %v3334, %v3398
        %3400 = vmatmul.f32.gmra.mxu0 %v1932
        %v3401 = vpop.f32.mrf.mxu0
        %v3402 = vadd.f32 %v3337, %v3401
        %3403 = vmatmul.f32.gmra.mxu0 %v1933
        %v3404 = vpop.f32.mrf.mxu0
        %v3405 = vadd.f32 %v3340, %v3404
        %3406 = vmatmul.f32.gmra.mxu0 %v1934
        %v3407 = vpop.f32.mrf.mxu0
        %v3408 = vadd.f32 %v3343, %v3407
        %3409 = vmatmul.f32.gmra.mxu0 %v1935
        %v3410 = vpop.f32.mrf.mxu0
        %v3411 = vadd.f32 %v3346, %v3410
        %3412 = vmatmul.f32.gmra.mxu0 %v1936
        %v3413 = vpop.f32.mrf.mxu0
        %v3414 = vadd.f32 %v3349, %v3413
        %3415 = vmatmul.f32.gmra.mxu0 %v1937
        %v3416 = vpop.f32.mrf.mxu0
        %v3417 = vadd.f32 %v3352, %v3416
        %3418 = vmatmul.f32.gmra.mxu0 %v1938
        %v3419 = vpop.f32.mrf.mxu0
        %v3420 = vadd.f32 %v3355, %v3419
        %3421 = vmatmul.f32.gmra.mxu0 %v1939
        %v3422 = vpop.f32.mrf.mxu0
        %v3423 = vadd.f32 %v3358, %v3422
        %3424 = vmatmul.f32.gmra.mxu0 %v1940
        %v3425 = vpop.f32.mrf.mxu0
        %v3426 = vadd.f32 %v3361, %v3425
        %3427 = vmatmul.f32.gmra.mxu0 %v1941
        %v3428 = vpop.f32.mrf.mxu0
        %v3429 = vadd.f32 %v3364, %v3428
        %3430 = vmatmul.f32.gmra.mxu0 %v1942
        %v3431 = vpop.f32.mrf.mxu0
        %v3432 = vadd.f32 %v3367, %v3431
        %3433 = vmatmul.f32.gmra.mxu0 %v1943
        %v3434 = vpop.f32.mrf.mxu0
        %v3435 = vadd.f32 %v3370, %v3434
        %3436 = vmatmul.f32.gmra.mxu0 %v1944
        %v3437 = vpop.f32.mrf.mxu0
        %v3438 = vadd.f32 %v3373, %v3437
        %3439 = vdwg.mxu0
        %3440 = vmatpush.msra.mxu0 %v2328
        %3441 = vmatpush.msra.mxu0 %v2326
        %3442 = vmatpush.msra.mxu0 %v2324
        %3443 = vmatpush.msra.mxu0 %v2322
        %3444 = vmatpush.msra.mxu0 %v2320
        %3445 = vmatpush.msra.mxu0 %v2318
        %3446 = vmatpush.msra.mxu0 %v2316
        %3447 = vmatpush.msra.mxu0 %v2314
        %3448 = vmatpush.msra.mxu0 %v2312
        %3449 = vmatpush.msra.mxu0 %v2310
        %3450 = vmatpush.msra.mxu0 %v2308
        %3451 = vmatpush.msra.mxu0 %v2306
        %3452 = vmatpush.msra.mxu0 %v2304
        %3453 = vmatpush.msra.mxu0 %v2302
        %3454 = vmatpush.msra.mxu0 %v2300
        %3455 = vmatpush.msra.mxu0 %v2298
        %3456 = vmatmul.f32.gmra.mxu0 %v2025
        %v3457 = vpop.f32.mrf.mxu0
        %v3458 = vadd.f32 %v3393, %v3457
        %3459 = vmatmul.f32.gmra.mxu0 %v2026
        %v3460 = vpop.f32.mrf.mxu0
        %v3461 = vadd.f32 %v3396, %v3460
        %3462 = vmatmul.f32.gmra.mxu0 %v2027
        %v3463 = vpop.f32.mrf.mxu0
        %v3464 = vadd.f32 %v3399, %v3463
        %3465 = vmatmul.f32.gmra.mxu0 %v2028
        %v3466 = vpop.f32.mrf.mxu0
        %v3467 = vadd.f32 %v3402, %v3466
        %3468 = vmatmul.f32.gmra.mxu0 %v2029
        %v3469 = vpop.f32.mrf.mxu0
        %v3470 = vadd.f32 %v3405, %v3469
        %3471 = vmatmul.f32.gmra.mxu0 %v2030
        %v3472 = vpop.f32.mrf.mxu0
        %v3473 = vadd.f32 %v3408, %v3472
        %3474 = vmatmul.f32.gmra.mxu0 %v2031
        %v3475 = vpop.f32.mrf.mxu0
        %v3476 = vadd.f32 %v3411, %v3475
        %3477 = vmatmul.f32.gmra.mxu0 %v2032
        %v3478 = vpop.f32.mrf.mxu0
        %v3479 = vadd.f32 %v3414, %v3478
        %3480 = vmatmul.f32.gmra.mxu0 %v2033
        %v3481 = vpop.f32.mrf.mxu0
        %v3482 = vadd.f32 %v3417, %v3481
        %3483 = vmatmul.f32.gmra.mxu0 %v2034
        %v3484 = vpop.f32.mrf.mxu0
        %v3485 = vadd.f32 %v3420, %v3484
        %3486 = vmatmul.f32.gmra.mxu0 %v2035
        %v3487 = vpop.f32.mrf.mxu0
        %v3488 = vadd.f32 %v3423, %v3487
        %3489 = vmatmul.f32.gmra.mxu0 %v2036
        %v3490 = vpop.f32.mrf.mxu0
        %v3491 = vadd.f32 %v3426, %v3490
        %3492 = vmatmul.f32.gmra.mxu0 %v2037
        %v3493 = vpop.f32.mrf.mxu0
        %v3494 = vadd.f32 %v3429, %v3493
        %3495 = vmatmul.f32.gmra.mxu0 %v2038
        %v3496 = vpop.f32.mrf.mxu0
        %v3497 = vadd.f32 %v3432, %v3496
        %3498 = vmatmul.f32.gmra.mxu0 %v2039
        %v3499 = vpop.f32.mrf.mxu0
        %v3500 = vadd.f32 %v3435, %v3499
        %3501 = vmatmul.f32.gmra.mxu0 %v2040
        %v3502 = vpop.f32.mrf.mxu0
        %v3503 = vadd.f32 %v3438, %v3502
        %3504 = vdwg.mxu0
        %v3505 = vmax.f32 %v2873, 0.0
        %v3506 = vmax.f32 %v3458, 0.0
        %v3507 = vmax.f32 %v2876, 0.0
        %v3508 = vmax.f32 %v3461, 0.0
        %v3509 = vmax.f32 %v2879, 0.0
        %v3510 = vmax.f32 %v3464, 0.0
        %v3511 = vmax.f32 %v2882, 0.0
        %v3512 = vmax.f32 %v3467, 0.0
        %v3513 = vmax.f32 %v2885, 0.0
        %v3514 = vmax.f32 %v3470, 0.0
        %v3515 = vmax.f32 %v2888, 0.0
        %v3516 = vmax.f32 %v3473, 0.0
        %v3517 = vmax.f32 %v2891, 0.0
        %v3518 = vmax.f32 %v3476, 0.0
        %v3519 = vmax.f32 %v2894, 0.0
        %v3520 = vmax.f32 %v3479, 0.0
        %v3521 = vmax.f32 %v2897, 0.0
        %v3522 = vmax.f32 %v3482, 0.0
        %v3523 = vmax.f32 %v2900, 0.0
        %v3524 = vmax.f32 %v3485, 0.0
        %v3525 = vmax.f32 %v2903, 0.0
        %v3526 = vmax.f32 %v3488, 0.0
        %v3527 = vmax.f32 %v2906, 0.0
        %v3528 = vmax.f32 %v3491, 0.0
        %v3529 = vmax.f32 %v2909, 0.0
        %v3530 = vmax.f32 %v3494, 0.0
        %v3531 = vmax.f32 %v2912, 0.0
        %v3532 = vmax.f32 %v3497, 0.0
        %v3533 = vmax.f32 %v2915, 0.0
        %v3534 = vmax.f32 %v3500, 0.0
        %v3535 = vmax.f32 %v2918, 0.0
        %v3536 = vmax.f32 %v3503, 0.0
        %v3537 = vlaneseq
        %v3538 = vand.u32 %v3537, 127
        %v3539 = vshra.s32 %v3538, 6
        %vm3540 = vcmp.eq.s32.totalorder %v3539, %v884
        %v3541 = vsel %vm3540, 0.015625, 0.0
        %3542 = vmatpush.msra.mxu0 %v3535
        %3543 = vmatpush.msra.mxu0 %v3533
        %3544 = vmatpush.msra.mxu0 %v3531
        %3545 = vmatpush.msra.mxu0 %v3529
        %3546 = vmatpush.msra.mxu0 %v3527
        %3547 = vmatpush.msra.mxu0 %v3525
        %3548 = vmatpush.msra.mxu0 %v3523
        %3549 = vmatpush.msra.mxu0 %v3521
        %3550 = vmatpush.msra.mxu0 %v3519
        %3551 = vmatpush.msra.mxu0 %v3517
        %3552 = vmatpush.msra.mxu0 %v3515
        %3553 = vmatpush.msra.mxu0 %v3513
        %3554 = vmatpush.msra.mxu0 %v3511
        %3555 = vmatpush.msra.mxu0 %v3509
        %3556 = vmatpush.msra.mxu0 %v3507
        %3557 = vmatpush.msra.mxu0 %v3505
        %3558 = vmatmul.f32.gmra.mxu0 %v3541
        %v3559 = vpop.f32.mrf.mxu0
        %v3560 = vadd.f32 0.0, %v3559
        %3561 = vdwg.mxu0
        %3562 = vmatpush.msra.mxu0 %v3536
        %3563 = vmatpush.msra.mxu0 %v3534
        %3564 = vmatpush.msra.mxu0 %v3532
        %3565 = vmatpush.msra.mxu0 %v3530
        %3566 = vmatpush.msra.mxu0 %v3528
        %3567 = vmatpush.msra.mxu0 %v3526
        %3568 = vmatpush.msra.mxu0 %v3524
        %3569 = vmatpush.msra.mxu0 %v3522
        %3570 = vmatpush.msra.mxu0 %v3520
        %3571 = vmatpush.msra.mxu0 %v3518
        %3572 = vmatpush.msra.mxu0 %v3516
        %3573 = vmatpush.msra.mxu0 %v3514
        %3574 = vmatpush.msra.mxu0 %v3512
        %3575 = vmatpush.msra.mxu0 %v3510
        %3576 = vmatpush.msra.mxu0 %v3508
        %3577 = vmatpush.msra.mxu0 %v3506
        %3578 = vmatmul.f32.gmra.mxu0 %v3541
        %v3579 = vpop.f32.mrf.mxu0
        %v3580 = vadd.f32 0.0, %v3579
        %3581 = vdwg.mxu0
        %v3582 = vld [vmem:[%s531] sm:$0xff]
        %v3583 = vld [vmem:[%s531 + $0x8] sm:$0xff]
        %v3584 = vld [vmem:[%s531 + $0x10] sm:$0xff]
        %v3585 = vld [vmem:[%s531 + $0x18] sm:$0xff]
        %v3586 = vld [vmem:[%s531 + $0x20] sm:$0xff]
        %v3587 = vld [vmem:[%s531 + $0x28] sm:$0xff]
        %v3588 = vld [vmem:[%s531 + $0x30] sm:$0xff]
        %v3589 = vld [vmem:[%s531 + $0x38] sm:$0xff]
        %v3590 = vld [vmem:[%s531 + $0x40] sm:$0xff]
        %v3591 = vld [vmem:[%s531 + $0x48] sm:$0xff]
        %v3592 = vld [vmem:[%s531 + $0x50] sm:$0xff]
        %v3593 = vld [vmem:[%s531 + $0x58] sm:$0xff]
        %v3594 = vld [vmem:[%s531 + $0x60] sm:$0xff]
        %v3595 = vld [vmem:[%s531 + $0x68] sm:$0xff]
        %v3596 = vld [vmem:[%s531 + $0x70] sm:$0xff]
        %v3597 = vld [vmem:[%s531 + $0x78] sm:$0xff]
        %v3598 = vld [vmem:[%s531 + $0x80] sm:$0xff]
        %v3599 = vld [vmem:[%s531 + $0x88] sm:$0xff]
        %v3600 = vld [vmem:[%s531 + $0x90] sm:$0xff]
        %v3601 = vld [vmem:[%s531 + $0x98] sm:$0xff]
        %v3602 = vld [vmem:[%s531 + $0xa0] sm:$0xff]
        %v3603 = vld [vmem:[%s531 + $0xa8] sm:$0xff]
        %v3604 = vld [vmem:[%s531 + $0xb0] sm:$0xff]
        %v3605 = vld [vmem:[%s531 + $0xb8] sm:$0xff]
        %v3606 = vld [vmem:[%s531 + $0xc0] sm:$0xff]
        %v3607 = vld [vmem:[%s531 + $0xc8] sm:$0xff]
        %v3608 = vld [vmem:[%s531 + $0xd0] sm:$0xff]
        %v3609 = vld [vmem:[%s531 + $0xd8] sm:$0xff]
        %v3610 = vld [vmem:[%s531 + $0xe0] sm:$0xff]
        %v3611 = vld [vmem:[%s531 + $0xe8] sm:$0xff]
        %v3612 = vld [vmem:[%s531 + $0xf0] sm:$0xff]
        %v3613 = vld [vmem:[%s531 + $0xf8] sm:$0xff]
        %v3614 = vld [vmem:[%s540] sm:$0x1]
        %v3616 = vperm.slane %v3614, 0
        %3618 = vmatpush.msra.mxu0 %v3597
        %3619 = vmatpush.msra.mxu0 %v3596
        %3620 = vmatpush.msra.mxu0 %v3595
        %3621 = vmatpush.msra.mxu0 %v3594
        %3622 = vmatpush.msra.mxu0 %v3593
        %3623 = vmatpush.msra.mxu0 %v3592
        %3624 = vmatpush.msra.mxu0 %v3591
        %3625 = vmatpush.msra.mxu0 %v3590
        %3626 = vmatpush.msra.mxu0 %v3589
        %3627 = vmatpush.msra.mxu0 %v3588
        %3628 = vmatpush.msra.mxu0 %v3587
        %3629 = vmatpush.msra.mxu0 %v3586
        %3630 = vmatpush.msra.mxu0 %v3585
        %3631 = vmatpush.msra.mxu0 %v3584
        %3632 = vmatpush.msra.mxu0 %v3583
        %3633 = vmatpush.msra.mxu0 %v3582
        %3634 = vmatmul.f32.gmra.mxu0 %v3560
        %v3635 = vpop.f32.mrf.mxu0
        %v3636 = vadd.f32 %v3616, %v3635
        %3637 = vdwg.mxu0
        %3638 = vmatpush.msra.mxu0 %v3613
        %3639 = vmatpush.msra.mxu0 %v3612
        %3640 = vmatpush.msra.mxu0 %v3611
        %3641 = vmatpush.msra.mxu0 %v3610
        %3642 = vmatpush.msra.mxu0 %v3609
        %3643 = vmatpush.msra.mxu0 %v3608
        %3644 = vmatpush.msra.mxu0 %v3607
        %3645 = vmatpush.msra.mxu0 %v3606
        %3646 = vmatpush.msra.mxu0 %v3605
        %3647 = vmatpush.msra.mxu0 %v3604
        %3648 = vmatpush.msra.mxu0 %v3603
        %3649 = vmatpush.msra.mxu0 %v3602
        %3650 = vmatpush.msra.mxu0 %v3601
        %3651 = vmatpush.msra.mxu0 %v3600
        %3652 = vmatpush.msra.mxu0 %v3599
        %3653 = vmatpush.msra.mxu0 %v3598
        %3654 = vmatmul.f32.gmra.mxu0 %v3580
        %v3655 = vpop.f32.mrf.mxu0
        %v3656 = vadd.f32 %v3636, %v3655
        %3657 = vdwg.mxu0
        %v3658 = vmin.f32 %v3656, 0.0
        %v3659 = vmul.f32 %v3658, 1.442695
        %v3660 = vpow.pop %v3659
        %v3661 = vsub.f32 %v3660, 1.0
        %vm3662 = vcmp.gt.f32.partialorder %v3656, 0.0
        %v3663 = vsel %vm3662, %v3656, %v3661
        %v3664 = vld [vmem:[%s550] sm:$0xff]
        %v3665 = vld [vmem:[%s550 + $0x8] sm:$0xff]
        %v3666 = vld [vmem:[%s550 + $0x10] sm:$0xff]
        %v3667 = vld [vmem:[%s550 + $0x18] sm:$0xff]
        %v3668 = vld [vmem:[%s550 + $0x20] sm:$0xff]
        %v3669 = vld [vmem:[%s550 + $0x28] sm:$0xff]
        %v3670 = vld [vmem:[%s550 + $0x30] sm:$0xff]
        %v3671 = vld [vmem:[%s550 + $0x38] sm:$0xff]
        %v3672 = vld [vmem:[%s550 + $0x40] sm:$0xff]
        %v3673 = vld [vmem:[%s550 + $0x48] sm:$0xff]
        %v3674 = vld [vmem:[%s550 + $0x50] sm:$0xff]
        %v3675 = vld [vmem:[%s550 + $0x58] sm:$0xff]
        %v3676 = vld [vmem:[%s550 + $0x60] sm:$0xff]
        %v3677 = vld [vmem:[%s550 + $0x68] sm:$0xff]
        %v3678 = vld [vmem:[%s550 + $0x70] sm:$0xff]
        %v3679 = vld [vmem:[%s550 + $0x78] sm:$0xff]
        %v3680 = vld [vmem:[%s550 + $0x80] sm:$0xff]
        %v3681 = vld [vmem:[%s550 + $0x88] sm:$0xff]
        %v3682 = vld [vmem:[%s550 + $0x90] sm:$0xff]
        %v3683 = vld [vmem:[%s550 + $0x98] sm:$0xff]
        %v3684 = vld [vmem:[%s550 + $0xa0] sm:$0xff]
        %v3685 = vld [vmem:[%s550 + $0xa8] sm:$0xff]
        %v3686 = vld [vmem:[%s550 + $0xb0] sm:$0xff]
        %v3687 = vld [vmem:[%s550 + $0xb8] sm:$0xff]
        %v3688 = vld [vmem:[%s550 + $0xc0] sm:$0xff]
        %v3689 = vld [vmem:[%s550 + $0xc8] sm:$0xff]
        %v3690 = vld [vmem:[%s550 + $0xd0] sm:$0xff]
        %v3691 = vld [vmem:[%s550 + $0xd8] sm:$0xff]
        %v3692 = vld [vmem:[%s550 + $0xe0] sm:$0xff]
        %v3693 = vld [vmem:[%s550 + $0xe8] sm:$0xff]
        %v3694 = vld [vmem:[%s550 + $0xf0] sm:$0xff]
        %v3695 = vld [vmem:[%s550 + $0xf8] sm:$0xff]
        %v3696 = vld [vmem:[%s550 + $0x100] sm:$0xff]
        %v3697 = vld [vmem:[%s550 + $0x108] sm:$0xff]
        %v3698 = vld [vmem:[%s550 + $0x110] sm:$0xff]
        %v3699 = vld [vmem:[%s550 + $0x118] sm:$0xff]
        %v3700 = vld [vmem:[%s550 + $0x120] sm:$0xff]
        %v3701 = vld [vmem:[%s550 + $0x128] sm:$0xff]
        %v3702 = vld [vmem:[%s550 + $0x130] sm:$0xff]
        %v3703 = vld [vmem:[%s550 + $0x138] sm:$0xff]
        %v3704 = vld [vmem:[%s550 + $0x140] sm:$0xff]
        %v3705 = vld [vmem:[%s550 + $0x148] sm:$0xff]
        %v3706 = vld [vmem:[%s550 + $0x150] sm:$0xff]
        %v3707 = vld [vmem:[%s550 + $0x158] sm:$0xff]
        %v3708 = vld [vmem:[%s550 + $0x160] sm:$0xff]
        %v3709 = vld [vmem:[%s550 + $0x168] sm:$0xff]
        %v3710 = vld [vmem:[%s550 + $0x170] sm:$0xff]
        %v3711 = vld [vmem:[%s550 + $0x178] sm:$0xff]
        %v3712 = vld [vmem:[%s550 + $0x180] sm:$0xff]
        %v3713 = vld [vmem:[%s550 + $0x188] sm:$0xff]
        %v3714 = vld [vmem:[%s550 + $0x190] sm:$0xff]
        %v3715 = vld [vmem:[%s550 + $0x198] sm:$0xff]
        %v3716 = vld [vmem:[%s550 + $0x1a0] sm:$0xff]
        %v3717 = vld [vmem:[%s550 + $0x1a8] sm:$0xff]
        %v3718 = vld [vmem:[%s550 + $0x1b0] sm:$0xff]
        %v3719 = vld [vmem:[%s550 + $0x1b8] sm:$0xff]
        %v3720 = vld [vmem:[%s550 + $0x1c0] sm:$0xff]
        %v3721 = vld [vmem:[%s550 + $0x1c8] sm:$0xff]
        %v3722 = vld [vmem:[%s550 + $0x1d0] sm:$0xff]
        %v3723 = vld [vmem:[%s550 + $0x1d8] sm:$0xff]
        %v3724 = vld [vmem:[%s550 + $0x1e0] sm:$0xff]
        %v3725 = vld [vmem:[%s550 + $0x1e8] sm:$0xff]
        %v3726 = vld [vmem:[%s550 + $0x1f0] sm:$0xff]
        %v3727 = vld [vmem:[%s550 + $0x1f8] sm:$0xff]
        %v3728 = vld [vmem:[%s560] sm:$0xf]
        %v3730 = vperm.slane %v3728, 0
        %v3731 = vperm.slane %v3728, 1
        %v3732 = vperm.slane %v3728, 2
        %v3733 = vperm.slane %v3728, 3
        %3738 = vmatpush.msra.mxu0 %v3724
        %3739 = vmatpush.msra.mxu0 %v3720
        %3740 = vmatpush.msra.mxu0 %v3716
        %3741 = vmatpush.msra.mxu0 %v3712
        %3742 = vmatpush.msra.mxu0 %v3708
        %3743 = vmatpush.msra.mxu0 %v3704
        %3744 = vmatpush.msra.mxu0 %v3700
        %3745 = vmatpush.msra.mxu0 %v3696
        %3746 = vmatpush.msra.mxu0 %v3692
        %3747 = vmatpush.msra.mxu0 %v3688
        %3748 = vmatpush.msra.mxu0 %v3684
        %3749 = vmatpush.msra.mxu0 %v3680
        %3750 = vmatpush.msra.mxu0 %v3676
        %3751 = vmatpush.msra.mxu0 %v3672
        %3752 = vmatpush.msra.mxu0 %v3668
        %3753 = vmatpush.msra.mxu0 %v3664
        %3754 = vmatmul.f32.gmra.mxu0 %v3663
        %v3755 = vpop.f32.mrf.mxu0
        %v3756 = vadd.f32 %v3730, %v3755
        %3757 = vdwg.mxu0
        %3758 = vmatpush.msra.mxu0 %v3725
        %3759 = vmatpush.msra.mxu0 %v3721
        %3760 = vmatpush.msra.mxu0 %v3717
        %3761 = vmatpush.msra.mxu0 %v3713
        %3762 = vmatpush.msra.mxu0 %v3709
        %3763 = vmatpush.msra.mxu0 %v3705
        %3764 = vmatpush.msra.mxu0 %v3701
        %3765 = vmatpush.msra.mxu0 %v3697
        %3766 = vmatpush.msra.mxu0 %v3693
        %3767 = vmatpush.msra.mxu0 %v3689
        %3768 = vmatpush.msra.mxu0 %v3685
        %3769 = vmatpush.msra.mxu0 %v3681
        %3770 = vmatpush.msra.mxu0 %v3677
        %3771 = vmatpush.msra.mxu0 %v3673
        %3772 = vmatpush.msra.mxu0 %v3669
        %3773 = vmatpush.msra.mxu0 %v3665
        %3774 = vmatmul.f32.gmra.mxu0 %v3663
        %v3775 = vpop.f32.mrf.mxu0
        %v3776 = vadd.f32 %v3731, %v3775
        %3777 = vdwg.mxu0
        %3778 = vmatpush.msra.mxu0 %v3726
        %3779 = vmatpush.msra.mxu0 %v3722
        %3780 = vmatpush.msra.mxu0 %v3718
        %3781 = vmatpush.msra.mxu0 %v3714
        %3782 = vmatpush.msra.mxu0 %v3710
        %3783 = vmatpush.msra.mxu0 %v3706
        %3784 = vmatpush.msra.mxu0 %v3702
        %3785 = vmatpush.msra.mxu0 %v3698
        %3786 = vmatpush.msra.mxu0 %v3694
        %3787 = vmatpush.msra.mxu0 %v3690
        %3788 = vmatpush.msra.mxu0 %v3686
        %3789 = vmatpush.msra.mxu0 %v3682
        %3790 = vmatpush.msra.mxu0 %v3678
        %3791 = vmatpush.msra.mxu0 %v3674
        %3792 = vmatpush.msra.mxu0 %v3670
        %3793 = vmatpush.msra.mxu0 %v3666
        %3794 = vmatmul.f32.gmra.mxu0 %v3663
        %v3795 = vpop.f32.mrf.mxu0
        %v3796 = vadd.f32 %v3732, %v3795
        %3797 = vdwg.mxu0
        %3798 = vmatpush.msra.mxu0 %v3727
        %3799 = vmatpush.msra.mxu0 %v3723
        %3800 = vmatpush.msra.mxu0 %v3719
        %3801 = vmatpush.msra.mxu0 %v3715
        %3802 = vmatpush.msra.mxu0 %v3711
        %3803 = vmatpush.msra.mxu0 %v3707
        %3804 = vmatpush.msra.mxu0 %v3703
        %3805 = vmatpush.msra.mxu0 %v3699
        %3806 = vmatpush.msra.mxu0 %v3695
        %3807 = vmatpush.msra.mxu0 %v3691
        %3808 = vmatpush.msra.mxu0 %v3687
        %3809 = vmatpush.msra.mxu0 %v3683
        %3810 = vmatpush.msra.mxu0 %v3679
        %3811 = vmatpush.msra.mxu0 %v3675
        %3812 = vmatpush.msra.mxu0 %v3671
        %3813 = vmatpush.msra.mxu0 %v3667
        %3814 = vmatmul.f32.gmra.mxu0 %v3663
        %v3815 = vpop.f32.mrf.mxu0
        %v3816 = vadd.f32 %v3733, %v3815
        %3817 = vdwg.mxu0
        %v3822 = vrot.slane %v3776, 6
        %v3823 = vrot.slane %v3796, 4
        %v3824 = vrot.slane %v3816, 2
        %vm3825 = vcmask 1041408
        %v3826 = vsel %vm3825, %v3756, %v3822
        %vm3827 = vcmask 1045508
        %v3828 = vsel %vm3827, %v3823, %v3824
        %vm3829 = vcmask 1043456
        %v3830 = vsel %vm3829, %v3826, %v3828
        %3832 = vst [vmem:[%s633] sm:$0xff] %v3830
        %p3833 = scmp.lt.s32.totalorder %s33, 2
        %s3834 = scalar_select %p3833, %s33, 2
        %s3835 = smul.addr %s3834, 4
        %s3836 = smul.addr %s3835, 2
        %s3837 = scalar_lea.vmem %s9, %s3836
        // Predicated region
        $region93: #{hifd2_forward.2} parent=55 // pred_check
          %p3838 = pneg %p280
        $region94: #{hifd2_forward.2} parent=55 // pred_check_branch
          %3840 = sbr.rel (%p3838) target = $region96
        $region95: #{hifd2_forward.2} parent=55 // pred_region
          _
        $region96: #{hifd2_forward.2} parent=55 // pred_fallthru
          _
      $region56: #{hifd2_forward.2} parent=5 // pred_fallthru
        _
      %p3841 = scmp.le.s32.totalorder 2, %s28
      // Predicated region
      $region97: #{hifd2_forward.2} parent=5 // pred_check
        %p3842 = pneg %p3841
      $region98: #{hifd2_forward.2} parent=5 // pred_check_branch
        %3844 = sbr.rel (%p3842) target = $region100
      $region99: #{hifd2_forward.2} parent=5 // pred_region
        %s3845 = ssub.s32 %s28, 2
        // Predicated region
        $region101: #{hifd2_forward.2} parent=99 // pred_check
          %p3846 = pneg %p286
        $region102: #{hifd2_forward.2} parent=99 // pred_check_branch
          %3848 = sbr.rel (%p3846) target = $region104
        $region103: #{hifd2_forward.2} parent=99 // pred_region
          %p3849 = scmp.lt.s32.totalorder %s34, 2
          %s3850 = scalar_select %p3849, %s34, 2
          %s3851 = smul.addr %s3850, 4
          %s3852 = smul.addr %s3851, 2
          %s3853 = scalar_lea.vmem %s9, %s3852
        $region104: #{hifd2_forward.2} parent=99 // pred_fallthru
          _
      $region100: #{hifd2_forward.2} parent=5 // pred_fallthru
        _
    $region6: #{hifd2_forward.2} parent=1 // loop_footer
      %s32 = sadd.s32 1, %s28
    $region7: #{hifd2_forward.2} parent=1 // loop_footer_branch
      %27 = sbr.rel target = $region3
    $region8: #{hifd2_forward.2} parent=1 // loop_exit
      _
    %3854 = vsyncpa [#allocation4], 1
    %s3855 = scalar_lea.sflag [#allocation4], 1
    %3856 = vsyncpa %s3855, 1
    %3857 = vsyncpa [#allocation6], 1
    %s3858 = scalar_lea.sflag [#allocation6], 1
    %3859 = vsyncpa %s3858, 1
    %3860 = vsyncpa [#allocation9], 1
    %s3861 = scalar_lea.sflag [#allocation9], 1
    %3862 = vsyncpa %s3861, 1
    %3863 = vsyncpa [#allocation12], 1
    %s3864 = scalar_lea.sflag [#allocation12], 1
    %3865 = vsyncpa %s3864, 1
    %3866 = vsyncpa [#allocation15], 1
    %s3867 = scalar_lea.sflag [#allocation15], 1
    %3868 = vsyncpa %s3867, 1

</llo_original>
